<compile_context>
chip_gen: v7x
topology: tpu7x:2x2x1
jax: 0.10.0
libtpu: 0.0.40
codegen_flags: <defaults>
</compile_context>

<pallas_src>
import functools

import jax
import jax.numpy as jnp
from jax import lax
from jax.experimental import pallas as pl
from jax.experimental.pallas import tpu as pltpu


# ----------------------------- tiling / VMEM helpers ------------------------

@functools.lru_cache(maxsize=None)
def _vmem_limit_bytes() -> int:
    """~75% of physical VMEM (96 MiB on v5e/v6e, 48 MiB on v7x); safe fallback."""
    try:
        cap = int(pltpu.get_tpu_info().vmem_capacity_bytes)
        return min((cap * 3) // 4, 112 * 1024 * 1024)
    except Exception:
        return 48 * 1024 * 1024


def _pick_tile(dim: int, target: int, align: int) -> int:
    """Largest multiple of `align` <= target that divides `dim`, else full dim.

    Guarantees the resulting block dim either equals the full array dim or is
    a multiple of `align` (8 for sublane dims, 128 for lane dims).
    """
    if dim <= target:
        return dim
    t = (target // align) * align
    while t >= align:
        if dim % t == 0:
            return t
        t -= align
    return dim


# ----------------------------- QKV projection -------------------------------

def _qkv_proj_kernel(x_ref, w_ref, b_ref, o_ref, acc_ref):
    """One (s, i, j, k) grid step of qkv = x @ W_s + b_s, s in {q,k,v}."""
    k = pl.program_id(3)

    @pl.when(k == 0)
    def _():
        acc_ref[...] = jnp.zeros_like(acc_ref)

    # Native-dtype (e.g. bf16) operands on the MXU, f32 accumulate.
    acc_ref[...] += jnp.dot(x_ref[...], w_ref[0],
                            preferred_element_type=jnp.float32)

    @pl.when(k == pl.num_programs(3) - 1)
    def _():
        y = acc_ref[...] + b_ref[0].astype(jnp.float32)
        o_ref[0] = y.astype(o_ref.dtype)


def qkv_projection(x, w3, b3, *, tm_target=512, tn_target=512, tk_target=1024):
    """x:[T,D], w3:[3,D,D], b3:[3,1,D] -> qkv:[3,T,D] (q/k/v pre-split)."""
    T, D = x.shape
    tm = _pick_tile(T, tm_target, 8)
    tn = _pick_tile(D, tn_target, 128)
    tk = _pick_tile(D, tk_target, 128)
    grid = (3, T // tm, D // tn, D // tk)
    return pl.pallas_call(
        _qkv_proj_kernel,
        out_shape=jax.ShapeDtypeStruct((3, T, D), x.dtype),
        grid_spec=pltpu.PrefetchScalarGridSpec(
            num_scalar_prefetch=0,
            grid=grid,
            in_specs=[
                pl.BlockSpec((tm, tk), lambda s, i, j, k: (i, k)),
                pl.BlockSpec((1, tk, tn), lambda s, i, j, k: (s, k, j)),
                pl.BlockSpec((1, 1, tn), lambda s, i, j, k: (s, 0, j)),
            ],
            out_specs=pl.BlockSpec((1, tm, tn), lambda s, i, j, k: (s, i, j)),
            scratch_shapes=[pltpu.VMEM((tm, tn), jnp.float32)],
        ),
        compiler_params=pltpu.CompilerParams(
            dimension_semantics=("parallel", "parallel", "parallel",
                                 "arbitrary"),
            vmem_limit_bytes=_vmem_limit_bytes(),
        ),
    )(x, w3, b3)


# ------------------- fused flash causal attention + c_proj ------------------

def _flash_attn_proj_kernel(q_ref, k_ref, v_ref, w_ref, b_ref, o_ref,
                            q_sc, m_sc, l_sc, acc_sc, *,
                            num_heads, head_dim, tq, tkv):
    qi = pl.program_id(0)
    kv = pl.program_id(1)

    @pl.when(kv == 0)
    def _():
        m_sc[...] = jnp.full_like(m_sc, -jnp.inf)
        l_sc[...] = jnp.zeros_like(l_sc)
        acc_sc[...] = jnp.zeros_like(acc_sc)
        # Q relayout hoisted out of the kv loop: one XLU/VPU relayout per
        # q tile instead of one per kv step.
        q_sc[...] = q_ref[0].reshape(tq, num_heads, head_dim).transpose(1, 0, 2)

    def update(apply_causal_mask):
        q = q_sc[...]                                       # (H, tq, Dh)
        k = k_ref[0].reshape(tkv, num_heads, head_dim)
        v = v_ref[0].reshape(tkv, num_heads, head_dim)
        # Scale is folded into the Q weights/bias at prep time.
        s = jnp.einsum("hqd,khd->hqk", q, k,
                       preferred_element_type=jnp.float32)
        if apply_causal_mask:
            # Diagonal tile (qi == kv, tq == tkv): single 2-D mask broadcast
            # over heads — no per-head iota materialization.
            row = lax.broadcasted_iota(jnp.int32, (tq, tkv), 0)
            col = lax.broadcasted_iota(jnp.int32, (tq, tkv), 1)
            s = jnp.where((row >= col)[None], s, jnp.float32(-1e30))
        m_prev = m_sc[...]
        m_new = jnp.maximum(m_prev, jnp.max(s, axis=-1, keepdims=True))
        alpha = jnp.exp(m_prev - m_new)
        p = jnp.exp(s - m_new)
        l_sc[...] = alpha * l_sc[...] + jnp.sum(p, axis=-1, keepdims=True)
        acc_sc[...] = alpha * acc_sc[...] + jnp.einsum(
            "hqk,khd->hqd", p.astype(v.dtype), v,
            preferred_element_type=jnp.float32)
        m_sc[...] = m_new

    # Fully-visible (sub-diagonal) KV tiles: no masking work at all.
    @pl.when(kv < qi)
    def _():
        update(apply_causal_mask=False)

    # Diagonal tile: masked update, normalize, then feed straight through the
    # resident c_proj weights + bias (fully-masked tiles kv > qi are skipped
    # entirely and — via the clamped index_maps — never DMA'd either).
    @pl.when(kv == qi)
    def _():
        update(apply_causal_mask=True)
        inv_l = pl.reciprocal(l_sc[...], approx=True)
        out = acc_sc[...] * inv_l                           # (H, tq, Dh) f32
        out = out.transpose(1, 0, 2).reshape(tq, num_heads * head_dim)
        out = out.astype(w_ref.dtype)
        y = jnp.dot(out, w_ref[...], preferred_element_type=jnp.float32)
        y = y + b_ref[...].astype(jnp.float32)
        o_ref[...] = y.astype(o_ref.dtype)


def flash_attention_proj(qkv3, w_proj, b_proj2d, *, num_heads, tile_target=512):
    """qkv3:[3,T,D] -> c_proj(causal_attention(q,k,v)) : [T,D]."""
    _, T, D = qkv3.shape
    head_dim = D // num_heads
    tq = _pick_tile(T, tile_target, 8)
    tkv = tq                                   # equal tiles => diagonal-only mask
    grid = (T // tq, T // tkv)
    q_spec = pl.BlockSpec((1, tq, D), lambda qi, kv: (0, qi, 0))
    # Clamp kv to qi: upper-triangular (fully masked) steps alias the already
    # resident diagonal block, so Pallas elides the K/V re-fetch (halves K/V
    # HBM traffic for causal prefill).
    k_spec = pl.BlockSpec((1, tkv, D), lambda qi, kv: (1, jnp.minimum(kv, qi), 0))
    v_spec = pl.BlockSpec((1, tkv, D), lambda qi, kv: (2, jnp.minimum(kv, qi), 0))
    w_spec = pl.BlockSpec((D, D), lambda qi, kv: (0, 0))     # resident c_proj W
    b_spec = pl.BlockSpec((1, D), lambda qi, kv: (0, 0))     # resident c_proj b
    return pl.pallas_call(
        functools.partial(_flash_attn_proj_kernel,
                          num_heads=num_heads, head_dim=head_dim,
                          tq=tq, tkv=tkv),
        out_shape=jax.ShapeDtypeStruct((T, D), qkv3.dtype),
        grid_spec=pltpu.PrefetchScalarGridSpec(
            num_scalar_prefetch=0,
            grid=grid,
            in_specs=[q_spec, k_spec, v_spec, w_spec, b_spec],
            out_specs=pl.BlockSpec((tq, D), lambda qi, kv: (qi, 0)),
            scratch_shapes=[
                pltpu.VMEM((num_heads, tq, head_dim), qkv3.dtype),   # q (hoisted)
                pltpu.VMEM((num_heads, tq, 1), jnp.float32),         # m
                pltpu.VMEM((num_heads, tq, 1), jnp.float32),         # l
                pltpu.VMEM((num_heads, tq, head_dim), jnp.float32),  # acc
            ],
        ),
        compiler_params=pltpu.CompilerParams(
            dimension_semantics=("parallel", "arbitrary"),
            vmem_limit_bytes=_vmem_limit_bytes(),
        ),
    )(qkv3, qkv3, qkv3, w_proj, b_proj2d)


# ----------------------------- module wrapper --------------------------------

def prepare_gpt2_attention_params(c_attn_w, c_attn_b, c_proj_w, c_proj_b, *,
                                  scale, compute_dtype):
    """One-time parameter prep (done outside the per-token forward path).

    The softmax scale is folded into the Q weights/bias so the attention
    kernel never multiplies the (H, tq, tkv) score tensor by scale.
    """
    D = c_attn_w.shape[0]
    w3 = c_attn_w.reshape(D, 3, D).transpose(1, 0, 2)   # [3, D, D] (q, k, v)
    b3 = c_attn_b.reshape(3, 1, D)                      # [3, 1, D]
    w3 = w3.at[0].multiply(scale)
    b3 = b3.at[0].multiply(scale)
    return {
        "w_qkv3": w3.astype(compute_dtype),
        "b_qkv3": b3.astype(compute_dtype),
        "w_proj": c_proj_w.astype(compute_dtype),
        "b_proj": c_proj_b.reshape(1, D).astype(compute_dtype),
    }


def gpt2_attention(hidden_states, params, *, num_heads):
    """GPT2Attention.forward: c_attn -> causal attention (+fused c_proj)."""
    qkv3 = qkv_projection(hidden_states, params["w_qkv3"], params["b_qkv3"])
    return flash_attention_proj(qkv3, params["w_proj"], params["b_proj"],
                                num_heads=num_heads)


# ----------------------------- main ------------------------------------------

if __name__ == "__main__":
    T, D, H = 8, 32, 4              # seq=8, hidden=32, heads=4, head_dim=8
    Dh = D // H
    scale = Dh ** -0.5

    key = jax.random.PRNGKey(0)
    k_h, k_w1, k_b1, k_w2, k_b2 = jax.random.split(key, 5)
    hidden_f32 = jax.random.normal(k_h, (T, D), jnp.float32)
    c_attn_w = 0.3 * jax.random.normal(k_w1, (D, 3 * D), jnp.float32)
    c_attn_b = 0.1 * jax.random.normal(k_b1, (3 * D,), jnp.float32)
    c_proj_w = 0.3 * jax.random.normal(k_w2, (D, D), jnp.float32)
    c_proj_b = 0.1 * jax.random.normal(k_b2, (D,), jnp.float32)

    compute_dtype = jnp.bfloat16
    params = prepare_gpt2_attention_params(
        c_attn_w, c_attn_b, c_proj_w, c_proj_b,
        scale=scale, compute_dtype=compute_dtype)
    x = hidden_f32.astype(compute_dtype)

    fwd = jax.jit(functools.partial(gpt2_attention, num_heads=H))
    out = jax.block_until_ready(fwd(x, params))

    assert out.shape == (T, D)
    out_f32 = out.astype(jnp.float32)
    assert bool(jnp.all(jnp.isfinite(out_f32)))

    # Pure-JAX reference (f32 math on the same bf16-rounded params/inputs).
    def reference(h, wqkv, bqkv, wp, bp):
        qkv = h @ wqkv + bqkv
        q, k, v = jnp.split(qkv, 3, axis=-1)
        q = q.reshape(T, H, Dh).transpose(1, 0, 2)
        k = k.reshape(T, H, Dh).transpose(1, 0, 2)
        v = v.reshape(T, H, Dh).transpose(1, 0, 2)
        s = jnp.einsum("hqd,hkd->hqk", q, k) * scale
        mask = jnp.tril(jnp.ones((T, T), dtype=bool))
        s = jnp.where(mask[None], s, -jnp.inf)
        p = jax.nn.softmax(s, axis=-1)
        o = jnp.einsum("hqk,hkd->hqd", p, v).transpose(1, 0, 2).reshape(T, D)
        return o @ wp + bp

    ref_out = reference(
        x.astype(jnp.float32),
        c_attn_w.astype(compute_dtype).astype(jnp.float32),
        c_attn_b.astype(compute_dtype).astype(jnp.float32),
        c_proj_w.astype(compute_dtype).astype(jnp.float32),
        c_proj_b.astype(compute_dtype).astype(jnp.float32),
    )
    assert bool(jnp.allclose(out_f32, ref_out, atol=1e-1, rtol=1e-1))
    print("KERNEL_OK")
</pallas_src>

<mosaic_0001>
module attributes {stable_mosaic.version = 11 : i64} {
  func.func @_flash_attn_proj_kernel(%arg0: i32, %arg1: i32, %arg2: memref<1x8x32xbf16, #tpu.memory_space<vmem>>, %arg3: memref<1x8x32xbf16, #tpu.memory_space<vmem>>, %arg4: memref<1x8x32xbf16, #tpu.memory_space<vmem>>, %arg5: memref<32x32xbf16, #tpu.memory_space<vmem>>, %arg6: memref<1x32xbf16, #tpu.memory_space<vmem>>, %arg7: memref<8x32xbf16, #tpu.memory_space<vmem>>, %arg8: memref<4x8x8xbf16, #tpu.memory_space<vmem>>, %arg9: memref<4x8x1xf32, #tpu.memory_space<vmem>>, %arg10: memref<4x8x1xf32, #tpu.memory_space<vmem>>, %arg11: memref<4x8x8xf32, #tpu.memory_space<vmem>>) attributes {dimension_semantics = [#tpu.dimension_semantics<parallel>, #tpu.dimension_semantics<arbitrary>], iteration_bounds = array<i64: 1, 1>, scalar_prefetch = 0 : i64, scratch_operands = 4 : i64, tpu.core_type = #tpu.core_type<tc>, window_params = [{transform_indices = @transform_0, window_bounds = array<i64: 1, 8, 32>}, {transform_indices = @transform_1, window_bounds = array<i64: 1, 8, 32>}, {transform_indices = @transform_2, window_bounds = array<i64: 1, 8, 32>}, {pipeline_mode = #tpu.pipeline_mode<synchronous>, transform_indices = @transform_3, window_bounds = array<i64: 32, 32>}, {pipeline_mode = #tpu.pipeline_mode<synchronous>, transform_indices = @transform_4, window_bounds = array<i64: 1, 32>}, {transform_indices = @transform_5, window_bounds = array<i64: 8, 32>}]} {
    %c0_i32 = arith.constant 0 : i32
    %0 = arith.cmpi eq, %arg1, %c0_i32 : i32
    %1 = arith.extui %0 : i1 to i32
    %c0_i32_0 = arith.constant 0 : i32
    %2 = arith.cmpi ne, %1, %c0_i32_0 : i32
    scf.if %2 {
      %cst = arith.constant 0xFF800000 : f32
      %9 = vector.broadcast %cst : f32 to vector<4x8x1xf32>
      %c0 = arith.constant 0 : index
      %c0_3 = arith.constant 0 : index
      %c0_4 = arith.constant 0 : index
      %10 = vector.load %arg9[%c0, %c0_3, %c0_4] : memref<4x8x1xf32, #tpu.memory_space<vmem>>, vector<4x8x1xf32>
      tpu.vector_store %arg9[%c0, %c0_3, %c0_4], %9 {strides = array<i32>} : memref<4x8x1xf32, #tpu.memory_space<vmem>>, vector<4x8x1xf32>,
      %cst_5 = arith.constant 0.000000e+00 : f32
      %11 = vector.broadcast %cst_5 : f32 to vector<4x8x1xf32>
      %c0_6 = arith.constant 0 : index
      %c0_7 = arith.constant 0 : index
      %c0_8 = arith.constant 0 : index
      %12 = vector.load %arg10[%c0_6, %c0_7, %c0_8] : memref<4x8x1xf32, #tpu.memory_space<vmem>>, vector<4x8x1xf32>
      tpu.vector_store %arg10[%c0_6, %c0_7, %c0_8], %11 {strides = array<i32>} : memref<4x8x1xf32, #tpu.memory_space<vmem>>, vector<4x8x1xf32>,
      %cst_9 = arith.constant 0.000000e+00 : f32
      %13 = vector.broadcast %cst_9 : f32 to vector<4x8x8xf32>
      %c0_10 = arith.constant 0 : index
      %c0_11 = arith.constant 0 : index
      %c0_12 = arith.constant 0 : index
      %14 = vector.load %arg11[%c0_10, %c0_11, %c0_12] : memref<4x8x8xf32, #tpu.memory_space<vmem>>, vector<4x8x8xf32>
      tpu.vector_store %arg11[%c0_10, %c0_11, %c0_12], %13 {strides = array<i32>} : memref<4x8x8xf32, #tpu.memory_space<vmem>>, vector<4x8x8xf32>,
      %c0_13 = arith.constant 0 : index
      %c0_14 = arith.constant 0 : index
      %c0_15 = arith.constant 0 : index
      %15 = vector.load %arg2[%c0_13, %c0_14, %c0_15] : memref<1x8x32xbf16, #tpu.memory_space<vmem>>, vector<1x8x32xbf16>
      %16 = vector.shape_cast %15 : vector<1x8x32xbf16> to vector<8x32xbf16>
      %17 = vector.shape_cast %16 : vector<8x32xbf16> to vector<8x4x8xbf16>
      %18 = tpu.transpose %17, [1, 0, 2] : vector<8x4x8xbf16> -> vector<4x8x8xbf16>
      %c0_16 = arith.constant 0 : index
      %c0_17 = arith.constant 0 : index
      %c0_18 = arith.constant 0 : index
      %19 = vector.load %arg8[%c0_16, %c0_17, %c0_18] : memref<4x8x8xbf16, #tpu.memory_space<vmem>>, vector<4x8x8xbf16>
      tpu.vector_store %arg8[%c0_16, %c0_17, %c0_18], %18 {strides = array<i32>} : memref<4x8x8xbf16, #tpu.memory_space<vmem>>, vector<4x8x8xbf16>,
    } else {
    }
    %3 = arith.cmpi slt, %arg1, %arg0 : i32
    %4 = arith.extui %3 : i1 to i32
    %c0_i32_1 = arith.constant 0 : i32
    %5 = arith.cmpi ne, %4, %c0_i32_1 : i32
    scf.if %5 {
      %c0 = arith.constant 0 : index
      %c0_3 = arith.constant 0 : index
      %c0_4 = arith.constant 0 : index
      %9 = vector.load %arg8[%c0, %c0_3, %c0_4] : memref<4x8x8xbf16, #tpu.memory_space<vmem>>, vector<4x8x8xbf16>
      %c0_5 = arith.constant 0 : index
      %c0_6 = arith.constant 0 : index
      %c0_7 = arith.constant 0 : index
      %10 = vector.load %arg3[%c0_5, %c0_6, %c0_7] : memref<1x8x32xbf16, #tpu.memory_space<vmem>>, vector<1x8x32xbf16>
      %11 = vector.shape_cast %10 : vector<1x8x32xbf16> to vector<8x32xbf16>
      %12 = vector.shape_cast %11 : vector<8x32xbf16> to vector<8x4x8xbf16>
      %c0_8 = arith.constant 0 : index
      %c0_9 = arith.constant 0 : index
      %c0_10 = arith.constant 0 : index
      %13 = vector.load %arg4[%c0_8, %c0_9, %c0_10] : memref<1x8x32xbf16, #tpu.memory_space<vmem>>, vector<1x8x32xbf16>
      %14 = vector.shape_cast %13 : vector<1x8x32xbf16> to vector<8x32xbf16>
      %15 = vector.shape_cast %14 : vector<8x32xbf16> to vector<8x4x8xbf16>
      "tpu.trace_start"() <{level = 10 : i32, message = "hqd,khd->hqk"}> : () -> ()
      %cst = arith.constant dense<0.000000e+00> : vector<4x8x8xf32>
      %16 = tpu.matmul %9, %12, %cst {dimension_numbers = #tpu.dot_dimension_numbers<[2], [2], [1], [0], [0, 0, 0, 1, 1, 0], [0], [1]>} : vector<4x8x8xbf16>, vector<8x4x8xbf16>, vector<4x8x8xf32> -> vector<4x8x8xf32>
      "tpu.trace_stop"() : () -> ()
      %c0_11 = arith.constant 0 : index
      %c0_12 = arith.constant 0 : index
      %c0_13 = arith.constant 0 : index
      %17 = vector.load %arg9[%c0_11, %c0_12, %c0_13] : memref<4x8x1xf32, #tpu.memory_space<vmem>>, vector<4x8x1xf32>
      %cst_14 = arith.constant dense<0xFF800000> : vector<4x8xf32>
      %18 = vector.multi_reduction <maximumf>, %16, %cst_14 [2] : vector<4x8x8xf32> to vector<4x8xf32>
      %19 = vector.shape_cast %18 : vector<4x8xf32> to vector<4x8x1xf32>
      %20 = arith.maximumf %17, %19 : vector<4x8x1xf32>
      %21 = arith.subf %17, %20 : vector<4x8x1xf32>
      %22 = math.exp %21 : vector<4x8x1xf32>
      %23 = vector.broadcast %20 : vector<4x8x1xf32> to vector<4x8x8xf32>
      %24 = arith.subf %16, %23 : vector<4x8x8xf32>
      %25 = math.exp %24 : vector<4x8x8xf32>
      %c0_15 = arith.constant 0 : index
      %c0_16 = arith.constant 0 : index
      %c0_17 = arith.constant 0 : index
      %26 = vector.load %arg10[%c0_15, %c0_16, %c0_17] : memref<4x8x1xf32, #tpu.memory_space<vmem>>, vector<4x8x1xf32>
      %27 = arith.mulf %22, %26 : vector<4x8x1xf32>
      %cst_18 = arith.constant dense<0.000000e+00> : vector<4x8xf32>
      %28 = vector.multi_reduction <add>, %25, %cst_18 [2] : vector<4x8x8xf32> to vector<4x8xf32>
      %29 = vector.shape_cast %28 : vector<4x8xf32> to vector<4x8x1xf32>
      %30 = arith.addf %27, %29 : vector<4x8x1xf32>
      %c0_19 = arith.constant 0 : index
      %c0_20 = arith.constant 0 : index
      %c0_21 = arith.constant 0 : index
      %31 = vector.load %arg10[%c0_19, %c0_20, %c0_21] : memref<4x8x1xf32, #tpu.memory_space<vmem>>, vector<4x8x1xf32>
      tpu.vector_store %arg10[%c0_19, %c0_20, %c0_21], %30 {strides = array<i32>} : memref<4x8x1xf32, #tpu.memory_space<vmem>>, vector<4x8x1xf32>,
      %c0_22 = arith.constant 0 : index
      %c0_23 = arith.constant 0 : index
      %c0_24 = arith.constant 0 : index
      %32 = vector.load %arg11[%c0_22, %c0_23, %c0_24] : memref<4x8x8xf32, #tpu.memory_space<vmem>>, vector<4x8x8xf32>
      %33 = vector.broadcast %22 : vector<4x8x1xf32> to vector<4x8x8xf32>
      %34 = arith.mulf %33, %32 : vector<4x8x8xf32>
      %35 = arith.truncf %25 : vector<4x8x8xf32> to vector<4x8x8xbf16>
      "tpu.trace_start"() <{level = 10 : i32, message = "hqk,khd->hqd"}> : () -> ()
      %cst_25 = arith.constant dense<0.000000e+00> : vector<4x8x8xf32>
      %36 = tpu.matmul %35, %15, %cst_25 {dimension_numbers = #tpu.dot_dimension_numbers<[2], [0], [1], [2], [0, 0, 0, 1, 1, 2], [0], [1]>} : vector<4x8x8xbf16>, vector<8x4x8xbf16>, vector<4x8x8xf32> -> vector<4x8x8xf32>
      "tpu.trace_stop"() : () -> ()
      %37 = arith.addf %34, %36 : vector<4x8x8xf32>
      %c0_26 = arith.constant 0 : index
      %c0_27 = arith.constant 0 : index
      %c0_28 = arith.constant 0 : index
      %38 = vector.load %arg11[%c0_26, %c0_27, %c0_28] : memref<4x8x8xf32, #tpu.memory_space<vmem>>, vector<4x8x8xf32>
      tpu.vector_store %arg11[%c0_26, %c0_27, %c0_28], %37 {strides = array<i32>} : memref<4x8x8xf32, #tpu.memory_space<vmem>>, vector<4x8x8xf32>,
      %c0_29 = arith.constant 0 : index
      %c0_30 = arith.constant 0 : index
      %c0_31 = arith.constant 0 : index
      %39 = vector.load %arg9[%c0_29, %c0_30, %c0_31] : memref<4x8x1xf32, #tpu.memory_space<vmem>>, vector<4x8x1xf32>
      tpu.vector_store %arg9[%c0_29, %c0_30, %c0_31], %20 {strides = array<i32>} : memref<4x8x1xf32, #tpu.memory_space<vmem>>, vector<4x8x1xf32>,
    } else {
    }
    %6 = arith.cmpi eq, %arg1, %arg0 : i32
    %7 = arith.extui %6 : i1 to i32
    %c0_i32_2 = arith.constant 0 : i32
    %8 = arith.cmpi ne, %7, %c0_i32_2 : i32
    scf.if %8 {
      %c0 = arith.constant 0 : index
      %c0_3 = arith.constant 0 : index
      %c0_4 = arith.constant 0 : index
      %9 = vector.load %arg8[%c0, %c0_3, %c0_4] : memref<4x8x8xbf16, #tpu.memory_space<vmem>>, vector<4x8x8xbf16>
      %c0_5 = arith.constant 0 : index
      %c0_6 = arith.constant 0 : index
      %c0_7 = arith.constant 0 : index
      %10 = vector.load %arg3[%c0_5, %c0_6, %c0_7] : memref<1x8x32xbf16, #tpu.memory_space<vmem>>, vector<1x8x32xbf16>
      %11 = vector.shape_cast %10 : vector<1x8x32xbf16> to vector<8x32xbf16>
      %12 = vector.shape_cast %11 : vector<8x32xbf16> to vector<8x4x8xbf16>
      %c0_8 = arith.constant 0 : index
      %c0_9 = arith.constant 0 : index
      %c0_10 = arith.constant 0 : index
      %13 = vector.load %arg4[%c0_8, %c0_9, %c0_10] : memref<1x8x32xbf16, #tpu.memory_space<vmem>>, vector<1x8x32xbf16>
      %14 = vector.shape_cast %13 : vector<1x8x32xbf16> to vector<8x32xbf16>
      %15 = vector.shape_cast %14 : vector<8x32xbf16> to vector<8x4x8xbf16>
      "tpu.trace_start"() <{level = 10 : i32, message = "hqd,khd->hqk"}> : () -> ()
      %cst = arith.constant dense<0.000000e+00> : vector<4x8x8xf32>
      %16 = tpu.matmul %9, %12, %cst {dimension_numbers = #tpu.dot_dimension_numbers<[2], [2], [1], [0], [0, 0, 0, 1, 1, 0], [0], [1]>} : vector<4x8x8xbf16>, vector<8x4x8xbf16>, vector<4x8x8xf32> -> vector<4x8x8xf32>
      "tpu.trace_stop"() : () -> ()
      %17 = tpu.iota {dimensions = array<i32: 0>} : vector<8x8xi32>
      %18 = tpu.iota {dimensions = array<i32: 1>} : vector<8x8xi32>
      %19 = arith.cmpi sge, %17, %18 : vector<8x8xi32>
      %20 = vector.shape_cast %19 : vector<8x8xi1> to vector<1x8x8xi1>
      %cst_11 = arith.constant -1.000000e+30 : f32
      %21 = vector.shape_cast %20 : vector<1x8x8xi1> to vector<1x8x8xi1>
      %22 = vector.broadcast %21 : vector<1x8x8xi1> to vector<4x8x8xi1>
      %23 = vector.broadcast %cst_11 : f32 to vector<4x8x8xf32>
      %24 = arith.select %22, %16, %23 : vector<4x8x8xi1>, vector<4x8x8xf32>
      %c0_12 = arith.constant 0 : index
      %c0_13 = arith.constant 0 : index
      %c0_14 = arith.constant 0 : index
      %25 = vector.load %arg9[%c0_12, %c0_13, %c0_14] : memref<4x8x1xf32, #tpu.memory_space<vmem>>, vector<4x8x1xf32>
      %cst_15 = arith.constant dense<0xFF800000> : vector<4x8xf32>
      %26 = vector.multi_reduction <maximumf>, %24, %cst_15 [2] : vector<4x8x8xf32> to vector<4x8xf32>
      %27 = vector.shape_cast %26 : vector<4x8xf32> to vector<4x8x1xf32>
      %28 = arith.maximumf %25, %27 : vector<4x8x1xf32>
      %29 = arith.subf %25, %28 : vector<4x8x1xf32>
      %30 = math.exp %29 : vector<4x8x1xf32>
      %31 = vector.broadcast %28 : vector<4x8x1xf32> to vector<4x8x8xf32>
      %32 = arith.subf %24, %31 : vector<4x8x8xf32>
      %33 = math.exp %32 : vector<4x8x8xf32>
      %c0_16 = arith.constant 0 : index
      %c0_17 = arith.constant 0 : index
      %c0_18 = arith.constant 0 : index
      %34 = vector.load %arg10[%c0_16, %c0_17, %c0_18] : memref<4x8x1xf32, #tpu.memory_space<vmem>>, vector<4x8x1xf32>
      %35 = arith.mulf %30, %34 : vector<4x8x1xf32>
      %cst_19 = arith.constant dense<0.000000e+00> : vector<4x8xf32>
      %36 = vector.multi_reduction <add>, %33, %cst_19 [2] : vector<4x8x8xf32> to vector<4x8xf32>
      %37 = vector.shape_cast %36 : vector<4x8xf32> to vector<4x8x1xf32>
      %38 = arith.addf %35, %37 : vector<4x8x1xf32>
      %c0_20 = arith.constant 0 : index
      %c0_21 = arith.constant 0 : index
      %c0_22 = arith.constant 0 : index
      %39 = vector.load %arg10[%c0_20, %c0_21, %c0_22] : memref<4x8x1xf32, #tpu.memory_space<vmem>>, vector<4x8x1xf32>
      tpu.vector_store %arg10[%c0_20, %c0_21, %c0_22], %38 {strides = array<i32>} : memref<4x8x1xf32, #tpu.memory_space<vmem>>, vector<4x8x1xf32>,
      %c0_23 = arith.constant 0 : index
      %c0_24 = arith.constant 0 : index
      %c0_25 = arith.constant 0 : index
      %40 = vector.load %arg11[%c0_23, %c0_24, %c0_25] : memref<4x8x8xf32, #tpu.memory_space<vmem>>, vector<4x8x8xf32>
      %41 = vector.broadcast %30 : vector<4x8x1xf32> to vector<4x8x8xf32>
      %42 = arith.mulf %41, %40 : vector<4x8x8xf32>
      %43 = arith.truncf %33 : vector<4x8x8xf32> to vector<4x8x8xbf16>
      "tpu.trace_start"() <{level = 10 : i32, message = "hqk,khd->hqd"}> : () -> ()
      %cst_26 = arith.constant dense<0.000000e+00> : vector<4x8x8xf32>
      %44 = tpu.matmul %43, %15, %cst_26 {dimension_numbers = #tpu.dot_dimension_numbers<[2], [0], [1], [2], [0, 0, 0, 1, 1, 2], [0], [1]>} : vector<4x8x8xbf16>, vector<8x4x8xbf16>, vector<4x8x8xf32> -> vector<4x8x8xf32>
      "tpu.trace_stop"() : () -> ()
      %45 = arith.addf %42, %44 : vector<4x8x8xf32>
      %c0_27 = arith.constant 0 : index
      %c0_28 = arith.constant 0 : index
      %c0_29 = arith.constant 0 : index
      %46 = vector.load %arg11[%c0_27, %c0_28, %c0_29] : memref<4x8x8xf32, #tpu.memory_space<vmem>>, vector<4x8x8xf32>
      tpu.vector_store %arg11[%c0_27, %c0_28, %c0_29], %45 {strides = array<i32>} : memref<4x8x8xf32, #tpu.memory_space<vmem>>, vector<4x8x8xf32>,
      %c0_30 = arith.constant 0 : index
      %c0_31 = arith.constant 0 : index
      %c0_32 = arith.constant 0 : index
      %47 = vector.load %arg9[%c0_30, %c0_31, %c0_32] : memref<4x8x1xf32, #tpu.memory_space<vmem>>, vector<4x8x1xf32>
      tpu.vector_store %arg9[%c0_30, %c0_31, %c0_32], %28 {strides = array<i32>} : memref<4x8x1xf32, #tpu.memory_space<vmem>>, vector<4x8x1xf32>,
      %c0_33 = arith.constant 0 : index
      %c0_34 = arith.constant 0 : index
      %c0_35 = arith.constant 0 : index
      %48 = vector.load %arg10[%c0_33, %c0_34, %c0_35] : memref<4x8x1xf32, #tpu.memory_space<vmem>>, vector<4x8x1xf32>
      %49 = tpu.reciprocal %48 {approx = true} : vector<4x8x1xf32> -> vector<4x8x1xf32>
      %c0_36 = arith.constant 0 : index
      %c0_37 = arith.constant 0 : index
      %c0_38 = arith.constant 0 : index
      %50 = vector.load %arg11[%c0_36, %c0_37, %c0_38] : memref<4x8x8xf32, #tpu.memory_space<vmem>>, vector<4x8x8xf32>
      %51 = vector.broadcast %49 : vector<4x8x1xf32> to vector<4x8x8xf32>
      %52 = arith.mulf %50, %51 : vector<4x8x8xf32>
      %53 = tpu.transpose %52, [1, 0, 2] : vector<4x8x8xf32> -> vector<8x4x8xf32>
      %54 = vector.shape_cast %53 : vector<8x4x8xf32> to vector<8x32xf32>
      %55 = arith.truncf %54 : vector<8x32xf32> to vector<8x32xbf16>
      %c0_39 = arith.constant 0 : index
      %c0_40 = arith.constant 0 : index
      %56 = vector.load %arg5[%c0_39, %c0_40] : memref<32x32xbf16, #tpu.memory_space<vmem>>, vector<32x32xbf16>
      %cst_41 = arith.constant dense<0.000000e+00> : vector<8x32xf32>
      %57 = tpu.matmul %55, %56, %cst_41 {dimension_numbers = #tpu.dot_dimension_numbers<[1], [0], [0], [1], [0, 0, 1, 1], [], []>} : vector<8x32xbf16>, vector<32x32xbf16>, vector<8x32xf32> -> vector<8x32xf32>
      %c0_42 = arith.constant 0 : index
      %c0_43 = arith.constant 0 : index
      %58 = vector.load %arg6[%c0_42, %c0_43] : memref<1x32xbf16, #tpu.memory_space<vmem>>, vector<1x32xbf16>
      %59 = arith.extf %58 : vector<1x32xbf16> to vector<1x32xf32>
      %60 = vector.broadcast %59 : vector<1x32xf32> to vector<8x32xf32>
      %61 = arith.addf %57, %60 : vector<8x32xf32>
      %62 = arith.truncf %61 : vector<8x32xf32> to vector<8x32xbf16>
      %c0_44 = arith.constant 0 : index
      %c0_45 = arith.constant 0 : index
      %63 = vector.load %arg7[%c0_44, %c0_45] : memref<8x32xbf16, #tpu.memory_space<vmem>>, vector<8x32xbf16>
      tpu.vector_store %arg7[%c0_44, %c0_45], %62 {strides = array<i32>} : memref<8x32xbf16, #tpu.memory_space<vmem>>, vector<8x32xbf16>,
    } else {
    }
    return
  }
  func.func @transform_0(%arg0: i32, %arg1: i32) -> (i32, i32, i32) {
    %c0_i32 = arith.constant 0 : i32
    %c0_i32_0 = arith.constant 0 : i32
    %c0_i32_1 = arith.constant 0 : i32
    return %c0_i32, %arg0, %c0_i32_0 : i32, i32, i32
  }
  func.func @transform_1(%arg0: i32, %arg1: i32) -> (i32, i32, i32) {
    %0 = arith.minsi %arg1, %arg0 : i32
    %c1_i32 = arith.constant 1 : i32
    %c0_i32 = arith.constant 0 : i32
    %c0_i32_0 = arith.constant 0 : i32
    return %c1_i32, %0, %c0_i32 : i32, i32, i32
  }
  func.func @transform_2(%arg0: i32, %arg1: i32) -> (i32, i32, i32) {
    %0 = arith.minsi %arg1, %arg0 : i32
    %c2_i32 = arith.constant 2 : i32
    %c0_i32 = arith.constant 0 : i32
    %c0_i32_0 = arith.constant 0 : i32
    return %c2_i32, %0, %c0_i32 : i32, i32, i32
  }
  func.func @transform_3(%arg0: i32, %arg1: i32) -> (i32, i32) {
    %c0_i32 = arith.constant 0 : i32
    %c0_i32_0 = arith.constant 0 : i32
    %c0_i32_1 = arith.constant 0 : i32
    return %c0_i32, %c0_i32_0 : i32, i32
  }
  func.func @transform_4(%arg0: i32, %arg1: i32) -> (i32, i32) {
    %c0_i32 = arith.constant 0 : i32
    %c0_i32_0 = arith.constant 0 : i32
    %c0_i32_1 = arith.constant 0 : i32
    return %c0_i32, %c0_i32_0 : i32, i32
  }
  func.func @transform_5(%arg0: i32, %arg1: i32) -> (i32, i32) {
    %c0_i32 = arith.constant 0 : i32
    %c0_i32_0 = arith.constant 0 : i32
    return %arg0, %c0_i32 : i32, i32
  }
}

module attributes {stable_mosaic.version = 11 : i64} {
  func.func @_qkv_proj_kernel(%arg0: i32, %arg1: i32, %arg2: i32, %arg3: i32, %arg4: memref<8x32xbf16, #tpu.memory_space<vmem>>, %arg5: memref<1x32x32xbf16, #tpu.memory_space<vmem>>, %arg6: memref<1x1x32xbf16, #tpu.memory_space<vmem>>, %arg7: memref<1x8x32xbf16, #tpu.memory_space<vmem>>, %arg8: memref<8x32xf32, #tpu.memory_space<vmem>>) attributes {dimension_semantics = [#tpu.dimension_semantics<parallel>, #tpu.dimension_semantics<parallel>, #tpu.dimension_semantics<parallel>, #tpu.dimension_semantics<arbitrary>], iteration_bounds = array<i64: 3, 1, 1, 1>, scalar_prefetch = 0 : i64, scratch_operands = 1 : i64, tpu.core_type = #tpu.core_type<tc>, window_params = [{transform_indices = @transform_0, window_bounds = array<i64: 8, 32>}, {transform_indices = @transform_1, window_bounds = array<i64: 1, 32, 32>}, {transform_indices = @transform_2, window_bounds = array<i64: 1, 1, 32>}, {transform_indices = @transform_3, window_bounds = array<i64: 1, 8, 32>}]} {
    %c0_i32 = arith.constant 0 : i32
    %0 = arith.cmpi eq, %arg3, %c0_i32 : i32
    %1 = arith.extui %0 : i1 to i32
    %c0_i32_0 = arith.constant 0 : i32
    %2 = arith.cmpi ne, %1, %c0_i32_0 : i32
    scf.if %2 {
      %cst_11 = arith.constant 0.000000e+00 : f32
      %13 = vector.broadcast %cst_11 : f32 to vector<8x32xf32>
      %c0_12 = arith.constant 0 : index
      %c0_13 = arith.constant 0 : index
      %14 = vector.load %arg8[%c0_12, %c0_13] : memref<8x32xf32, #tpu.memory_space<vmem>>, vector<8x32xf32>
      tpu.vector_store %arg8[%c0_12, %c0_13], %13 {strides = array<i32>} : memref<8x32xf32, #tpu.memory_space<vmem>>, vector<8x32xf32>,
    } else {
    }
    %c0 = arith.constant 0 : index
    %c0_1 = arith.constant 0 : index
    %3 = vector.load %arg8[%c0, %c0_1] : memref<8x32xf32, #tpu.memory_space<vmem>>, vector<8x32xf32>
    %c0_2 = arith.constant 0 : index
    %c0_3 = arith.constant 0 : index
    %4 = vector.load %arg4[%c0_2, %c0_3] : memref<8x32xbf16, #tpu.memory_space<vmem>>, vector<8x32xbf16>
    %c0_4 = arith.constant 0 : index
    %c0_5 = arith.constant 0 : index
    %c0_6 = arith.constant 0 : index
    %5 = vector.load %arg5[%c0_4, %c0_5, %c0_6] : memref<1x32x32xbf16, #tpu.memory_space<vmem>>, vector<1x32x32xbf16>
    %6 = vector.shape_cast %5 : vector<1x32x32xbf16> to vector<32x32xbf16>
    %cst = arith.constant dense<0.000000e+00> : vector<8x32xf32>
    %7 = tpu.matmul %4, %6, %cst {dimension_numbers = #tpu.dot_dimension_numbers<[1], [0], [0], [1], [0, 0, 1, 1], [], []>} : vector<8x32xbf16>, vector<32x32xbf16>, vector<8x32xf32> -> vector<8x32xf32>
    %8 = arith.addf %3, %7 : vector<8x32xf32>
    %c0_7 = arith.constant 0 : index
    %c0_8 = arith.constant 0 : index
    %9 = vector.load %arg8[%c0_7, %c0_8] : memref<8x32xf32, #tpu.memory_space<vmem>>, vector<8x32xf32>
    tpu.vector_store %arg8[%c0_7, %c0_8], %8 {strides = array<i32>} : memref<8x32xf32, #tpu.memory_space<vmem>>, vector<8x32xf32>,
    %c0_i32_9 = arith.constant 0 : i32
    %10 = arith.cmpi eq, %arg3, %c0_i32_9 : i32
    %11 = arith.extui %10 : i1 to i32
    %c0_i32_10 = arith.constant 0 : i32
    %12 = arith.cmpi ne, %11, %c0_i32_10 : i32
    scf.if %12 {
      %c0_11 = arith.constant 0 : index
      %c0_12 = arith.constant 0 : index
      %13 = vector.load %arg8[%c0_11, %c0_12] : memref<8x32xf32, #tpu.memory_space<vmem>>, vector<8x32xf32>
      %c0_13 = arith.constant 0 : index
      %c0_14 = arith.constant 0 : index
      %c0_15 = arith.constant 0 : index
      %14 = vector.load %arg6[%c0_13, %c0_14, %c0_15] : memref<1x1x32xbf16, #tpu.memory_space<vmem>>, vector<1x1x32xbf16>
      %15 = vector.shape_cast %14 : vector<1x1x32xbf16> to vector<1x32xbf16>
      %16 = arith.extf %15 : vector<1x32xbf16> to vector<1x32xf32>
      %17 = vector.broadcast %16 : vector<1x32xf32> to vector<8x32xf32>
      %18 = arith.addf %13, %17 : vector<8x32xf32>
      %19 = arith.truncf %18 : vector<8x32xf32> to vector<8x32xbf16>
      %c0_16 = arith.constant 0 : index
      %c0_17 = arith.constant 0 : index
      %c0_18 = arith.constant 0 : index
      %20 = vector.load %arg7[%c0_16, %c0_17, %c0_18] : memref<1x8x32xbf16, #tpu.memory_space<vmem>>, vector<1x8x32xbf16>
      %21 = vector.shape_cast %20 : vector<1x8x32xbf16> to vector<8x32xbf16>
      %22 = vector.shape_cast %19 : vector<8x32xbf16> to vector<1x8x32xbf16>
      tpu.vector_store %arg7[%c0_16, %c0_17, %c0_18], %22 {strides = array<i32>} : memref<1x8x32xbf16, #tpu.memory_space<vmem>>, vector<1x8x32xbf16>,
    } else {
    }
    return
  }
  func.func @transform_0(%arg0: i32, %arg1: i32, %arg2: i32, %arg3: i32) -> (i32, i32) {
    %c0_i32 = arith.constant 0 : i32
    return %arg1, %arg3 : i32, i32
  }
  func.func @transform_1(%arg0: i32, %arg1: i32, %arg2: i32, %arg3: i32) -> (i32, i32, i32) {
    %c0_i32 = arith.constant 0 : i32
    return %arg0, %arg3, %arg2 : i32, i32, i32
  }
  func.func @transform_2(%arg0: i32, %arg1: i32, %arg2: i32, %arg3: i32) -> (i32, i32, i32) {
    %c0_i32 = arith.constant 0 : i32
    %c0_i32_0 = arith.constant 0 : i32
    return %arg0, %c0_i32, %arg2 : i32, i32, i32
  }
  func.func @transform_3(%arg0: i32, %arg1: i32, %arg2: i32, %arg3: i32) -> (i32, i32, i32) {
    %c0_i32 = arith.constant 0 : i32
    return %arg0, %arg1, %arg2 : i32, i32, i32
  }
}

</mosaic_0001>

<llo_original>
// kernel: gpt2_attention.2
$region0: #{gpt2_attention.2}
  #allocation0 [shape = 'u32[]', space=smem, size = 0x4, offset = 0x4, fixed_abs, tag = 'smem constant byte address 0x4 - core index']
  #allocation1 [shape = 'u32[144,128]{1,0:T(1,128)}', space=vmem, size = 0x12000, scoped, tag = 'internal scratch']
  #allocation2 [shape = 'f32[8,32]{1,0:T(8,128)}', space=vmem, size = 0x1000, scoped, tag = 'scratch operand']
  %s0 = inlined_call_operand.vmem [shape: bf16[8,32], index: 0, kind: input, shape index: {}]
  %s1 = inlined_call_operand.hbm [shape: bf16[3,32,32], index: 1, kind: input, shape index: {}]
  %s2 = inlined_call_operand.vmem [shape: bf16[3,1,32], index: 2, kind: input, shape index: {}]
  %s3 = inlined_call_operand.vmem [shape: bf16[3,8,32], index: 3, kind: output, shape index: {}]
  %s4 = sld [smem:[#allocation0]]
  $region57: #{gpt2_attention.2} parent=0
    _
  %s6 = ssub.s32 1, %s4
  %s7 = scalar_select 0, %s6, %s4
  $region1: #{gpt2_attention.2} parent=0
    #allocation3 [shape = 'u8[16384]{0}', space=vmem, size = 0x4000, scoped, tag = 'input window, operand 1']
    #allocation4 [shape = 's32[2]{0}', space=sflag, size = 0x8, scoped, tag = 'scoped memory for gpt2_attention.2']
    %8 = vsyncpa [#allocation4], 0
    %s9 = scalar_lea.sflag [#allocation4], 1
    %10 = vsyncpa %s9, 0
    loop: start=0, step=1, limit=5
    $region2: #{gpt2_attention.2} parent=1 // loop_pre_header
      _
    $region3: #{gpt2_attention.2} parent=1 // loop_header
      %s12 = sphi 0, %s16
      %p13 = scmp.ge.s32.totalorder %s12, 5
      %s19 = sphi 0, %s45
      %s20 = sphi 0, %s41
      %s21 = sphi 0, %s37
      %s22 = sphi 0, %s33
      %s23 = sphi 0, %s19
      %s24 = sphi 0, %s20
      %s25 = sphi 0, %s21
      %s26 = sphi 0, %s22
      %s27 = sphi 0, %s23
      %s28 = sphi 0, %s24
      %s29 = sphi 0, %s25
      %s30 = sphi 0, %s26
      %s50 = sphi 0, %s52
      %s53 = sphi 0, %s50
      %s54 = sphi 0, %s53
      %s70 = sphi 0, %s54
      %s80 = sphi 0, %s82
      %s83 = sphi 0, %s80
      %s84 = sphi 0, %s83
      %s100 = sphi 0, %s84
      %s108 = sphi 0, %s110
      %s111 = sphi 0, %s108
      %s112 = sphi 0, %s111
      %s128 = sphi 0, %s112
      %s138 = sphi 0, %s140
      %s141 = sphi 0, %s138
      %s142 = sphi 0, %s141
      %s158 = sphi 0, %s142
    $region4: #{gpt2_attention.2} parent=1 // loop_header_branch
      %15 = sbr.rel (%p13) target = $region8
    $region5: #{gpt2_attention.2} parent=1 // loop_body
      %s17 = ssub.s32 %s12, 1
      %s18 = ssub.s32 %s12, 2
      %s31 = sadd.s32 1, %s22
      %p32 = scmp.ge.s32.totalorder %s31, 1
      %s33 = scalar_select %p32, 0, %s31
      %s34 = sadd.s32 1, %s21
      %s35 = scalar_select %p32, %s34, %s21
      %p36 = scmp.ge.s32.totalorder %s35, 1
      %s37 = scalar_select %p36, 0, %s35
      %s38 = sadd.s32 1, %s20
      %s39 = scalar_select %p36, %s38, %s20
      %p40 = scmp.ge.s32.totalorder %s39, 1
      %s41 = scalar_select %p40, 0, %s39
      %s42 = sadd.s32 1, %s19
      %s43 = scalar_select %p40, %s42, %s19
      %p44 = scmp.ge.s32.totalorder %s43, 3
      %s45 = scalar_select %p44, 0, %s43
      %s46 = ssub.s32 %s20, %s41
      %s47 = ssub.s32 %s22, %s33
      %s48 = sor.u32 %s46, %s47
      %p49 = scmp.eq.s32.totalorder %s48, 0
      %s51 = sadd.s32 %s50, 1
      %s52 = scalar_select %p49, %s50, %s51
      %p55 = pneg %p49
      %p56 = scmp.eq.s32.totalorder %s12, 2
      %p57 = por %p55, %p56
      %p58 = scmp.ne.s32.totalorder %s50, %s53
      %p59 = scmp.eq.s32.totalorder %s12, 0
      %p60 = por %p58, %p59
      %p61 = scmp.ne.s32.totalorder %s50, %s53
      %p62 = scmp.eq.s32.totalorder %s17, 2
      %p63 = por %p61, %p62
      %p64 = scmp.ne.s32.totalorder %s53, %s54
      %p65 = scmp.eq.s32.totalorder %s17, 0
      %p66 = por %p64, %p65
      %p67 = scmp.ne.s32.totalorder %s53, %s54
      %p68 = scmp.eq.s32.totalorder %s18, 2
      %p69 = por %p67, %p68
      %p71 = scmp.ne.s32.totalorder %s54, %s70
      %p72 = scmp.eq.s32.totalorder %s18, 0
      %p73 = por %p71, %p72
      %s74 = ssub.s32 %s19, %s45
      %s75 = ssub.s32 %s22, %s33
      %s76 = sor.u32 %s74, %s75
      %s77 = ssub.s32 %s21, %s37
      %s78 = sor.u32 %s76, %s77
      %p79 = scmp.eq.s32.totalorder %s78, 0
      %s81 = sadd.s32 %s80, 1
      %s82 = scalar_select %p79, %s80, %s81
      %p85 = pneg %p79
      %p86 = scmp.eq.s32.totalorder %s12, 2
      %p87 = por %p85, %p86
      %p88 = scmp.ne.s32.totalorder %s80, %s83
      %p89 = scmp.eq.s32.totalorder %s12, 0
      %p90 = por %p88, %p89
      %p91 = scmp.ne.s32.totalorder %s80, %s83
      %p92 = scmp.eq.s32.totalorder %s17, 2
      %p93 = por %p91, %p92
      %p94 = scmp.ne.s32.totalorder %s83, %s84
      %p95 = scmp.eq.s32.totalorder %s17, 0
      %p96 = por %p94, %p95
      %p97 = scmp.ne.s32.totalorder %s83, %s84
      %p98 = scmp.eq.s32.totalorder %s18, 2
      %p99 = por %p97, %p98
      %p101 = scmp.ne.s32.totalorder %s84, %s100
      %p102 = scmp.eq.s32.totalorder %s18, 0
      %p103 = por %p101, %p102
      %s104 = ssub.s32 %s19, %s45
      %s105 = ssub.s32 %s21, %s37
      %s106 = sor.u32 %s104, %s105
      %p107 = scmp.eq.s32.totalorder %s106, 0
      %s109 = sadd.s32 %s108, 1
      %s110 = scalar_select %p107, %s108, %s109
      %p113 = pneg %p107
      %p114 = scmp.eq.s32.totalorder %s12, 2
      %p115 = por %p113, %p114
      %p116 = scmp.ne.s32.totalorder %s108, %s111
      %p117 = scmp.eq.s32.totalorder %s12, 0
      %p118 = por %p116, %p117
      %p119 = scmp.ne.s32.totalorder %s108, %s111
      %p120 = scmp.eq.s32.totalorder %s17, 2
      %p121 = por %p119, %p120
      %p122 = scmp.ne.s32.totalorder %s111, %s112
      %p123 = scmp.eq.s32.totalorder %s17, 0
      %p124 = por %p122, %p123
      %p125 = scmp.ne.s32.totalorder %s111, %s112
      %p126 = scmp.eq.s32.totalorder %s18, 2
      %p127 = por %p125, %p126
      %p129 = scmp.ne.s32.totalorder %s112, %s128
      %p130 = scmp.eq.s32.totalorder %s18, 0
      %p131 = por %p129, %p130
      %s132 = ssub.s32 %s19, %s45
      %s133 = ssub.s32 %s20, %s41
      %s134 = sor.u32 %s132, %s133
      %s135 = ssub.s32 %s21, %s37
      %s136 = sor.u32 %s134, %s135
      %p137 = scmp.eq.s32.totalorder %s136, 0
      %s139 = sadd.s32 %s138, 1
      %s140 = scalar_select %p137, %s138, %s139
      %p143 = pneg %p137
      %p144 = scmp.eq.s32.totalorder %s12, 2
      %p145 = por %p143, %p144
      %p146 = scmp.ne.s32.totalorder %s138, %s141
      %p147 = scmp.eq.s32.totalorder %s12, 0
      %p148 = por %p146, %p147
      %p149 = scmp.ne.s32.totalorder %s138, %s141
      %p150 = scmp.eq.s32.totalorder %s17, 2
      %p151 = por %p149, %p150
      %p152 = scmp.ne.s32.totalorder %s141, %s142
      %p153 = scmp.eq.s32.totalorder %s17, 0
      %p154 = por %p152, %p153
      %p155 = scmp.ne.s32.totalorder %s141, %s142
      %p156 = scmp.eq.s32.totalorder %s18, 2
      %p157 = por %p155, %p156
      %p159 = scmp.ne.s32.totalorder %s142, %s158
      %p160 = scmp.eq.s32.totalorder %s18, 0
      %p161 = por %p159, %p160
      %p162 = scmp.le.s32.totalorder 1, %s12
      %p163 = scmp.lt.s32.totalorder %s12, 4
      %p164 = pnand %p162, %p163
      %p165 = pneg %p164
      // Predicated region
      $region9: #{gpt2_attention.2} parent=5 // pred_check
        _
      $region10: #{gpt2_attention.2} parent=5 // pred_check_branch
        %167 = sbr.rel (%p164) target = $region12
      $region11: #{gpt2_attention.2} parent=5 // pred_region
        %s168 = ssub.s32 %s12, 1
        // Predicated region
        $region13: #{gpt2_attention.2} parent=11 // pred_check
          %p169 = pneg %p66
        $region14: #{gpt2_attention.2} parent=11 // pred_check_branch
          %171 = sbr.rel (%p169) target = $region16
        $region15: #{gpt2_attention.2} parent=11 // pred_region
          %p172 = scmp.lt.s32.totalorder %s24, 0
          %s173 = scalar_select %p172, %s24, 0
          %p174 = scmp.lt.s32.totalorder %s26, 0
          %s175 = scalar_select %p174, %s26, 0
          %s176 = sadd.s32 %s175, %s173
          %s177 = smul.addr %s176, 4
          %s178 = scalar_lea.vmem %s0, %s177
        $region16: #{gpt2_attention.2} parent=11 // pred_fallthru
          _
      $region12: #{gpt2_attention.2} parent=5 // pred_fallthru
        _
      %p179 = scmp.lt.s32.totalorder %s12, 3
      // Predicated region
      $region17: #{gpt2_attention.2} parent=5 // pred_check
        %p180 = pneg %p179
      $region18: #{gpt2_attention.2} parent=5 // pred_check_branch
        %182 = sbr.rel (%p180) target = $region20
      $region19: #{gpt2_attention.2} parent=5 // pred_region
        // Predicated region
        $region21: #{gpt2_attention.2} parent=19 // pred_check
          %p183 = pneg %p90
        $region22: #{gpt2_attention.2} parent=19 // pred_check_branch
          %185 = sbr.rel (%p183) target = $region24
        $region23: #{gpt2_attention.2} parent=19 // pred_region
          %s186 = sand.u32 %s80, 1
          %s187 = scalar_lea.sflag [#allocation4], %s186
          %s188 = sand.u32 %s80, 1
          %s189 = smul.addr %s188, 16
          %s190 = scalar_lea.vmem [#allocation3], %s189
          %s191 = smul.u32 4, %s22
          %s193 = ssub.s32 256, 256
          %194 = vsyncadd %s187, %s193
          %s195 = sadd.s32 %s21, %s191
          %s196 = smul.addr %s19, 4
          %s197 = sadd.s32 %s195, %s196
          %s198 = smul.addr %s197, 64
          %s199 = scalar_lea.hbm %s1, %s198
          %s200 = sshll.u32 %s190, 4
          %s201 = int_to_ptr.vmem [resolvable:$true] %s200
          %206 = dma.hbm_to_vmem [thread:$0]  %s199, 256, %s201, %s187, 64, 64, 4
        $region24: #{gpt2_attention.2} parent=19 // pred_fallthru
          _
        // Predicated region
        $region25: #{gpt2_attention.2} parent=19 // pred_check
          %p207 = pneg %p118
        $region26: #{gpt2_attention.2} parent=19 // pred_check_branch
          %209 = sbr.rel (%p207) target = $region28
        $region27: #{gpt2_attention.2} parent=19 // pred_region
          %p210 = scmp.lt.s32.totalorder %s19, 2
          %s211 = scalar_select %p210, %s19, 2
          %p212 = scmp.lt.s32.totalorder %s21, 0
          %s213 = scalar_select %p212, %s21, 0
          %s214 = sadd.s32 %s213, %s211
          %s215 = scalar_lea.vmem %s2, %s214
        $region28: #{gpt2_attention.2} parent=19 // pred_fallthru
          _
      $region20: #{gpt2_attention.2} parent=5 // pred_fallthru
        _
      %p216 = scmp.le.s32.totalorder 1, %s12
      %p217 = scmp.lt.s32.totalorder %s12, 4
      %p218 = pnand %p216, %p217
      %p219 = pneg %p218
      // Predicated region
      $region29: #{gpt2_attention.2} parent=5 // pred_check
        _
      $region30: #{gpt2_attention.2} parent=5 // pred_check_branch
        %221 = sbr.rel (%p218) target = $region32
      $region31: #{gpt2_attention.2} parent=5 // pred_region
        %s222 = ssub.s32 %s12, 1
        %s223 = sand.u32 %s83, 1
        %s224 = scalar_lea.sflag [#allocation4], %s223
        %s225 = sand.u32 %s83, 1
        %s226 = smul.addr %s225, 16
        %s227 = scalar_lea.vmem [#allocation3], %s226
        // Predicated region
        $region33: #{gpt2_attention.2} parent=31 // pred_check
          %p228 = pneg %p96
        $region34: #{gpt2_attention.2} parent=31 // pred_check_branch
          %230 = sbr.rel (%p228) target = $region36
        $region35: #{gpt2_attention.2} parent=31 // pred_region
          %231 = dma.done %s224, 256
        $region36: #{gpt2_attention.2} parent=31 // pred_fallthru
          _
        %p232 = scmp.lt.s32.totalorder %s24, 0
        %s233 = scalar_select %p232, %s24, 0
        %p234 = scmp.lt.s32.totalorder %s26, 0
        %s235 = scalar_select %p234, %s26, 0
        %s236 = sadd.s32 %s235, %s233
        %s237 = smul.addr %s236, 4
        %s238 = scalar_lea.vmem %s0, %s237
        %p239 = pneg %p66
        %p240 = pneg %p63
        %s241 = sand.u32 %s83, 1
        %s242 = scalar_lea.sflag [#allocation4], %s241
        %s243 = sand.u32 %s83, 1
        %s244 = smul.addr %s243, 16
        %s245 = scalar_lea.vmem [#allocation3], %s244
        %p246 = pneg %p96
        %p247 = pneg %p93
        %p248 = scmp.lt.s32.totalorder %s23, 2
        %s249 = scalar_select %p248, %s23, 2
        %p250 = scmp.lt.s32.totalorder %s25, 0
        %s251 = scalar_select %p250, %s25, 0
        %s252 = sadd.s32 %s251, %s249
        %s253 = scalar_lea.vmem %s2, %s252
        %p254 = pneg %p124
        %p255 = pneg %p121
        %p256 = pneg %p154
        %p257 = pneg %p151
        %p258 = scmp.lt.s32.totalorder %s23, 2
        %s259 = scalar_select %p258, %s23, 2
        %p260 = scmp.lt.s32.totalorder %s24, 0
        %s261 = scalar_select %p260, %s24, 0
        %p262 = scmp.lt.s32.totalorder %s25, 0
        %s263 = scalar_select %p262, %s25, 0
        %s264 = sadd.s32 %s263, %s261
        %s265 = sadd.s32 %s264, %s259
        %s266 = smul.addr %s265, 4
        %s267 = scalar_lea.vmem %s3, %s266
        %p268 = scmp.lt.s32.totalorder %s24, 0
        %s269 = scalar_select %p268, %s24, 0
        %p270 = scmp.lt.s32.totalorder %s26, 0
        %s271 = scalar_select %p270, %s26, 0
        %s272 = sadd.s32 %s271, %s269
        %s273 = smul.addr %s272, 4
        %s274 = scalar_lea.vmem %s0, %s273
        %s275 = smul.u32 4, %s26
        %p276 = scmp.lt.s32.totalorder %s23, 2
        %s277 = scalar_select %p276, %s23, 2
        %p278 = scmp.lt.s32.totalorder %s25, 0
        %s279 = scalar_select %p278, %s25, 0
        %s280 = sadd.s32 %s279, %s277
        %s281 = scalar_lea.vmem %s2, %s280
        %p282 = scmp.lt.s32.totalorder %s23, 2
        %s283 = scalar_select %p282, %s23, 2
        %p284 = scmp.lt.s32.totalorder %s24, 0
        %s285 = scalar_select %p284, %s24, 0
        %p286 = scmp.lt.s32.totalorder %s25, 0
        %s287 = scalar_select %p286, %s25, 0
        %s288 = sadd.s32 %s287, %s285
        %s289 = sadd.s32 %s288, %s283
        %s290 = smul.addr %s289, 4
        %s291 = scalar_lea.vmem %s3, %s290
        %p293 = scmp.eq.s32.totalorder %s26, 0
        // Predicated region
        $region37: #{gpt2_attention.2} parent=31 // pred_check
          %p294 = pneg %p293
        $region38: #{gpt2_attention.2} parent=31 // pred_check_branch
          %296 = sbr.rel (%p294) target = $region40
        $region39: #{gpt2_attention.2} parent=31 // pred_region
          %vm297 = vcmask 261120
          %298 = vst.msk [vmem:[#allocation2] sm:$0xff] %vm297, 0.0
        $region40: #{gpt2_attention.2} parent=31 // pred_fallthru
          _
        %v299 = vld [vmem:[#allocation2] sm:$0xff]
        %v300 = vld [vmem:[%s274] sm:$0xf]
        %v301 = vld [vmem:[%s227] sm:$0xf]
        %v302 = vld [vmem:[%s227 + $0x4] sm:$0xf]
        %v303 = vld [vmem:[%s227 + $0x8] sm:$0xf]
        %v304 = vld [vmem:[%s227 + $0xc] sm:$0xf]
        %v309 = vunpack.c.l.b16 %v301
        %v310 = vunpack.c.l.b16 %v302
        %v311 = vunpack.c.l.b16 %v303
        %v312 = vunpack.c.l.b16 %v304
        %v313 = vpack.c.b16 %v310, %v309
        %v314 = vpack.c.b16 %v312, %v311
        %vm317 = vcmask 261120
        %v319 = vsel %vm317, %v300, 0
        %321 = vmatprep.subr.bf16.mxu0 0
        %322 = vmatpush1.bf16.msra.mxu0 %v313
        %323 = vmatprep.subr.bf16.mxu0 0
        %324 = vmatpush1.bf16.msra.mxu0 %v314
        %325 = vmatprep.subr.bf16.mxu0 0
        %326 = vmatpush1.bf16.msra.mxu0 0
        %327 = vmatprep.subr.bf16.mxu0 0
        %328 = vmatpush1.bf16.msra.mxu0 0
        %329 = vmatprep.subr.bf16.mxu0 0
        %330 = vmatpush1.bf16.msra.mxu0 0
        %331 = vmatprep.subr.bf16.mxu0 0
        %332 = vmatpush1.bf16.msra.mxu0 0
        %333 = vmatprep.subr.bf16.mxu0 0
        %334 = vmatpush1.bf16.msra.mxu0 0
        %335 = vmatprep.subr.bf16.mxu0 0
        %336 = vmatpush1.bf16.msra.mxu0 0
        %337 = vmatprep.subr.bf16.mxu0 0
        %338 = vmatpush1.bf16.msra.mxu0 0
        %339 = vmatprep.subr.bf16.mxu0 0
        %340 = vmatpush1.bf16.msra.mxu0 0
        %341 = vmatprep.subr.bf16.mxu0 0
        %342 = vmatpush1.bf16.msra.mxu0 0
        %343 = vmatprep.subr.bf16.mxu0 0
        %344 = vmatpush1.bf16.msra.mxu0 0
        %345 = vmatprep.subr.bf16.mxu0 0
        %346 = vmatpush1.bf16.msra.mxu0 0
        %347 = vmatprep.subr.bf16.mxu0 0
        %348 = vmatpush1.bf16.msra.mxu0 0
        %349 = vmatprep.subr.bf16.mxu0 0
        %350 = vmatpush1.bf16.msra.mxu0 0
        %351 = vmatprep.subr.bf16.mxu0 0
        %352 = vmatpush1.bf16.msra.mxu0 0
        %353 = vmatprep.mubr.bf16.mxu0 0
        %354 = vmatmul.mubr.bf16.gmra.mrb[0].mxu0 %v319
        %v355 = vpop.f32.mrb[0].mxu0
        %v356 = vadd.f32 0.0, %v355
        %v357 = vpop.f32.mrb[0].mxu0
        %v358 = vpop.f32.mrb[0].mxu0
        %v359 = vpop.f32.mrb[0].mxu0
        %360 = vdwg.mxu0
        %v361 = vadd.f32 %v299, %v356
        %362 = vst.msk [vmem:[#allocation2] sm:$0xff] %vm317, %v361
        // Predicated region
        $region41: #{gpt2_attention.2} parent=31 // pred_check
          %p363 = pneg %p293
        $region42: #{gpt2_attention.2} parent=31 // pred_check_branch
          %365 = sbr.rel (%p363) target = $region44
        $region43: #{gpt2_attention.2} parent=31 // pred_region
          %v366 = vld [vmem:[#allocation2] sm:$0xff]
          %v367 = vld [vmem:[%s281] sm:$0x1]
          %v368 = vunpack.c.l.bf16 %v367
          %v369 = vlaneseq
          %v370 = vshrl.u32 %v369, 7
          %v371 = vsub.s32 0, %v370
          %v372 = vrot.slane %v368, %v371
          %v373 = vadd.f32 %v366, %v372
          %v374 = vpack.c.bf16 %v373, %v373
          %vm375 = vcmask 257024
          %376 = vst.msk [vmem:[%s291] sm:$0xf] %vm375, %v374
        $region44: #{gpt2_attention.2} parent=31 // pred_fallthru
          _
        %p377 = scmp.lt.s32.totalorder %s23, 2
        %s378 = scalar_select %p377, %s23, 2
        %p379 = scmp.lt.s32.totalorder %s24, 0
        %s380 = scalar_select %p379, %s24, 0
        %p381 = scmp.lt.s32.totalorder %s25, 0
        %s382 = scalar_select %p381, %s25, 0
        %s383 = sadd.s32 %s382, %s380
        %s384 = sadd.s32 %s383, %s378
        %s385 = smul.addr %s384, 4
        %s386 = scalar_lea.vmem %s3, %s385
        // Predicated region
        $region45: #{gpt2_attention.2} parent=31 // pred_check
          %p387 = pneg %p151
        $region46: #{gpt2_attention.2} parent=31 // pred_check_branch
          %389 = sbr.rel (%p387) target = $region48
        $region47: #{gpt2_attention.2} parent=31 // pred_region
          _
        $region48: #{gpt2_attention.2} parent=31 // pred_fallthru
          _
      $region32: #{gpt2_attention.2} parent=5 // pred_fallthru
        _
      %p390 = scmp.le.s32.totalorder 2, %s12
      // Predicated region
      $region49: #{gpt2_attention.2} parent=5 // pred_check
        %p391 = pneg %p390
      $region50: #{gpt2_attention.2} parent=5 // pred_check_branch
        %393 = sbr.rel (%p391) target = $region52
      $region51: #{gpt2_attention.2} parent=5 // pred_region
        %s394 = ssub.s32 %s12, 2
        // Predicated region
        $region53: #{gpt2_attention.2} parent=51 // pred_check
          %p395 = pneg %p157
        $region54: #{gpt2_attention.2} parent=51 // pred_check_branch
          %397 = sbr.rel (%p395) target = $region56
        $region55: #{gpt2_attention.2} parent=51 // pred_region
          %p398 = scmp.lt.s32.totalorder %s27, 2
          %s399 = scalar_select %p398, %s27, 2
          %p400 = scmp.lt.s32.totalorder %s28, 0
          %s401 = scalar_select %p400, %s28, 0
          %p402 = scmp.lt.s32.totalorder %s29, 0
          %s403 = scalar_select %p402, %s29, 0
          %s404 = sadd.s32 %s403, %s401
          %s405 = sadd.s32 %s404, %s399
          %s406 = smul.addr %s405, 4
          %s407 = scalar_lea.vmem %s3, %s406
        $region56: #{gpt2_attention.2} parent=51 // pred_fallthru
          _
      $region52: #{gpt2_attention.2} parent=5 // pred_fallthru
        _
    $region6: #{gpt2_attention.2} parent=1 // loop_footer
      %s16 = sadd.s32 1, %s12
    $region7: #{gpt2_attention.2} parent=1 // loop_footer_branch
      %11 = sbr.rel target = $region3
    $region8: #{gpt2_attention.2} parent=1 // loop_exit
      _
    %408 = vsyncpa [#allocation4], 1
    %s409 = scalar_lea.sflag [#allocation4], 1
    %410 = vsyncpa %s409, 1

// kernel: gpt2_attention.3
$region0: #{gpt2_attention.3}
  #allocation0 [shape = 'u32[]', space=smem, size = 0x4, offset = 0x4, fixed_abs, tag = 'smem constant byte address 0x4 - core index']
  #allocation1 [shape = 'u32[144,128]{1,0:T(1,128)}', space=vmem, size = 0x12000, scoped, tag = 'internal scratch']
  #allocation2 [shape = 'bf16[4,8,8]{2,1,0:T(8,128)(2,1)}', space=vmem, size = 0x2000, scoped, tag = 'scratch operand']
  #allocation3 [shape = 'f32[4,8,1]{2,1,0:T(8,128)}', space=vmem, size = 0x4000, scoped, tag = 'scratch operand']
  #allocation4 [shape = 'f32[4,8,1]{2,1,0:T(8,128)}', space=vmem, size = 0x4000, scoped, tag = 'scratch operand']
  #allocation5 [shape = 'f32[4,8,8]{2,1,0:T(8,128)}', space=vmem, size = 0x4000, scoped, tag = 'scratch operand']
  %s0 = inlined_call_operand.vmem [shape: bf16[3,8,32], index: 0, kind: input, shape index: {}, may-alias: {0,1,2}]
  %s1 = inlined_call_operand.vmem [shape: bf16[3,8,32], index: 1, kind: input, shape index: {}, may-alias: {0,1,2}]
  %s2 = inlined_call_operand.vmem [shape: bf16[3,8,32], index: 2, kind: input, shape index: {}, may-alias: {0,1,2}]
  %s3 = inlined_call_operand.vmem [shape: bf16[32,32], index: 3, kind: input, shape index: {}]
  %s4 = inlined_call_operand.vmem [shape: bf16[1,32], index: 4, kind: input, shape index: {}]
  %s5 = inlined_call_operand.hbm [shape: bf16[8,32], index: 5, kind: output, shape index: {}]
  %s6 = sld [smem:[#allocation0]]
  $region42: #{gpt2_attention.3} parent=0
    _
  %s8 = ssub.s32 1, %s6
  %s9 = scalar_select 0, %s8, %s6
  $region1: #{gpt2_attention.3} parent=0
    #allocation6 [shape = 'u8[2048]{0}', space=vmem, size = 0x800, scoped, tag = 'output window, operand 0, single buffered']
    #allocation7 [shape = 's32[1]{0}', space=sflag, size = 0x4, scoped, tag = 'scoped memory for gpt2_attention.3']
    %10 = vsyncpa [#allocation7], 0
    // Predicated region
    $region2: #{gpt2_attention.3} parent=1 // pred_check
      _
    $region3: #{gpt2_attention.3} parent=1 // pred_check_branch
      %12 = sbr.rel (0) target = $region5
    $region4: #{gpt2_attention.3} parent=1 // pred_region
      _
    $region5: #{gpt2_attention.3} parent=1 // pred_fallthru
      _
    // Predicated region
    $region6: #{gpt2_attention.3} parent=1 // pred_check
      _
    $region7: #{gpt2_attention.3} parent=1 // pred_check_branch
      %14 = sbr.rel (0) target = $region9
    $region8: #{gpt2_attention.3} parent=1 // pred_region
      %s15 = scalar_lea.vmem %s1, 4
    $region9: #{gpt2_attention.3} parent=1 // pred_fallthru
      _
    // Predicated region
    $region10: #{gpt2_attention.3} parent=1 // pred_check
      _
    $region11: #{gpt2_attention.3} parent=1 // pred_check_branch
      %17 = sbr.rel (0) target = $region13
    $region12: #{gpt2_attention.3} parent=1 // pred_region
      %s18 = scalar_lea.vmem %s2, 8
    $region13: #{gpt2_attention.3} parent=1 // pred_fallthru
      _
    // Predicated region
    $region14: #{gpt2_attention.3} parent=1 // pred_check
      _
    $region15: #{gpt2_attention.3} parent=1 // pred_check_branch
      %20 = sbr.rel (0) target = $region17
    $region16: #{gpt2_attention.3} parent=1 // pred_region
      _
    $region17: #{gpt2_attention.3} parent=1 // pred_fallthru
      _
    // Predicated region
    $region18: #{gpt2_attention.3} parent=1 // pred_check
      _
    $region19: #{gpt2_attention.3} parent=1 // pred_check_branch
      %22 = sbr.rel (0) target = $region21
    $region20: #{gpt2_attention.3} parent=1 // pred_region
      _
    $region21: #{gpt2_attention.3} parent=1 // pred_fallthru
      _
    %s23 = scalar_lea.vmem %s1, 4
    %s24 = scalar_lea.vmem %s2, 8
    %s25 = scalar_lea.vmem %s1, 4
    %s26 = scalar_lea.vmem %s2, 8
    %p28 = scmp.eq.s32.totalorder 0, 0
    // Predicated region
    $region22: #{gpt2_attention.3} parent=1 // pred_check
      %p29 = pneg %p28
    $region23: #{gpt2_attention.3} parent=1 // pred_check_branch
      %31 = sbr.rel (%p29) target = $region25
    $region24: #{gpt2_attention.3} parent=1 // pred_region
      %vm32 = vcmask 7168
      %33 = vst.msk [vmem:[#allocation3] sm:$0xff] %vm32, -inf
      %34 = vst.msk [vmem:[#allocation3 + $0x8] sm:$0xff] %vm32, -inf
      %35 = vst.msk [vmem:[#allocation3 + $0x10] sm:$0xff] %vm32, -inf
      %36 = vst.msk [vmem:[#allocation3 + $0x18] sm:$0xff] %vm32, -inf
      %37 = vst.msk [vmem:[#allocation4] sm:$0xff] %vm32, 0.0
      %38 = vst.msk [vmem:[#allocation4 + $0x8] sm:$0xff] %vm32, 0.0
      %39 = vst.msk [vmem:[#allocation4 + $0x10] sm:$0xff] %vm32, 0.0
      %40 = vst.msk [vmem:[#allocation4 + $0x18] sm:$0xff] %vm32, 0.0
      %vm41 = vcmask 64512
      %42 = vst.msk [vmem:[#allocation5] sm:$0xff] %vm41, 0.0
      %43 = vst.msk [vmem:[#allocation5 + $0x8] sm:$0xff] %vm41, 0.0
      %44 = vst.msk [vmem:[#allocation5 + $0x10] sm:$0xff] %vm41, 0.0
      %45 = vst.msk [vmem:[#allocation5 + $0x18] sm:$0xff] %vm41, 0.0
      %v46 = vld [vmem:[%s0] sm:$0xf]
      %48 = vrot.lane.b32.xlu0 %v46, 120
      %v49 = vpop.permute.xlu0 %48
      %50 = vrot.lane.b32.xlu0 %v46, 112
      %v51 = vpop.permute.xlu0 %50
      %52 = vrot.lane.b32.xlu0 %v46, 104
      %v53 = vpop.permute.xlu0 %52
      %v56 = vpack.i.b16 %v49, %v46
      %v57 = vshrl.u32 %v46, 16
      %v58 = vshrl.u32 %v49, 16
      %v59 = vpack.i.b16 %v58, %v57
      %v62 = vpack.i.b16 %v53, %v51
      %v63 = vshrl.u32 %v51, 16
      %v64 = vshrl.u32 %v53, 16
      %v65 = vpack.i.b16 %v64, %v63
      %v68 = vunpack.c.l.s4 1983009808
      %v69 = vunpack.c.0.s8 %v68
      %v70 = vlaneseq
      %v71 = vshrl.u32 %v70, 7
      %v72 = vsub.s32 %v69, %v71
      %v73 = vrot.slane %v56, %v72
      %v76 = vunpack.c.l.s4 1983009808
      %v77 = vunpack.c.0.s8 %v76
      %v78 = vlaneseq
      %v79 = vshrl.u32 %v78, 7
      %v80 = vsub.s32 %v77, %v79
      %v81 = vrot.slane %v62, %v80
      %v82 = vcombine.low %v73, %v81
      %v83 = vcombine.high %v73, %v81
      %v85 = vunpack.c.l.s4 1934713408
      %v86 = vunpack.c.0.s8 %v85
      %v87 = vlaneseq
      %v88 = vshrl.u32 %v87, 7
      %v89 = vsub.s32 %v86, %v88
      %v90 = vrot.slane %v82, %v89
      %v92 = vunpack.c.l.s4 1934713408
      %v93 = vunpack.c.0.s8 %v92
      %v94 = vlaneseq
      %v95 = vshrl.u32 %v94, 7
      %v96 = vsub.s32 %v93, %v95
      %v97 = vrot.slane %v83, %v96
      %v98 = vcombine.high %v90, 0
      %v99 = vcombine.high %v97, 0
      %v102 = vunpack.c.l.s4 1983009808
      %v103 = vunpack.c.0.s8 %v102
      %v104 = vlaneseq
      %v105 = vshrl.u32 %v104, 7
      %v106 = vsub.s32 %v103, %v105
      %v107 = vrot.slane %v59, %v106
      %v110 = vunpack.c.l.s4 1983009808
      %v111 = vunpack.c.0.s8 %v110
      %v112 = vlaneseq
      %v113 = vshrl.u32 %v112, 7
      %v114 = vsub.s32 %v111, %v113
      %v115 = vrot.slane %v65, %v114
      %v116 = vcombine.low %v107, %v115
      %v117 = vcombine.high %v107, %v115
      %v119 = vunpack.c.l.s4 1934713408
      %v120 = vunpack.c.0.s8 %v119
      %v121 = vlaneseq
      %v122 = vshrl.u32 %v121, 7
      %v123 = vsub.s32 %v120, %v122
      %v124 = vrot.slane %v116, %v123
      %v126 = vunpack.c.l.s4 1934713408
      %v127 = vunpack.c.0.s8 %v126
      %v128 = vlaneseq
      %v129 = vshrl.u32 %v128, 7
      %v130 = vsub.s32 %v127, %v129
      %v131 = vrot.slane %v117, %v130
      %v132 = vcombine.high %v124, 0
      %v133 = vcombine.high %v131, 0
      %v134 = vcombine.low %v90, %v97
      %v136 = vunpack.c.l.s4 1983009808
      %v137 = vunpack.c.0.s8 %v136
      %v138 = vlaneseq
      %v139 = vshrl.u32 %v138, 7
      %v140 = vsub.s32 %v137, %v139
      %v141 = vrot.slane %v134, %v140
      %v142 = vcombine.low %v98, %v99
      %v144 = vunpack.c.l.s4 1983009808
      %v145 = vunpack.c.0.s8 %v144
      %v146 = vlaneseq
      %v147 = vshrl.u32 %v146, 7
      %v148 = vsub.s32 %v145, %v147
      %v149 = vrot.slane %v142, %v148
      %v150 = vcombine.low %v141, %v149
      %v152 = vunpack.c.l.s4 1934713408
      %v153 = vunpack.c.0.s8 %v152
      %v154 = vlaneseq
      %v155 = vshrl.u32 %v154, 7
      %v156 = vsub.s32 %v153, %v155
      %v157 = vrot.slane %v150, %v156
      %v158 = vcombine.high %v157, 0
      %v159 = vcombine.low %v124, %v131
      %v161 = vunpack.c.l.s4 1983009808
      %v162 = vunpack.c.0.s8 %v161
      %v163 = vlaneseq
      %v164 = vshrl.u32 %v163, 7
      %v165 = vsub.s32 %v162, %v164
      %v166 = vrot.slane %v159, %v165
      %v167 = vcombine.low %v132, %v133
      %v169 = vunpack.c.l.s4 1983009808
      %v170 = vunpack.c.0.s8 %v169
      %v171 = vlaneseq
      %v172 = vshrl.u32 %v171, 7
      %v173 = vsub.s32 %v170, %v172
      %v174 = vrot.slane %v167, %v173
      %v175 = vcombine.low %v166, %v174
      %v177 = vunpack.c.l.s4 1934713408
      %v178 = vunpack.c.0.s8 %v177
      %v179 = vlaneseq
      %v180 = vshrl.u32 %v179, 7
      %v181 = vsub.s32 %v178, %v180
      %v182 = vrot.slane %v175, %v181
      %v183 = vcombine.high %v182, 0
      %v186 = vpack.i.b16 %v182, %v157
      %v188 = vshrl.u32 %v157, 16
      %v189 = vshrl.u32 %v182, 16
      %v190 = vpack.i.b16 %v189, %v188
      %v194 = vpack.i.b16 %v183, %v158
      %v196 = vshrl.u32 %v158, 16
      %v197 = vshrl.u32 %v183, 16
      %v198 = vpack.i.b16 %v197, %v196
      %vm200 = vcmask 60416
      %201 = vst.msk [vmem:[#allocation2] sm:$0xf] %vm200, %v186
      %202 = vst.msk [vmem:[#allocation2 + $0x4] sm:$0xf] %vm200, %v190
      %203 = vst.msk [vmem:[#allocation2 + $0x8] sm:$0xf] %vm200, %v194
      %204 = vst.msk [vmem:[#allocation2 + $0xc] sm:$0xf] %vm200, %v198
    $region25: #{gpt2_attention.3} parent=1 // pred_fallthru
      _
    %p205 = scmp.lt.s32.totalorder 0, 0
    // Predicated region
    $region26: #{gpt2_attention.3} parent=1 // pred_check
      %p206 = pneg %p205
    $region27: #{gpt2_attention.3} parent=1 // pred_check_branch
      %208 = sbr.rel (%p206) target = $region29
    $region28: #{gpt2_attention.3} parent=1 // pred_region
      %v209 = vld [vmem:[#allocation2] sm:$0xf]
      %v210 = vld [vmem:[#allocation2 + $0x4] sm:$0xf]
      %v211 = vld [vmem:[#allocation2 + $0x8] sm:$0xf]
      %v212 = vld [vmem:[#allocation2 + $0xc] sm:$0xf]
      %v213 = vld [vmem:[%s25] sm:$0xf]
      %215 = vrot.lane.b32.xlu0 %v213, 120
      %v216 = vpop.permute.xlu0 %215
      %217 = vrot.lane.b32.xlu0 %v213, 112
      %v218 = vpop.permute.xlu0 %217
      %219 = vrot.lane.b32.xlu0 %v213, 104
      %v220 = vpop.permute.xlu0 %219
      %v223 = vpack.i.b16 %v216, %v213
      %v224 = vshrl.u32 %v213, 16
      %v225 = vshrl.u32 %v216, 16
      %v226 = vpack.i.b16 %v225, %v224
      %v229 = vpack.i.b16 %v220, %v218
      %v230 = vshrl.u32 %v218, 16
      %v231 = vshrl.u32 %v220, 16
      %v232 = vpack.i.b16 %v231, %v230
      %v235 = vunpack.c.l.s4 1983009808
      %v236 = vunpack.c.0.s8 %v235
      %v237 = vlaneseq
      %v238 = vshrl.u32 %v237, 7
      %v239 = vsub.s32 %v236, %v238
      %v240 = vrot.slane %v223, %v239
      %v243 = vunpack.c.l.s4 1983009808
      %v244 = vunpack.c.0.s8 %v243
      %v245 = vlaneseq
      %v246 = vshrl.u32 %v245, 7
      %v247 = vsub.s32 %v244, %v246
      %v248 = vrot.slane %v229, %v247
      %v249 = vcombine.low %v240, %v248
      %v250 = vcombine.high %v240, %v248
      %v252 = vunpack.c.l.s4 1934713408
      %v253 = vunpack.c.0.s8 %v252
      %v254 = vlaneseq
      %v255 = vshrl.u32 %v254, 7
      %v256 = vsub.s32 %v253, %v255
      %v257 = vrot.slane %v249, %v256
      %v259 = vunpack.c.l.s4 1934713408
      %v260 = vunpack.c.0.s8 %v259
      %v261 = vlaneseq
      %v262 = vshrl.u32 %v261, 7
      %v263 = vsub.s32 %v260, %v262
      %v264 = vrot.slane %v250, %v263
      %v265 = vcombine.high %v257, 0
      %v266 = vcombine.high %v264, 0
      %v269 = vunpack.c.l.s4 1983009808
      %v270 = vunpack.c.0.s8 %v269
      %v271 = vlaneseq
      %v272 = vshrl.u32 %v271, 7
      %v273 = vsub.s32 %v270, %v272
      %v274 = vrot.slane %v226, %v273
      %v277 = vunpack.c.l.s4 1983009808
      %v278 = vunpack.c.0.s8 %v277
      %v279 = vlaneseq
      %v280 = vshrl.u32 %v279, 7
      %v281 = vsub.s32 %v278, %v280
      %v282 = vrot.slane %v232, %v281
      %v283 = vcombine.low %v274, %v282
      %v284 = vcombine.high %v274, %v282
      %v286 = vunpack.c.l.s4 1934713408
      %v287 = vunpack.c.0.s8 %v286
      %v288 = vlaneseq
      %v289 = vshrl.u32 %v288, 7
      %v290 = vsub.s32 %v287, %v289
      %v291 = vrot.slane %v283, %v290
      %v293 = vunpack.c.l.s4 1934713408
      %v294 = vunpack.c.0.s8 %v293
      %v295 = vlaneseq
      %v296 = vshrl.u32 %v295, 7
      %v297 = vsub.s32 %v294, %v296
      %v298 = vrot.slane %v284, %v297
      %v299 = vcombine.high %v291, 0
      %v300 = vcombine.high %v298, 0
      %v301 = vld [vmem:[%s26] sm:$0xf]
      %303 = vrot.lane.b32.xlu0 %v301, 120
      %v304 = vpop.permute.xlu0 %303
      %305 = vrot.lane.b32.xlu0 %v301, 112
      %v306 = vpop.permute.xlu0 %305
      %307 = vrot.lane.b32.xlu0 %v301, 104
      %v308 = vpop.permute.xlu0 %307
      %v311 = vpack.i.b16 %v304, %v301
      %v312 = vshrl.u32 %v301, 16
      %v313 = vshrl.u32 %v304, 16
      %v314 = vpack.i.b16 %v313, %v312
      %v317 = vpack.i.b16 %v308, %v306
      %v318 = vshrl.u32 %v306, 16
      %v319 = vshrl.u32 %v308, 16
      %v320 = vpack.i.b16 %v319, %v318
      %v323 = vunpack.c.l.s4 1983009808
      %v324 = vunpack.c.0.s8 %v323
      %v325 = vlaneseq
      %v326 = vshrl.u32 %v325, 7
      %v327 = vsub.s32 %v324, %v326
      %v328 = vrot.slane %v311, %v327
      %v331 = vunpack.c.l.s4 1983009808
      %v332 = vunpack.c.0.s8 %v331
      %v333 = vlaneseq
      %v334 = vshrl.u32 %v333, 7
      %v335 = vsub.s32 %v332, %v334
      %v336 = vrot.slane %v317, %v335
      %v337 = vcombine.low %v328, %v336
      %v338 = vcombine.high %v328, %v336
      %v340 = vunpack.c.l.s4 1934713408
      %v341 = vunpack.c.0.s8 %v340
      %v342 = vlaneseq
      %v343 = vshrl.u32 %v342, 7
      %v344 = vsub.s32 %v341, %v343
      %v345 = vrot.slane %v337, %v344
      %v347 = vunpack.c.l.s4 1934713408
      %v348 = vunpack.c.0.s8 %v347
      %v349 = vlaneseq
      %v350 = vshrl.u32 %v349, 7
      %v351 = vsub.s32 %v348, %v350
      %v352 = vrot.slane %v338, %v351
      %v353 = vcombine.high %v345, 0
      %v354 = vcombine.high %v352, 0
      %v357 = vunpack.c.l.s4 1983009808
      %v358 = vunpack.c.0.s8 %v357
      %v359 = vlaneseq
      %v360 = vshrl.u32 %v359, 7
      %v361 = vsub.s32 %v358, %v360
      %v362 = vrot.slane %v314, %v361
      %v365 = vunpack.c.l.s4 1983009808
      %v366 = vunpack.c.0.s8 %v365
      %v367 = vlaneseq
      %v368 = vshrl.u32 %v367, 7
      %v369 = vsub.s32 %v366, %v368
      %v370 = vrot.slane %v320, %v369
      %v371 = vcombine.low %v362, %v370
      %v372 = vcombine.high %v362, %v370
      %v374 = vunpack.c.l.s4 1934713408
      %v375 = vunpack.c.0.s8 %v374
      %v376 = vlaneseq
      %v377 = vshrl.u32 %v376, 7
      %v378 = vsub.s32 %v375, %v377
      %v379 = vrot.slane %v371, %v378
      %v381 = vunpack.c.l.s4 1934713408
      %v382 = vunpack.c.0.s8 %v381
      %v383 = vlaneseq
      %v384 = vshrl.u32 %v383, 7
      %v385 = vsub.s32 %v382, %v384
      %v386 = vrot.slane %v372, %v385
      %v387 = vcombine.high %v379, 0
      %v388 = vcombine.high %v386, 0
      %389 = vxpose.xlu0.c.b16.start [1/8] %v257, 128
      %390 = vxpose.xlu0.c.b16.cont [2/8] 0, 128
      %391 = vxpose.xlu0.c.b16.cont [3/8] 0, 128
      %392 = vxpose.xlu0.c.b16.cont [4/8] 0, 128
      %393 = vxpose.xlu0.c.b16.cont [5/8] 0, 128
      %394 = vxpose.xlu0.c.b16.cont [6/8] 0, 128
      %395 = vxpose.xlu0.c.b16.cont [7/8] 0, 128
      %396 = vxpose.xlu0.c.b16.end [8/8] 0, 128
      %v397 = vpop.trf.xlu0
      %v398 = vpop.trf.xlu0
      %v399 = vpop.trf.xlu0
      %v400 = vpop.trf.xlu0
      %v401 = vpop.trf.xlu0
      %v402 = vpop.trf.xlu0
      %v403 = vpop.trf.xlu0
      %v404 = vpop.trf.xlu0
      %405 = vxpose.xlu0.c.b16.start [1/8] %v291, 128
      %406 = vxpose.xlu0.c.b16.cont [2/8] 0, 128
      %407 = vxpose.xlu0.c.b16.cont [3/8] 0, 128
      %408 = vxpose.xlu0.c.b16.cont [4/8] 0, 128
      %409 = vxpose.xlu0.c.b16.cont [5/8] 0, 128
      %410 = vxpose.xlu0.c.b16.cont [6/8] 0, 128
      %411 = vxpose.xlu0.c.b16.cont [7/8] 0, 128
      %412 = vxpose.xlu0.c.b16.end [8/8] 0, 128
      %v413 = vpop.trf.xlu0
      %v414 = vpop.trf.xlu0
      %v415 = vpop.trf.xlu0
      %v416 = vpop.trf.xlu0
      %v417 = vpop.trf.xlu0
      %v418 = vpop.trf.xlu0
      %v419 = vpop.trf.xlu0
      %v420 = vpop.trf.xlu0
      %421 = vxpose.xlu0.c.b16.start [1/8] %v265, 128
      %422 = vxpose.xlu0.c.b16.cont [2/8] 0, 128
      %423 = vxpose.xlu0.c.b16.cont [3/8] 0, 128
      %424 = vxpose.xlu0.c.b16.cont [4/8] 0, 128
      %425 = vxpose.xlu0.c.b16.cont [5/8] 0, 128
      %426 = vxpose.xlu0.c.b16.cont [6/8] 0, 128
      %427 = vxpose.xlu0.c.b16.cont [7/8] 0, 128
      %428 = vxpose.xlu0.c.b16.end [8/8] 0, 128
      %v429 = vpop.trf.xlu0
      %v430 = vpop.trf.xlu0
      %v431 = vpop.trf.xlu0
      %v432 = vpop.trf.xlu0
      %v433 = vpop.trf.xlu0
      %v434 = vpop.trf.xlu0
      %v435 = vpop.trf.xlu0
      %v436 = vpop.trf.xlu0
      %437 = vxpose.xlu0.c.b16.start [1/8] %v299, 128
      %438 = vxpose.xlu0.c.b16.cont [2/8] 0, 128
      %439 = vxpose.xlu0.c.b16.cont [3/8] 0, 128
      %440 = vxpose.xlu0.c.b16.cont [4/8] 0, 128
      %441 = vxpose.xlu0.c.b16.cont [5/8] 0, 128
      %442 = vxpose.xlu0.c.b16.cont [6/8] 0, 128
      %443 = vxpose.xlu0.c.b16.cont [7/8] 0, 128
      %444 = vxpose.xlu0.c.b16.end [8/8] 0, 128
      %v445 = vpop.trf.xlu0
      %v446 = vpop.trf.xlu0
      %v447 = vpop.trf.xlu0
      %v448 = vpop.trf.xlu0
      %v449 = vpop.trf.xlu0
      %v450 = vpop.trf.xlu0
      %v451 = vpop.trf.xlu0
      %v452 = vpop.trf.xlu0
      %453 = vxpose.xlu0.c.b16.start [1/8] %v264, 128
      %454 = vxpose.xlu0.c.b16.cont [2/8] 0, 128
      %455 = vxpose.xlu0.c.b16.cont [3/8] 0, 128
      %456 = vxpose.xlu0.c.b16.cont [4/8] 0, 128
      %457 = vxpose.xlu0.c.b16.cont [5/8] 0, 128
      %458 = vxpose.xlu0.c.b16.cont [6/8] 0, 128
      %459 = vxpose.xlu0.c.b16.cont [7/8] 0, 128
      %460 = vxpose.xlu0.c.b16.end [8/8] 0, 128
      %v461 = vpop.trf.xlu0
      %v462 = vpop.trf.xlu0
      %v463 = vpop.trf.xlu0
      %v464 = vpop.trf.xlu0
      %v465 = vpop.trf.xlu0
      %v466 = vpop.trf.xlu0
      %v467 = vpop.trf.xlu0
      %v468 = vpop.trf.xlu0
      %469 = vxpose.xlu0.c.b16.start [1/8] %v298, 128
      %470 = vxpose.xlu0.c.b16.cont [2/8] 0, 128
      %471 = vxpose.xlu0.c.b16.cont [3/8] 0, 128
      %472 = vxpose.xlu0.c.b16.cont [4/8] 0, 128
      %473 = vxpose.xlu0.c.b16.cont [5/8] 0, 128
      %474 = vxpose.xlu0.c.b16.cont [6/8] 0, 128
      %475 = vxpose.xlu0.c.b16.cont [7/8] 0, 128
      %476 = vxpose.xlu0.c.b16.end [8/8] 0, 128
      %v477 = vpop.trf.xlu0
      %v478 = vpop.trf.xlu0
      %v479 = vpop.trf.xlu0
      %v480 = vpop.trf.xlu0
      %v481 = vpop.trf.xlu0
      %v482 = vpop.trf.xlu0
      %v483 = vpop.trf.xlu0
      %v484 = vpop.trf.xlu0
      %485 = vxpose.xlu0.c.b16.start [1/8] %v266, 128
      %486 = vxpose.xlu0.c.b16.cont [2/8] 0, 128
      %487 = vxpose.xlu0.c.b16.cont [3/8] 0, 128
      %488 = vxpose.xlu0.c.b16.cont [4/8] 0, 128
      %489 = vxpose.xlu0.c.b16.cont [5/8] 0, 128
      %490 = vxpose.xlu0.c.b16.cont [6/8] 0, 128
      %491 = vxpose.xlu0.c.b16.cont [7/8] 0, 128
      %492 = vxpose.xlu0.c.b16.end [8/8] 0, 128
      %v493 = vpop.trf.xlu0
      %v494 = vpop.trf.xlu0
      %v495 = vpop.trf.xlu0
      %v496 = vpop.trf.xlu0
      %v497 = vpop.trf.xlu0
      %v498 = vpop.trf.xlu0
      %v499 = vpop.trf.xlu0
      %v500 = vpop.trf.xlu0
      %501 = vxpose.xlu0.c.b16.start [1/8] %v300, 128
      %502 = vxpose.xlu0.c.b16.cont [2/8] 0, 128
      %503 = vxpose.xlu0.c.b16.cont [3/8] 0, 128
      %504 = vxpose.xlu0.c.b16.cont [4/8] 0, 128
      %505 = vxpose.xlu0.c.b16.cont [5/8] 0, 128
      %506 = vxpose.xlu0.c.b16.cont [6/8] 0, 128
      %507 = vxpose.xlu0.c.b16.cont [7/8] 0, 128
      %508 = vxpose.xlu0.c.b16.end [8/8] 0, 128
      %v509 = vpop.trf.xlu0
      %v510 = vpop.trf.xlu0
      %v511 = vpop.trf.xlu0
      %v512 = vpop.trf.xlu0
      %v513 = vpop.trf.xlu0
      %v514 = vpop.trf.xlu0
      %v515 = vpop.trf.xlu0
      %v516 = vpop.trf.xlu0
      %v517 = vcombine.low %v397, %v461
      %v519 = vunpack.c.l.s4 1983009808
      %v520 = vunpack.c.0.s8 %v519
      %v521 = vlaneseq
      %v522 = vshrl.u32 %v521, 7
      %v523 = vsub.s32 %v520, %v522
      %v524 = vrot.slane %v517, %v523
      %v525 = vcombine.low %v429, %v493
      %v527 = vunpack.c.l.s4 1983009808
      %v528 = vunpack.c.0.s8 %v527
      %v529 = vlaneseq
      %v530 = vshrl.u32 %v529, 7
      %v531 = vsub.s32 %v528, %v530
      %v532 = vrot.slane %v525, %v531
      %v533 = vcombine.low %v524, %v532
      %v534 = vcombine.high %v524, %v532
      %v536 = vunpack.c.l.s4 1934713408
      %v537 = vunpack.c.0.s8 %v536
      %v538 = vlaneseq
      %v539 = vshrl.u32 %v538, 7
      %v540 = vsub.s32 %v537, %v539
      %v541 = vrot.slane %v533, %v540
      %v543 = vunpack.c.l.s4 1934713408
      %v544 = vunpack.c.0.s8 %v543
      %v545 = vlaneseq
      %v546 = vshrl.u32 %v545, 7
      %v547 = vsub.s32 %v544, %v546
      %v548 = vrot.slane %v534, %v547
      %v549 = vcombine.high %v541, 0
      %v550 = vcombine.high %v548, 0
      %v551 = vcombine.low %v413, %v477
      %v553 = vunpack.c.l.s4 1983009808
      %v554 = vunpack.c.0.s8 %v553
      %v555 = vlaneseq
      %v556 = vshrl.u32 %v555, 7
      %v557 = vsub.s32 %v554, %v556
      %v558 = vrot.slane %v551, %v557
      %v559 = vcombine.low %v445, %v509
      %v561 = vunpack.c.l.s4 1983009808
      %v562 = vunpack.c.0.s8 %v561
      %v563 = vlaneseq
      %v564 = vshrl.u32 %v563, 7
      %v565 = vsub.s32 %v562, %v564
      %v566 = vrot.slane %v559, %v565
      %v567 = vcombine.low %v558, %v566
      %v568 = vcombine.high %v558, %v566
      %v570 = vunpack.c.l.s4 1934713408
      %v571 = vunpack.c.0.s8 %v570
      %v572 = vlaneseq
      %v573 = vshrl.u32 %v572, 7
      %v574 = vsub.s32 %v571, %v573
      %v575 = vrot.slane %v567, %v574
      %v577 = vunpack.c.l.s4 1934713408
      %v578 = vunpack.c.0.s8 %v577
      %v579 = vlaneseq
      %v580 = vshrl.u32 %v579, 7
      %v581 = vsub.s32 %v578, %v580
      %v582 = vrot.slane %v568, %v581
      %v583 = vcombine.high %v575, 0
      %v584 = vcombine.high %v582, 0
      %v587 = vpack.i.b16 %v575, %v541
      %v589 = vshrl.u32 %v541, 16
      %v590 = vshrl.u32 %v575, 16
      %v591 = vpack.i.b16 %v590, %v589
      %v595 = vpack.i.b16 %v583, %v549
      %v597 = vshrl.u32 %v549, 16
      %v598 = vshrl.u32 %v583, 16
      %v599 = vpack.i.b16 %v598, %v597
      %v603 = vpack.i.b16 %v582, %v548
      %v605 = vshrl.u32 %v548, 16
      %v606 = vshrl.u32 %v582, 16
      %v607 = vpack.i.b16 %v606, %v605
      %v611 = vpack.i.b16 %v584, %v550
      %v613 = vshrl.u32 %v550, 16
      %v614 = vshrl.u32 %v584, 16
      %v615 = vpack.i.b16 %v614, %v613
      %617 = vxpose.xlu0.c.b16.start [1/8] %v587, 128
      %618 = vxpose.xlu0.c.b16.cont [2/8] 0, 128
      %619 = vxpose.xlu0.c.b16.cont [3/8] 0, 128
      %620 = vxpose.xlu0.c.b16.cont [4/8] 0, 128
      %621 = vxpose.xlu0.c.b16.cont [5/8] 0, 128
      %622 = vxpose.xlu0.c.b16.cont [6/8] 0, 128
      %623 = vxpose.xlu0.c.b16.cont [7/8] 0, 128
      %624 = vxpose.xlu0.c.b16.end [8/8] 0, 128
      %v625 = vpop.trf.xlu0
      %v626 = vpop.trf.xlu0
      %v627 = vpop.trf.xlu0
      %v628 = vpop.trf.xlu0
      %v629 = vpop.trf.xlu0
      %v630 = vpop.trf.xlu0
      %v631 = vpop.trf.xlu0
      %v632 = vpop.trf.xlu0
      %633 = vxpose.xlu0.c.b16.start [1/8] %v591, 128
      %634 = vxpose.xlu0.c.b16.cont [2/8] 0, 128
      %635 = vxpose.xlu0.c.b16.cont [3/8] 0, 128
      %636 = vxpose.xlu0.c.b16.cont [4/8] 0, 128
      %637 = vxpose.xlu0.c.b16.cont [5/8] 0, 128
      %638 = vxpose.xlu0.c.b16.cont [6/8] 0, 128
      %639 = vxpose.xlu0.c.b16.cont [7/8] 0, 128
      %640 = vxpose.xlu0.c.b16.end [8/8] 0, 128
      %v641 = vpop.trf.xlu0
      %v642 = vpop.trf.xlu0
      %v643 = vpop.trf.xlu0
      %v644 = vpop.trf.xlu0
      %v645 = vpop.trf.xlu0
      %v646 = vpop.trf.xlu0
      %v647 = vpop.trf.xlu0
      %v648 = vpop.trf.xlu0
      %649 = vxpose.xlu0.c.b16.start [1/8] %v595, 128
      %650 = vxpose.xlu0.c.b16.cont [2/8] 0, 128
      %651 = vxpose.xlu0.c.b16.cont [3/8] 0, 128
      %652 = vxpose.xlu0.c.b16.cont [4/8] 0, 128
      %653 = vxpose.xlu0.c.b16.cont [5/8] 0, 128
      %654 = vxpose.xlu0.c.b16.cont [6/8] 0, 128
      %655 = vxpose.xlu0.c.b16.cont [7/8] 0, 128
      %656 = vxpose.xlu0.c.b16.end [8/8] 0, 128
      %v657 = vpop.trf.xlu0
      %v658 = vpop.trf.xlu0
      %v659 = vpop.trf.xlu0
      %v660 = vpop.trf.xlu0
      %v661 = vpop.trf.xlu0
      %v662 = vpop.trf.xlu0
      %v663 = vpop.trf.xlu0
      %v664 = vpop.trf.xlu0
      %665 = vxpose.xlu0.c.b16.start [1/8] %v599, 128
      %666 = vxpose.xlu0.c.b16.cont [2/8] 0, 128
      %667 = vxpose.xlu0.c.b16.cont [3/8] 0, 128
      %668 = vxpose.xlu0.c.b16.cont [4/8] 0, 128
      %669 = vxpose.xlu0.c.b16.cont [5/8] 0, 128
      %670 = vxpose.xlu0.c.b16.cont [6/8] 0, 128
      %671 = vxpose.xlu0.c.b16.cont [7/8] 0, 128
      %672 = vxpose.xlu0.c.b16.end [8/8] 0, 128
      %v673 = vpop.trf.xlu0
      %v674 = vpop.trf.xlu0
      %v675 = vpop.trf.xlu0
      %v676 = vpop.trf.xlu0
      %v677 = vpop.trf.xlu0
      %v678 = vpop.trf.xlu0
      %v679 = vpop.trf.xlu0
      %v680 = vpop.trf.xlu0
      %681 = vxpose.xlu0.c.b16.start [1/8] %v603, 128
      %682 = vxpose.xlu0.c.b16.cont [2/8] 0, 128
      %683 = vxpose.xlu0.c.b16.cont [3/8] 0, 128
      %684 = vxpose.xlu0.c.b16.cont [4/8] 0, 128
      %685 = vxpose.xlu0.c.b16.cont [5/8] 0, 128
      %686 = vxpose.xlu0.c.b16.cont [6/8] 0, 128
      %687 = vxpose.xlu0.c.b16.cont [7/8] 0, 128
      %688 = vxpose.xlu0.c.b16.end [8/8] 0, 128
      %v689 = vpop.trf.xlu0
      %v690 = vpop.trf.xlu0
      %v691 = vpop.trf.xlu0
      %v692 = vpop.trf.xlu0
      %v693 = vpop.trf.xlu0
      %v694 = vpop.trf.xlu0
      %v695 = vpop.trf.xlu0
      %v696 = vpop.trf.xlu0
      %697 = vxpose.xlu0.c.b16.start [1/8] %v607, 128
      %698 = vxpose.xlu0.c.b16.cont [2/8] 0, 128
      %699 = vxpose.xlu0.c.b16.cont [3/8] 0, 128
      %700 = vxpose.xlu0.c.b16.cont [4/8] 0, 128
      %701 = vxpose.xlu0.c.b16.cont [5/8] 0, 128
      %702 = vxpose.xlu0.c.b16.cont [6/8] 0, 128
      %703 = vxpose.xlu0.c.b16.cont [7/8] 0, 128
      %704 = vxpose.xlu0.c.b16.end [8/8] 0, 128
      %v705 = vpop.trf.xlu0
      %v706 = vpop.trf.xlu0
      %v707 = vpop.trf.xlu0
      %v708 = vpop.trf.xlu0
      %v709 = vpop.trf.xlu0
      %v710 = vpop.trf.xlu0
      %v711 = vpop.trf.xlu0
      %v712 = vpop.trf.xlu0
      %713 = vxpose.xlu0.c.b16.start [1/8] %v611, 128
      %714 = vxpose.xlu0.c.b16.cont [2/8] 0, 128
      %715 = vxpose.xlu0.c.b16.cont [3/8] 0, 128
      %716 = vxpose.xlu0.c.b16.cont [4/8] 0, 128
      %717 = vxpose.xlu0.c.b16.cont [5/8] 0, 128
      %718 = vxpose.xlu0.c.b16.cont [6/8] 0, 128
      %719 = vxpose.xlu0.c.b16.cont [7/8] 0, 128
      %720 = vxpose.xlu0.c.b16.end [8/8] 0, 128
      %v721 = vpop.trf.xlu0
      %v722 = vpop.trf.xlu0
      %v723 = vpop.trf.xlu0
      %v724 = vpop.trf.xlu0
      %v725 = vpop.trf.xlu0
      %v726 = vpop.trf.xlu0
      %v727 = vpop.trf.xlu0
      %v728 = vpop.trf.xlu0
      %729 = vxpose.xlu0.c.b16.start [1/8] %v615, 128
      %730 = vxpose.xlu0.c.b16.cont [2/8] 0, 128
      %731 = vxpose.xlu0.c.b16.cont [3/8] 0, 128
      %732 = vxpose.xlu0.c.b16.cont [4/8] 0, 128
      %733 = vxpose.xlu0.c.b16.cont [5/8] 0, 128
      %734 = vxpose.xlu0.c.b16.cont [6/8] 0, 128
      %735 = vxpose.xlu0.c.b16.cont [7/8] 0, 128
      %736 = vxpose.xlu0.c.b16.end [8/8] 0, 128
      %v737 = vpop.trf.xlu0
      %v738 = vpop.trf.xlu0
      %v739 = vpop.trf.xlu0
      %v740 = vpop.trf.xlu0
      %v741 = vpop.trf.xlu0
      %v742 = vpop.trf.xlu0
      %v743 = vpop.trf.xlu0
      %v744 = vpop.trf.xlu0
      %v745 = vcombine.low %v625, %v689
      %v747 = vunpack.c.l.s4 1983009808
      %v748 = vunpack.c.0.s8 %v747
      %v749 = vlaneseq
      %v750 = vshrl.u32 %v749, 7
      %v751 = vsub.s32 %v748, %v750
      %v752 = vrot.slane %v745, %v751
      %v753 = vcombine.low %v657, %v721
      %v755 = vunpack.c.l.s4 1983009808
      %v756 = vunpack.c.0.s8 %v755
      %v757 = vlaneseq
      %v758 = vshrl.u32 %v757, 7
      %v759 = vsub.s32 %v756, %v758
      %v760 = vrot.slane %v753, %v759
      %v761 = vcombine.low %v752, %v760
      %v763 = vunpack.c.l.s4 1934713408
      %v764 = vunpack.c.0.s8 %v763
      %v765 = vlaneseq
      %v766 = vshrl.u32 %v765, 7
      %v767 = vsub.s32 %v764, %v766
      %v768 = vrot.slane %v761, %v767
      %v769 = vcombine.high %v768, 0
      %v770 = vcombine.low %v641, %v705
      %v772 = vunpack.c.l.s4 1983009808
      %v773 = vunpack.c.0.s8 %v772
      %v774 = vlaneseq
      %v775 = vshrl.u32 %v774, 7
      %v776 = vsub.s32 %v773, %v775
      %v777 = vrot.slane %v770, %v776
      %v778 = vcombine.low %v673, %v737
      %v780 = vunpack.c.l.s4 1983009808
      %v781 = vunpack.c.0.s8 %v780
      %v782 = vlaneseq
      %v783 = vshrl.u32 %v782, 7
      %v784 = vsub.s32 %v781, %v783
      %v785 = vrot.slane %v778, %v784
      %v786 = vcombine.low %v777, %v785
      %v788 = vunpack.c.l.s4 1934713408
      %v789 = vunpack.c.0.s8 %v788
      %v790 = vlaneseq
      %v791 = vshrl.u32 %v790, 7
      %v792 = vsub.s32 %v789, %v791
      %v793 = vrot.slane %v786, %v792
      %v794 = vcombine.high %v793, 0
      %v797 = vpack.i.b16 %v793, %v768
      %v798 = vshrl.u32 %v768, 16
      %v799 = vshrl.u32 %v793, 16
      %v800 = vpack.i.b16 %v799, %v798
      %v803 = vpack.i.b16 %v794, %v769
      %v804 = vshrl.u32 %v769, 16
      %v805 = vshrl.u32 %v794, 16
      %v806 = vpack.i.b16 %v805, %v804
      %vm807 = vcmask 64512
      %v809 = vsel %vm807, %v209, 0
      %vm811 = vcmask 1043456
      %v813 = vsel %vm811, %v797, 0
      %815 = vmatprep.subr.bf16.mxu0 0
      %816 = vmatpush1.bf16.msra.mxu0 %v813
      %817 = vmatprep.subr.bf16.mxu0 0
      %818 = vmatpush1.bf16.msra.mxu0 0
      %819 = vmatprep.subr.bf16.mxu0 0
      %820 = vmatpush1.bf16.msra.mxu0 0
      %821 = vmatprep.subr.bf16.mxu0 0
      %822 = vmatpush1.bf16.msra.mxu0 0
      %823 = vmatprep.subr.bf16.mxu0 0
      %824 = vmatpush1.bf16.msra.mxu0 0
      %825 = vmatprep.subr.bf16.mxu0 0
      %826 = vmatpush1.bf16.msra.mxu0 0
      %827 = vmatprep.subr.bf16.mxu0 0
      %828 = vmatpush1.bf16.msra.mxu0 0
      %829 = vmatprep.subr.bf16.mxu0 0
      %830 = vmatpush1.bf16.msra.mxu0 0
      %831 = vmatprep.subr.bf16.mxu0 0
      %832 = vmatpush1.bf16.msra.mxu0 0
      %833 = vmatprep.subr.bf16.mxu0 0
      %834 = vmatpush1.bf16.msra.mxu0 0
      %835 = vmatprep.subr.bf16.mxu0 0
      %836 = vmatpush1.bf16.msra.mxu0 0
      %837 = vmatprep.subr.bf16.mxu0 0
      %838 = vmatpush1.bf16.msra.mxu0 0
      %839 = vmatprep.subr.bf16.mxu0 0
      %840 = vmatpush1.bf16.msra.mxu0 0
      %841 = vmatprep.subr.bf16.mxu0 0
      %842 = vmatpush1.bf16.msra.mxu0 0
      %843 = vmatprep.subr.bf16.mxu0 0
      %844 = vmatpush1.bf16.msra.mxu0 0
      %845 = vmatprep.subr.bf16.mxu0 0
      %846 = vmatpush1.bf16.msra.mxu0 0
      %847 = vmatprep.mubr.bf16.mxu0 0
      %848 = vmatmul.mubr.bf16.gmra.mrb[0].mxu0 %v809
      %v849 = vpop.f32.mrb[0].mxu0
      %v850 = vadd.f32 0.0, %v849
      %v851 = vpop.f32.mrb[0].mxu0
      %v852 = vpop.f32.mrb[0].mxu0
      %v853 = vpop.f32.mrb[0].mxu0
      %854 = vdwg.mxu0
      %v856 = vsel %vm807, %v210, 0
      %v859 = vsel %vm811, %v800, 0
      %861 = vmatprep.subr.bf16.mxu0 0
      %862 = vmatpush1.bf16.msra.mxu0 %v859
      %863 = vmatprep.subr.bf16.mxu0 0
      %864 = vmatpush1.bf16.msra.mxu0 0
      %865 = vmatprep.subr.bf16.mxu0 0
      %866 = vmatpush1.bf16.msra.mxu0 0
      %867 = vmatprep.subr.bf16.mxu0 0
      %868 = vmatpush1.bf16.msra.mxu0 0
      %869 = vmatprep.subr.bf16.mxu0 0
      %870 = vmatpush1.bf16.msra.mxu0 0
      %871 = vmatprep.subr.bf16.mxu0 0
      %872 = vmatpush1.bf16.msra.mxu0 0
      %873 = vmatprep.subr.bf16.mxu0 0
      %874 = vmatpush1.bf16.msra.mxu0 0
      %875 = vmatprep.subr.bf16.mxu0 0
      %876 = vmatpush1.bf16.msra.mxu0 0
      %877 = vmatprep.subr.bf16.mxu0 0
      %878 = vmatpush1.bf16.msra.mxu0 0
      %879 = vmatprep.subr.bf16.mxu0 0
      %880 = vmatpush1.bf16.msra.mxu0 0
      %881 = vmatprep.subr.bf16.mxu0 0
      %882 = vmatpush1.bf16.msra.mxu0 0
      %883 = vmatprep.subr.bf16.mxu0 0
      %884 = vmatpush1.bf16.msra.mxu0 0
      %885 = vmatprep.subr.bf16.mxu0 0
      %886 = vmatpush1.bf16.msra.mxu0 0
      %887 = vmatprep.subr.bf16.mxu0 0
      %888 = vmatpush1.bf16.msra.mxu0 0
      %889 = vmatprep.subr.bf16.mxu0 0
      %890 = vmatpush1.bf16.msra.mxu0 0
      %891 = vmatprep.subr.bf16.mxu0 0
      %892 = vmatpush1.bf16.msra.mxu0 0
      %893 = vmatprep.mubr.bf16.mxu0 0
      %894 = vmatmul.mubr.bf16.gmra.mrb[0].mxu0 %v856
      %v895 = vpop.f32.mrb[0].mxu0
      %v896 = vadd.f32 0.0, %v895
      %v897 = vpop.f32.mrb[0].mxu0
      %v898 = vpop.f32.mrb[0].mxu0
      %v899 = vpop.f32.mrb[0].mxu0
      %900 = vdwg.mxu0
      %v902 = vsel %vm807, %v211, 0
      %v905 = vsel %vm811, %v803, 0
      %907 = vmatprep.subr.bf16.mxu0 0
      %908 = vmatpush1.bf16.msra.mxu0 %v905
      %909 = vmatprep.subr.bf16.mxu0 0
      %910 = vmatpush1.bf16.msra.mxu0 0
      %911 = vmatprep.subr.bf16.mxu0 0
      %912 = vmatpush1.bf16.msra.mxu0 0
      %913 = vmatprep.subr.bf16.mxu0 0
      %914 = vmatpush1.bf16.msra.mxu0 0
      %915 = vmatprep.subr.bf16.mxu0 0
      %916 = vmatpush1.bf16.msra.mxu0 0
      %917 = vmatprep.subr.bf16.mxu0 0
      %918 = vmatpush1.bf16.msra.mxu0 0
      %919 = vmatprep.subr.bf16.mxu0 0
      %920 = vmatpush1.bf16.msra.mxu0 0
      %921 = vmatprep.subr.bf16.mxu0 0
      %922 = vmatpush1.bf16.msra.mxu0 0
      %923 = vmatprep.subr.bf16.mxu0 0
      %924 = vmatpush1.bf16.msra.mxu0 0
      %925 = vmatprep.subr.bf16.mxu0 0
      %926 = vmatpush1.bf16.msra.mxu0 0
      %927 = vmatprep.subr.bf16.mxu0 0
      %928 = vmatpush1.bf16.msra.mxu0 0
      %929 = vmatprep.subr.bf16.mxu0 0
      %930 = vmatpush1.bf16.msra.mxu0 0
      %931 = vmatprep.subr.bf16.mxu0 0
      %932 = vmatpush1.bf16.msra.mxu0 0
      %933 = vmatprep.subr.bf16.mxu0 0
      %934 = vmatpush1.bf16.msra.mxu0 0
      %935 = vmatprep.subr.bf16.mxu0 0
      %936 = vmatpush1.bf16.msra.mxu0 0
      %937 = vmatprep.subr.bf16.mxu0 0
      %938 = vmatpush1.bf16.msra.mxu0 0
      %939 = vmatprep.mubr.bf16.mxu0 0
      %940 = vmatmul.mubr.bf16.gmra.mrb[0].mxu0 %v902
      %v941 = vpop.f32.mrb[0].mxu0
      %v942 = vadd.f32 0.0, %v941
      %v943 = vpop.f32.mrb[0].mxu0
      %v944 = vpop.f32.mrb[0].mxu0
      %v945 = vpop.f32.mrb[0].mxu0
      %946 = vdwg.mxu0
      %v948 = vsel %vm807, %v212, 0
      %v951 = vsel %vm811, %v806, 0
      %953 = vmatprep.subr.bf16.mxu0 0
      %954 = vmatpush1.bf16.msra.mxu0 %v951
      %955 = vmatprep.subr.bf16.mxu0 0
      %956 = vmatpush1.bf16.msra.mxu0 0
      %957 = vmatprep.subr.bf16.mxu0 0
      %958 = vmatpush1.bf16.msra.mxu0 0
      %959 = vmatprep.subr.bf16.mxu0 0
      %960 = vmatpush1.bf16.msra.mxu0 0
      %961 = vmatprep.subr.bf16.mxu0 0
      %962 = vmatpush1.bf16.msra.mxu0 0
      %963 = vmatprep.subr.bf16.mxu0 0
      %964 = vmatpush1.bf16.msra.mxu0 0
      %965 = vmatprep.subr.bf16.mxu0 0
      %966 = vmatpush1.bf16.msra.mxu0 0
      %967 = vmatprep.subr.bf16.mxu0 0
      %968 = vmatpush1.bf16.msra.mxu0 0
      %969 = vmatprep.subr.bf16.mxu0 0
      %970 = vmatpush1.bf16.msra.mxu0 0
      %971 = vmatprep.subr.bf16.mxu0 0
      %972 = vmatpush1.bf16.msra.mxu0 0
      %973 = vmatprep.subr.bf16.mxu0 0
      %974 = vmatpush1.bf16.msra.mxu0 0
      %975 = vmatprep.subr.bf16.mxu0 0
      %976 = vmatpush1.bf16.msra.mxu0 0
      %977 = vmatprep.subr.bf16.mxu0 0
      %978 = vmatpush1.bf16.msra.mxu0 0
      %979 = vmatprep.subr.bf16.mxu0 0
      %980 = vmatpush1.bf16.msra.mxu0 0
      %981 = vmatprep.subr.bf16.mxu0 0
      %982 = vmatpush1.bf16.msra.mxu0 0
      %983 = vmatprep.subr.bf16.mxu0 0
      %984 = vmatpush1.bf16.msra.mxu0 0
      %985 = vmatprep.mubr.bf16.mxu0 0
      %986 = vmatmul.mubr.bf16.gmra.mrb[0].mxu0 %v948
      %v987 = vpop.f32.mrb[0].mxu0
      %v988 = vadd.f32 0.0, %v987
      %v989 = vpop.f32.mrb[0].mxu0
      %v990 = vpop.f32.mrb[0].mxu0
      %v991 = vpop.f32.mrb[0].mxu0
      %992 = vdwg.mxu0
      %v993 = vld [vmem:[#allocation3] sm:$0xff]
      %v994 = vld [vmem:[#allocation3 + $0x8] sm:$0xff]
      %v995 = vld [vmem:[#allocation3 + $0x10] sm:$0xff]
      %v996 = vld [vmem:[#allocation3 + $0x18] sm:$0xff]
      %v997 = vsel %vm807, %v850, -inf
      %998 = vmax.xlane.f32.xlu0 %v997
      %v999 = vpop.xlane.xlu0 %998
      %v1000 = vsel %vm807, %v896, -inf
      %1001 = vmax.xlane.f32.xlu0 %v1000
      %v1002 = vpop.xlane.xlu0 %1001
      %v1003 = vsel %vm807, %v942, -inf
      %1004 = vmax.xlane.f32.xlu0 %v1003
      %v1005 = vpop.xlane.xlu0 %1004
      %v1006 = vsel %vm807, %v988, -inf
      %1007 = vmax.xlane.f32.xlu0 %v1006
      %v1008 = vpop.xlane.xlu0 %1007
      %v1009 = vmax.f32 %v993, %v999
      %v1010 = vmax.f32 %v994, %v1002
      %v1011 = vmax.f32 %v995, %v1005
      %v1012 = vmax.f32 %v996, %v1008
      %v1013 = vsub.f32 %v993, %v1009
      %v1014 = vsub.f32 %v994, %v1010
      %v1015 = vsub.f32 %v995, %v1011
      %v1016 = vsub.f32 %v996, %v1012
      %v1017 = vmul.f32 %v1013, 1.442695
      %v1018 = vpow.pop %v1017
      %v1019 = vmul.f32 %v1014, 1.442695
      %v1020 = vpow.pop %v1019
      %v1021 = vmul.f32 %v1015, 1.442695
      %v1022 = vpow.pop %v1021
      %v1023 = vmul.f32 %v1016, 1.442695
      %v1024 = vpow.pop %v1023
      %1026 = vset.pattern.permute.xlu0 0
      %1027 = vperm.xlu0 %1026, %v1009
      %v1028 = vpop.permute.xlu0 %1027
      %1031 = vset.pattern.permute.xlu0 0
      %1032 = vperm.xlu0 %1031, %v1010
      %v1033 = vpop.permute.xlu0 %1032
      %1036 = vset.pattern.permute.xlu0 0
      %1037 = vperm.xlu0 %1036, %v1011
      %v1038 = vpop.permute.xlu0 %1037
      %1041 = vset.pattern.permute.xlu0 0
      %1042 = vperm.xlu0 %1041, %v1012
      %v1043 = vpop.permute.xlu0 %1042
      %v1045 = vsub.f32 %v850, %v1028
      %v1046 = vsub.f32 %v896, %v1033
      %v1047 = vsub.f32 %v942, %v1038
      %v1048 = vsub.f32 %v988, %v1043
      %v1049 = vmul.f32 %v1045, 1.442695
      %v1050 = vpow.pop %v1049
      %v1051 = vmul.f32 %v1046, 1.442695
      %v1052 = vpow.pop %v1051
      %v1053 = vmul.f32 %v1047, 1.442695
      %v1054 = vpow.pop %v1053
      %v1055 = vmul.f32 %v1048, 1.442695
      %v1056 = vpow.pop %v1055
      %v1057 = vld [vmem:[#allocation4] sm:$0xff]
      %v1058 = vld [vmem:[#allocation4 + $0x8] sm:$0xff]
      %v1059 = vld [vmem:[#allocation4 + $0x10] sm:$0xff]
      %v1060 = vld [vmem:[#allocation4 + $0x18] sm:$0xff]
      %v1061 = vmul.f32 %v1018, %v1057
      %v1062 = vmul.f32 %v1020, %v1058
      %v1063 = vmul.f32 %v1022, %v1059
      %v1064 = vmul.f32 %v1024, %v1060
      %v1065 = vsel %vm807, %v1050, 0.0
      %1066 = vadd.xlane.f32.xlu0 %v1065
      %v1067 = vpop.xlane.xlu0 %1066
      %v1068 = vsel %vm807, %v1052, 0.0
      %1069 = vadd.xlane.f32.xlu0 %v1068
      %v1070 = vpop.xlane.xlu0 %1069
      %v1071 = vsel %vm807, %v1054, 0.0
      %1072 = vadd.xlane.f32.xlu0 %v1071
      %v1073 = vpop.xlane.xlu0 %1072
      %v1074 = vsel %vm807, %v1056, 0.0
      %1075 = vadd.xlane.f32.xlu0 %v1074
      %v1076 = vpop.xlane.xlu0 %1075
      %v1077 = vadd.f32 %v1061, %v1067
      %v1078 = vadd.f32 %v1062, %v1070
      %v1079 = vadd.f32 %v1063, %v1073
      %v1080 = vadd.f32 %v1064, %v1076
      %vm1081 = vcmask 7168
      %1082 = vst.msk [vmem:[#allocation4] sm:$0xff] %vm1081, %v1077
      %1083 = vst.msk [vmem:[#allocation4 + $0x8] sm:$0xff] %vm1081, %v1078
      %1084 = vst.msk [vmem:[#allocation4 + $0x10] sm:$0xff] %vm1081, %v1079
      %1085 = vst.msk [vmem:[#allocation4 + $0x18] sm:$0xff] %vm1081, %v1080
      %v1086 = vld [vmem:[#allocation5] sm:$0xff]
      %v1087 = vld [vmem:[#allocation5 + $0x8] sm:$0xff]
      %v1088 = vld [vmem:[#allocation5 + $0x10] sm:$0xff]
      %v1089 = vld [vmem:[#allocation5 + $0x18] sm:$0xff]
      %1091 = vset.pattern.permute.xlu0 0
      %1092 = vperm.xlu0 %1091, %v1018
      %v1093 = vpop.permute.xlu0 %1092
      %1096 = vset.pattern.permute.xlu0 0
      %1097 = vperm.xlu0 %1096, %v1020
      %v1098 = vpop.permute.xlu0 %1097
      %1101 = vset.pattern.permute.xlu0 0
      %1102 = vperm.xlu0 %1101, %v1022
      %v1103 = vpop.permute.xlu0 %1102
      %1106 = vset.pattern.permute.xlu0 0
      %1107 = vperm.xlu0 %1106, %v1024
      %v1108 = vpop.permute.xlu0 %1107
      %v1110 = vmul.f32 %v1093, %v1086
      %v1111 = vmul.f32 %v1098, %v1087
      %v1112 = vmul.f32 %v1103, %v1088
      %v1113 = vmul.f32 %v1108, %v1089
      %v1114 = vpack.c.bf16 %v1050, %v1050
      %v1115 = vpack.c.bf16 %v1052, %v1052
      %v1116 = vpack.c.bf16 %v1054, %v1054
      %v1117 = vpack.c.bf16 %v1056, %v1056
      %v1118 = vcombine.low %v345, %v352
      %v1120 = vunpack.c.l.s4 1983009808
      %v1121 = vunpack.c.0.s8 %v1120
      %v1122 = vlaneseq
      %v1123 = vshrl.u32 %v1122, 7
      %v1124 = vsub.s32 %v1121, %v1123
      %v1125 = vrot.slane %v1118, %v1124
      %v1126 = vcombine.low %v353, %v354
      %v1128 = vunpack.c.l.s4 1983009808
      %v1129 = vunpack.c.0.s8 %v1128
      %v1130 = vlaneseq
      %v1131 = vshrl.u32 %v1130, 7
      %v1132 = vsub.s32 %v1129, %v1131
      %v1133 = vrot.slane %v1126, %v1132
      %v1134 = vcombine.low %v1125, %v1133
      %v1136 = vunpack.c.l.s4 1934713408
      %v1137 = vunpack.c.0.s8 %v1136
      %v1138 = vlaneseq
      %v1139 = vshrl.u32 %v1138, 7
      %v1140 = vsub.s32 %v1137, %v1139
      %v1141 = vrot.slane %v1134, %v1140
      %v1142 = vcombine.high %v1141, 0
      %v1143 = vcombine.low %v379, %v386
      %v1145 = vunpack.c.l.s4 1983009808
      %v1146 = vunpack.c.0.s8 %v1145
      %v1147 = vlaneseq
      %v1148 = vshrl.u32 %v1147, 7
      %v1149 = vsub.s32 %v1146, %v1148
      %v1150 = vrot.slane %v1143, %v1149
      %v1151 = vcombine.low %v387, %v388
      %v1153 = vunpack.c.l.s4 1983009808
      %v1154 = vunpack.c.0.s8 %v1153
      %v1155 = vlaneseq
      %v1156 = vshrl.u32 %v1155, 7
      %v1157 = vsub.s32 %v1154, %v1156
      %v1158 = vrot.slane %v1151, %v1157
      %v1159 = vcombine.low %v1150, %v1158
      %v1161 = vunpack.c.l.s4 1934713408
      %v1162 = vunpack.c.0.s8 %v1161
      %v1163 = vlaneseq
      %v1164 = vshrl.u32 %v1163, 7
      %v1165 = vsub.s32 %v1162, %v1164
      %v1166 = vrot.slane %v1159, %v1165
      %v1167 = vcombine.high %v1166, 0
      %v1170 = vpack.i.b16 %v1166, %v1141
      %v1171 = vshrl.u32 %v1141, 16
      %v1172 = vshrl.u32 %v1166, 16
      %v1173 = vpack.i.b16 %v1172, %v1171
      %v1176 = vpack.i.b16 %v1167, %v1142
      %v1177 = vshrl.u32 %v1142, 16
      %v1178 = vshrl.u32 %v1167, 16
      %v1179 = vpack.i.b16 %v1178, %v1177
      %v1181 = vsel %vm807, %v1114, 0
      %v1184 = vsel %vm811, %v1170, 0
      %1186 = vmatprep.subr.bf16.mxu0 0
      %1187 = vmatpush1.bf16.msra.mxu0 %v1184
      %1188 = vmatprep.subr.bf16.mxu0 0
      %1189 = vmatpush1.bf16.msra.mxu0 0
      %1190 = vmatprep.subr.bf16.mxu0 0
      %1191 = vmatpush1.bf16.msra.mxu0 0
      %1192 = vmatprep.subr.bf16.mxu0 0
      %1193 = vmatpush1.bf16.msra.mxu0 0
      %1194 = vmatprep.subr.bf16.mxu0 0
      %1195 = vmatpush1.bf16.msra.mxu0 0
      %1196 = vmatprep.subr.bf16.mxu0 0
      %1197 = vmatpush1.bf16.msra.mxu0 0
      %1198 = vmatprep.subr.bf16.mxu0 0
      %1199 = vmatpush1.bf16.msra.mxu0 0
      %1200 = vmatprep.subr.bf16.mxu0 0
      %1201 = vmatpush1.bf16.msra.mxu0 0
      %1202 = vmatprep.subr.bf16.mxu0 0
      %1203 = vmatpush1.bf16.msra.mxu0 0
      %1204 = vmatprep.subr.bf16.mxu0 0
      %1205 = vmatpush1.bf16.msra.mxu0 0
      %1206 = vmatprep.subr.bf16.mxu0 0
      %1207 = vmatpush1.bf16.msra.mxu0 0
      %1208 = vmatprep.subr.bf16.mxu0 0
      %1209 = vmatpush1.bf16.msra.mxu0 0
      %1210 = vmatprep.subr.bf16.mxu0 0
      %1211 = vmatpush1.bf16.msra.mxu0 0
      %1212 = vmatprep.subr.bf16.mxu0 0
      %1213 = vmatpush1.bf16.msra.mxu0 0
      %1214 = vmatprep.subr.bf16.mxu0 0
      %1215 = vmatpush1.bf16.msra.mxu0 0
      %1216 = vmatprep.subr.bf16.mxu0 0
      %1217 = vmatpush1.bf16.msra.mxu0 0
      %1218 = vmatprep.mubr.bf16.mxu0 0
      %1219 = vmatmul.mubr.bf16.gmra.mrb[0].mxu0 %v1181
      %v1220 = vpop.f32.mrb[0].mxu0
      %v1221 = vadd.f32 0.0, %v1220
      %v1222 = vpop.f32.mrb[0].mxu0
      %v1223 = vpop.f32.mrb[0].mxu0
      %v1224 = vpop.f32.mrb[0].mxu0
      %1225 = vdwg.mxu0
      %v1227 = vsel %vm807, %v1115, 0
      %v1230 = vsel %vm811, %v1173, 0
      %1232 = vmatprep.subr.bf16.mxu0 0
      %1233 = vmatpush1.bf16.msra.mxu0 %v1230
      %1234 = vmatprep.subr.bf16.mxu0 0
      %1235 = vmatpush1.bf16.msra.mxu0 0
      %1236 = vmatprep.subr.bf16.mxu0 0
      %1237 = vmatpush1.bf16.msra.mxu0 0
      %1238 = vmatprep.subr.bf16.mxu0 0
      %1239 = vmatpush1.bf16.msra.mxu0 0
      %1240 = vmatprep.subr.bf16.mxu0 0
      %1241 = vmatpush1.bf16.msra.mxu0 0
      %1242 = vmatprep.subr.bf16.mxu0 0
      %1243 = vmatpush1.bf16.msra.mxu0 0
      %1244 = vmatprep.subr.bf16.mxu0 0
      %1245 = vmatpush1.bf16.msra.mxu0 0
      %1246 = vmatprep.subr.bf16.mxu0 0
      %1247 = vmatpush1.bf16.msra.mxu0 0
      %1248 = vmatprep.subr.bf16.mxu0 0
      %1249 = vmatpush1.bf16.msra.mxu0 0
      %1250 = vmatprep.subr.bf16.mxu0 0
      %1251 = vmatpush1.bf16.msra.mxu0 0
      %1252 = vmatprep.subr.bf16.mxu0 0
      %1253 = vmatpush1.bf16.msra.mxu0 0
      %1254 = vmatprep.subr.bf16.mxu0 0
      %1255 = vmatpush1.bf16.msra.mxu0 0
      %1256 = vmatprep.subr.bf16.mxu0 0
      %1257 = vmatpush1.bf16.msra.mxu0 0
      %1258 = vmatprep.subr.bf16.mxu0 0
      %1259 = vmatpush1.bf16.msra.mxu0 0
      %1260 = vmatprep.subr.bf16.mxu0 0
      %1261 = vmatpush1.bf16.msra.mxu0 0
      %1262 = vmatprep.subr.bf16.mxu0 0
      %1263 = vmatpush1.bf16.msra.mxu0 0
      %1264 = vmatprep.mubr.bf16.mxu0 0
      %1265 = vmatmul.mubr.bf16.gmra.mrb[0].mxu0 %v1227
      %v1266 = vpop.f32.mrb[0].mxu0
      %v1267 = vadd.f32 0.0, %v1266
      %v1268 = vpop.f32.mrb[0].mxu0
      %v1269 = vpop.f32.mrb[0].mxu0
      %v1270 = vpop.f32.mrb[0].mxu0
      %1271 = vdwg.mxu0
      %v1273 = vsel %vm807, %v1116, 0
      %v1276 = vsel %vm811, %v1176, 0
      %1278 = vmatprep.subr.bf16.mxu0 0
      %1279 = vmatpush1.bf16.msra.mxu0 %v1276
      %1280 = vmatprep.subr.bf16.mxu0 0
      %1281 = vmatpush1.bf16.msra.mxu0 0
      %1282 = vmatprep.subr.bf16.mxu0 0
      %1283 = vmatpush1.bf16.msra.mxu0 0
      %1284 = vmatprep.subr.bf16.mxu0 0
      %1285 = vmatpush1.bf16.msra.mxu0 0
      %1286 = vmatprep.subr.bf16.mxu0 0
      %1287 = vmatpush1.bf16.msra.mxu0 0
      %1288 = vmatprep.subr.bf16.mxu0 0
      %1289 = vmatpush1.bf16.msra.mxu0 0
      %1290 = vmatprep.subr.bf16.mxu0 0
      %1291 = vmatpush1.bf16.msra.mxu0 0
      %1292 = vmatprep.subr.bf16.mxu0 0
      %1293 = vmatpush1.bf16.msra.mxu0 0
      %1294 = vmatprep.subr.bf16.mxu0 0
      %1295 = vmatpush1.bf16.msra.mxu0 0
      %1296 = vmatprep.subr.bf16.mxu0 0
      %1297 = vmatpush1.bf16.msra.mxu0 0
      %1298 = vmatprep.subr.bf16.mxu0 0
      %1299 = vmatpush1.bf16.msra.mxu0 0
      %1300 = vmatprep.subr.bf16.mxu0 0
      %1301 = vmatpush1.bf16.msra.mxu0 0
      %1302 = vmatprep.subr.bf16.mxu0 0
      %1303 = vmatpush1.bf16.msra.mxu0 0
      %1304 = vmatprep.subr.bf16.mxu0 0
      %1305 = vmatpush1.bf16.msra.mxu0 0
      %1306 = vmatprep.subr.bf16.mxu0 0
      %1307 = vmatpush1.bf16.msra.mxu0 0
      %1308 = vmatprep.subr.bf16.mxu0 0
      %1309 = vmatpush1.bf16.msra.mxu0 0
      %1310 = vmatprep.mubr.bf16.mxu0 0
      %1311 = vmatmul.mubr.bf16.gmra.mrb[0].mxu0 %v1273
      %v1312 = vpop.f32.mrb[0].mxu0
      %v1313 = vadd.f32 0.0, %v1312
      %v1314 = vpop.f32.mrb[0].mxu0
      %v1315 = vpop.f32.mrb[0].mxu0
      %v1316 = vpop.f32.mrb[0].mxu0
      %1317 = vdwg.mxu0
      %v1319 = vsel %vm807, %v1117, 0
      %v1322 = vsel %vm811, %v1179, 0
      %1324 = vmatprep.subr.bf16.mxu0 0
      %1325 = vmatpush1.bf16.msra.mxu0 %v1322
      %1326 = vmatprep.subr.bf16.mxu0 0
      %1327 = vmatpush1.bf16.msra.mxu0 0
      %1328 = vmatprep.subr.bf16.mxu0 0
      %1329 = vmatpush1.bf16.msra.mxu0 0
      %1330 = vmatprep.subr.bf16.mxu0 0
      %1331 = vmatpush1.bf16.msra.mxu0 0
      %1332 = vmatprep.subr.bf16.mxu0 0
      %1333 = vmatpush1.bf16.msra.mxu0 0
      %1334 = vmatprep.subr.bf16.mxu0 0
      %1335 = vmatpush1.bf16.msra.mxu0 0
      %1336 = vmatprep.subr.bf16.mxu0 0
      %1337 = vmatpush1.bf16.msra.mxu0 0
      %1338 = vmatprep.subr.bf16.mxu0 0
      %1339 = vmatpush1.bf16.msra.mxu0 0
      %1340 = vmatprep.subr.bf16.mxu0 0
      %1341 = vmatpush1.bf16.msra.mxu0 0
      %1342 = vmatprep.subr.bf16.mxu0 0
      %1343 = vmatpush1.bf16.msra.mxu0 0
      %1344 = vmatprep.subr.bf16.mxu0 0
      %1345 = vmatpush1.bf16.msra.mxu0 0
      %1346 = vmatprep.subr.bf16.mxu0 0
      %1347 = vmatpush1.bf16.msra.mxu0 0
      %1348 = vmatprep.subr.bf16.mxu0 0
      %1349 = vmatpush1.bf16.msra.mxu0 0
      %1350 = vmatprep.subr.bf16.mxu0 0
      %1351 = vmatpush1.bf16.msra.mxu0 0
      %1352 = vmatprep.subr.bf16.mxu0 0
      %1353 = vmatpush1.bf16.msra.mxu0 0
      %1354 = vmatprep.subr.bf16.mxu0 0
      %1355 = vmatpush1.bf16.msra.mxu0 0
      %1356 = vmatprep.mubr.bf16.mxu0 0
      %1357 = vmatmul.mubr.bf16.gmra.mrb[0].mxu0 %v1319
      %v1358 = vpop.f32.mrb[0].mxu0
      %v1359 = vadd.f32 0.0, %v1358
      %v1360 = vpop.f32.mrb[0].mxu0
      %v1361 = vpop.f32.mrb[0].mxu0
      %v1362 = vpop.f32.mrb[0].mxu0
      %1363 = vdwg.mxu0
      %v1364 = vadd.f32 %v1110, %v1221
      %v1365 = vadd.f32 %v1111, %v1267
      %v1366 = vadd.f32 %v1112, %v1313
      %v1367 = vadd.f32 %v1113, %v1359
      %1368 = vst.msk [vmem:[#allocation5] sm:$0xff] %vm807, %v1364
      %1369 = vst.msk [vmem:[#allocation5 + $0x8] sm:$0xff] %vm807, %v1365
      %1370 = vst.msk [vmem:[#allocation5 + $0x10] sm:$0xff] %vm807, %v1366
      %1371 = vst.msk [vmem:[#allocation5 + $0x18] sm:$0xff] %vm807, %v1367
      %1372 = vst.msk [vmem:[#allocation3] sm:$0xff] %vm1081, %v1009
      %1373 = vst.msk [vmem:[#allocation3 + $0x8] sm:$0xff] %vm1081, %v1010
      %1374 = vst.msk [vmem:[#allocation3 + $0x10] sm:$0xff] %vm1081, %v1011
      %1375 = vst.msk [vmem:[#allocation3 + $0x18] sm:$0xff] %vm1081, %v1012
    $region29: #{gpt2_attention.3} parent=1 // pred_fallthru
      _
    %p1376 = scmp.eq.s32.totalorder 0, 0
    // Predicated region
    $region30: #{gpt2_attention.3} parent=1 // pred_check
      %p1377 = pneg %p1376
    $region31: #{gpt2_attention.3} parent=1 // pred_check_branch
      %1379 = sbr.rel (%p1377) target = $region33
    $region32: #{gpt2_attention.3} parent=1 // pred_region
      %v1380 = vld [vmem:[#allocation2] sm:$0xf]
      %v1381 = vld [vmem:[#allocation2 + $0x4] sm:$0xf]
      %v1382 = vld [vmem:[#allocation2 + $0x8] sm:$0xf]
      %v1383 = vld [vmem:[#allocation2 + $0xc] sm:$0xf]
      %v1384 = vld [vmem:[%s25] sm:$0xf]
      %1386 = vrot.lane.b32.xlu0 %v1384, 120
      %v1387 = vpop.permute.xlu0 %1386
      %1388 = vrot.lane.b32.xlu0 %v1384, 112
      %v1389 = vpop.permute.xlu0 %1388
      %1390 = vrot.lane.b32.xlu0 %v1384, 104
      %v1391 = vpop.permute.xlu0 %1390
      %v1394 = vpack.i.b16 %v1387, %v1384
      %v1395 = vshrl.u32 %v1384, 16
      %v1396 = vshrl.u32 %v1387, 16
      %v1397 = vpack.i.b16 %v1396, %v1395
      %v1400 = vpack.i.b16 %v1391, %v1389
      %v1401 = vshrl.u32 %v1389, 16
      %v1402 = vshrl.u32 %v1391, 16
      %v1403 = vpack.i.b16 %v1402, %v1401
      %v1406 = vunpack.c.l.s4 1983009808
      %v1407 = vunpack.c.0.s8 %v1406
      %v1408 = vlaneseq
      %v1409 = vshrl.u32 %v1408, 7
      %v1410 = vsub.s32 %v1407, %v1409
      %v1411 = vrot.slane %v1394, %v1410
      %v1414 = vunpack.c.l.s4 1983009808
      %v1415 = vunpack.c.0.s8 %v1414
      %v1416 = vlaneseq
      %v1417 = vshrl.u32 %v1416, 7
      %v1418 = vsub.s32 %v1415, %v1417
      %v1419 = vrot.slane %v1400, %v1418
      %v1420 = vcombine.low %v1411, %v1419
      %v1421 = vcombine.high %v1411, %v1419
      %v1423 = vunpack.c.l.s4 1934713408
      %v1424 = vunpack.c.0.s8 %v1423
      %v1425 = vlaneseq
      %v1426 = vshrl.u32 %v1425, 7
      %v1427 = vsub.s32 %v1424, %v1426
      %v1428 = vrot.slane %v1420, %v1427
      %v1430 = vunpack.c.l.s4 1934713408
      %v1431 = vunpack.c.0.s8 %v1430
      %v1432 = vlaneseq
      %v1433 = vshrl.u32 %v1432, 7
      %v1434 = vsub.s32 %v1431, %v1433
      %v1435 = vrot.slane %v1421, %v1434
      %v1436 = vcombine.high %v1428, 0
      %v1437 = vcombine.high %v1435, 0
      %v1440 = vunpack.c.l.s4 1983009808
      %v1441 = vunpack.c.0.s8 %v1440
      %v1442 = vlaneseq
      %v1443 = vshrl.u32 %v1442, 7
      %v1444 = vsub.s32 %v1441, %v1443
      %v1445 = vrot.slane %v1397, %v1444
      %v1448 = vunpack.c.l.s4 1983009808
      %v1449 = vunpack.c.0.s8 %v1448
      %v1450 = vlaneseq
      %v1451 = vshrl.u32 %v1450, 7
      %v1452 = vsub.s32 %v1449, %v1451
      %v1453 = vrot.slane %v1403, %v1452
      %v1454 = vcombine.low %v1445, %v1453
      %v1455 = vcombine.high %v1445, %v1453
      %v1457 = vunpack.c.l.s4 1934713408
      %v1458 = vunpack.c.0.s8 %v1457
      %v1459 = vlaneseq
      %v1460 = vshrl.u32 %v1459, 7
      %v1461 = vsub.s32 %v1458, %v1460
      %v1462 = vrot.slane %v1454, %v1461
      %v1464 = vunpack.c.l.s4 1934713408
      %v1465 = vunpack.c.0.s8 %v1464
      %v1466 = vlaneseq
      %v1467 = vshrl.u32 %v1466, 7
      %v1468 = vsub.s32 %v1465, %v1467
      %v1469 = vrot.slane %v1455, %v1468
      %v1470 = vcombine.high %v1462, 0
      %v1471 = vcombine.high %v1469, 0
      %v1472 = vld [vmem:[%s26] sm:$0xf]
      %1474 = vrot.lane.b32.xlu0 %v1472, 120
      %v1475 = vpop.permute.xlu0 %1474
      %1476 = vrot.lane.b32.xlu0 %v1472, 112
      %v1477 = vpop.permute.xlu0 %1476
      %1478 = vrot.lane.b32.xlu0 %v1472, 104
      %v1479 = vpop.permute.xlu0 %1478
      %v1482 = vpack.i.b16 %v1475, %v1472
      %v1483 = vshrl.u32 %v1472, 16
      %v1484 = vshrl.u32 %v1475, 16
      %v1485 = vpack.i.b16 %v1484, %v1483
      %v1488 = vpack.i.b16 %v1479, %v1477
      %v1489 = vshrl.u32 %v1477, 16
      %v1490 = vshrl.u32 %v1479, 16
      %v1491 = vpack.i.b16 %v1490, %v1489
      %v1494 = vunpack.c.l.s4 1983009808
      %v1495 = vunpack.c.0.s8 %v1494
      %v1496 = vlaneseq
      %v1497 = vshrl.u32 %v1496, 7
      %v1498 = vsub.s32 %v1495, %v1497
      %v1499 = vrot.slane %v1482, %v1498
      %v1502 = vunpack.c.l.s4 1983009808
      %v1503 = vunpack.c.0.s8 %v1502
      %v1504 = vlaneseq
      %v1505 = vshrl.u32 %v1504, 7
      %v1506 = vsub.s32 %v1503, %v1505
      %v1507 = vrot.slane %v1488, %v1506
      %v1508 = vcombine.low %v1499, %v1507
      %v1509 = vcombine.high %v1499, %v1507
      %v1511 = vunpack.c.l.s4 1934713408
      %v1512 = vunpack.c.0.s8 %v1511
      %v1513 = vlaneseq
      %v1514 = vshrl.u32 %v1513, 7
      %v1515 = vsub.s32 %v1512, %v1514
      %v1516 = vrot.slane %v1508, %v1515
      %v1518 = vunpack.c.l.s4 1934713408
      %v1519 = vunpack.c.0.s8 %v1518
      %v1520 = vlaneseq
      %v1521 = vshrl.u32 %v1520, 7
      %v1522 = vsub.s32 %v1519, %v1521
      %v1523 = vrot.slane %v1509, %v1522
      %v1524 = vcombine.high %v1516, 0
      %v1525 = vcombine.high %v1523, 0
      %v1528 = vunpack.c.l.s4 1983009808
      %v1529 = vunpack.c.0.s8 %v1528
      %v1530 = vlaneseq
      %v1531 = vshrl.u32 %v1530, 7
      %v1532 = vsub.s32 %v1529, %v1531
      %v1533 = vrot.slane %v1485, %v1532
      %v1536 = vunpack.c.l.s4 1983009808
      %v1537 = vunpack.c.0.s8 %v1536
      %v1538 = vlaneseq
      %v1539 = vshrl.u32 %v1538, 7
      %v1540 = vsub.s32 %v1537, %v1539
      %v1541 = vrot.slane %v1491, %v1540
      %v1542 = vcombine.low %v1533, %v1541
      %v1543 = vcombine.high %v1533, %v1541
      %v1545 = vunpack.c.l.s4 1934713408
      %v1546 = vunpack.c.0.s8 %v1545
      %v1547 = vlaneseq
      %v1548 = vshrl.u32 %v1547, 7
      %v1549 = vsub.s32 %v1546, %v1548
      %v1550 = vrot.slane %v1542, %v1549
      %v1552 = vunpack.c.l.s4 1934713408
      %v1553 = vunpack.c.0.s8 %v1552
      %v1554 = vlaneseq
      %v1555 = vshrl.u32 %v1554, 7
      %v1556 = vsub.s32 %v1553, %v1555
      %v1557 = vrot.slane %v1543, %v1556
      %v1558 = vcombine.high %v1550, 0
      %v1559 = vcombine.high %v1557, 0
      %1560 = vxpose.xlu0.c.b16.start [1/8] %v1428, 128
      %1561 = vxpose.xlu0.c.b16.cont [2/8] 0, 128
      %1562 = vxpose.xlu0.c.b16.cont [3/8] 0, 128
      %1563 = vxpose.xlu0.c.b16.cont [4/8] 0, 128
      %1564 = vxpose.xlu0.c.b16.cont [5/8] 0, 128
      %1565 = vxpose.xlu0.c.b16.cont [6/8] 0, 128
      %1566 = vxpose.xlu0.c.b16.cont [7/8] 0, 128
      %1567 = vxpose.xlu0.c.b16.end [8/8] 0, 128
      %v1568 = vpop.trf.xlu0
      %v1569 = vpop.trf.xlu0
      %v1570 = vpop.trf.xlu0
      %v1571 = vpop.trf.xlu0
      %v1572 = vpop.trf.xlu0
      %v1573 = vpop.trf.xlu0
      %v1574 = vpop.trf.xlu0
      %v1575 = vpop.trf.xlu0
      %1576 = vxpose.xlu0.c.b16.start [1/8] %v1462, 128
      %1577 = vxpose.xlu0.c.b16.cont [2/8] 0, 128
      %1578 = vxpose.xlu0.c.b16.cont [3/8] 0, 128
      %1579 = vxpose.xlu0.c.b16.cont [4/8] 0, 128
      %1580 = vxpose.xlu0.c.b16.cont [5/8] 0, 128
      %1581 = vxpose.xlu0.c.b16.cont [6/8] 0, 128
      %1582 = vxpose.xlu0.c.b16.cont [7/8] 0, 128
      %1583 = vxpose.xlu0.c.b16.end [8/8] 0, 128
      %v1584 = vpop.trf.xlu0
      %v1585 = vpop.trf.xlu0
      %v1586 = vpop.trf.xlu0
      %v1587 = vpop.trf.xlu0
      %v1588 = vpop.trf.xlu0
      %v1589 = vpop.trf.xlu0
      %v1590 = vpop.trf.xlu0
      %v1591 = vpop.trf.xlu0
      %1592 = vxpose.xlu0.c.b16.start [1/8] %v1436, 128
      %1593 = vxpose.xlu0.c.b16.cont [2/8] 0, 128
      %1594 = vxpose.xlu0.c.b16.cont [3/8] 0, 128
      %1595 = vxpose.xlu0.c.b16.cont [4/8] 0, 128
      %1596 = vxpose.xlu0.c.b16.cont [5/8] 0, 128
      %1597 = vxpose.xlu0.c.b16.cont [6/8] 0, 128
      %1598 = vxpose.xlu0.c.b16.cont [7/8] 0, 128
      %1599 = vxpose.xlu0.c.b16.end [8/8] 0, 128
      %v1600 = vpop.trf.xlu0
      %v1601 = vpop.trf.xlu0
      %v1602 = vpop.trf.xlu0
      %v1603 = vpop.trf.xlu0
      %v1604 = vpop.trf.xlu0
      %v1605 = vpop.trf.xlu0
      %v1606 = vpop.trf.xlu0
      %v1607 = vpop.trf.xlu0
      %1608 = vxpose.xlu0.c.b16.start [1/8] %v1470, 128
      %1609 = vxpose.xlu0.c.b16.cont [2/8] 0, 128
      %1610 = vxpose.xlu0.c.b16.cont [3/8] 0, 128
      %1611 = vxpose.xlu0.c.b16.cont [4/8] 0, 128
      %1612 = vxpose.xlu0.c.b16.cont [5/8] 0, 128
      %1613 = vxpose.xlu0.c.b16.cont [6/8] 0, 128
      %1614 = vxpose.xlu0.c.b16.cont [7/8] 0, 128
      %1615 = vxpose.xlu0.c.b16.end [8/8] 0, 128
      %v1616 = vpop.trf.xlu0
      %v1617 = vpop.trf.xlu0
      %v1618 = vpop.trf.xlu0
      %v1619 = vpop.trf.xlu0
      %v1620 = vpop.trf.xlu0
      %v1621 = vpop.trf.xlu0
      %v1622 = vpop.trf.xlu0
      %v1623 = vpop.trf.xlu0
      %1624 = vxpose.xlu0.c.b16.start [1/8] %v1435, 128
      %1625 = vxpose.xlu0.c.b16.cont [2/8] 0, 128
      %1626 = vxpose.xlu0.c.b16.cont [3/8] 0, 128
      %1627 = vxpose.xlu0.c.b16.cont [4/8] 0, 128
      %1628 = vxpose.xlu0.c.b16.cont [5/8] 0, 128
      %1629 = vxpose.xlu0.c.b16.cont [6/8] 0, 128
      %1630 = vxpose.xlu0.c.b16.cont [7/8] 0, 128
      %1631 = vxpose.xlu0.c.b16.end [8/8] 0, 128
      %v1632 = vpop.trf.xlu0
      %v1633 = vpop.trf.xlu0
      %v1634 = vpop.trf.xlu0
      %v1635 = vpop.trf.xlu0
      %v1636 = vpop.trf.xlu0
      %v1637 = vpop.trf.xlu0
      %v1638 = vpop.trf.xlu0
      %v1639 = vpop.trf.xlu0
      %1640 = vxpose.xlu0.c.b16.start [1/8] %v1469, 128
      %1641 = vxpose.xlu0.c.b16.cont [2/8] 0, 128
      %1642 = vxpose.xlu0.c.b16.cont [3/8] 0, 128
      %1643 = vxpose.xlu0.c.b16.cont [4/8] 0, 128
      %1644 = vxpose.xlu0.c.b16.cont [5/8] 0, 128
      %1645 = vxpose.xlu0.c.b16.cont [6/8] 0, 128
      %1646 = vxpose.xlu0.c.b16.cont [7/8] 0, 128
      %1647 = vxpose.xlu0.c.b16.end [8/8] 0, 128
      %v1648 = vpop.trf.xlu0
      %v1649 = vpop.trf.xlu0
      %v1650 = vpop.trf.xlu0
      %v1651 = vpop.trf.xlu0
      %v1652 = vpop.trf.xlu0
      %v1653 = vpop.trf.xlu0
      %v1654 = vpop.trf.xlu0
      %v1655 = vpop.trf.xlu0
      %1656 = vxpose.xlu0.c.b16.start [1/8] %v1437, 128
      %1657 = vxpose.xlu0.c.b16.cont [2/8] 0, 128
      %1658 = vxpose.xlu0.c.b16.cont [3/8] 0, 128
      %1659 = vxpose.xlu0.c.b16.cont [4/8] 0, 128
      %1660 = vxpose.xlu0.c.b16.cont [5/8] 0, 128
      %1661 = vxpose.xlu0.c.b16.cont [6/8] 0, 128
      %1662 = vxpose.xlu0.c.b16.cont [7/8] 0, 128
      %1663 = vxpose.xlu0.c.b16.end [8/8] 0, 128
      %v1664 = vpop.trf.xlu0
      %v1665 = vpop.trf.xlu0
      %v1666 = vpop.trf.xlu0
      %v1667 = vpop.trf.xlu0
      %v1668 = vpop.trf.xlu0
      %v1669 = vpop.trf.xlu0
      %v1670 = vpop.trf.xlu0
      %v1671 = vpop.trf.xlu0
      %1672 = vxpose.xlu0.c.b16.start [1/8] %v1471, 128
      %1673 = vxpose.xlu0.c.b16.cont [2/8] 0, 128
      %1674 = vxpose.xlu0.c.b16.cont [3/8] 0, 128
      %1675 = vxpose.xlu0.c.b16.cont [4/8] 0, 128
      %1676 = vxpose.xlu0.c.b16.cont [5/8] 0, 128
      %1677 = vxpose.xlu0.c.b16.cont [6/8] 0, 128
      %1678 = vxpose.xlu0.c.b16.cont [7/8] 0, 128
      %1679 = vxpose.xlu0.c.b16.end [8/8] 0, 128
      %v1680 = vpop.trf.xlu0
      %v1681 = vpop.trf.xlu0
      %v1682 = vpop.trf.xlu0
      %v1683 = vpop.trf.xlu0
      %v1684 = vpop.trf.xlu0
      %v1685 = vpop.trf.xlu0
      %v1686 = vpop.trf.xlu0
      %v1687 = vpop.trf.xlu0
      %v1688 = vcombine.low %v1568, %v1632
      %v1690 = vunpack.c.l.s4 1983009808
      %v1691 = vunpack.c.0.s8 %v1690
      %v1692 = vlaneseq
      %v1693 = vshrl.u32 %v1692, 7
      %v1694 = vsub.s32 %v1691, %v1693
      %v1695 = vrot.slane %v1688, %v1694
      %v1696 = vcombine.low %v1600, %v1664
      %v1698 = vunpack.c.l.s4 1983009808
      %v1699 = vunpack.c.0.s8 %v1698
      %v1700 = vlaneseq
      %v1701 = vshrl.u32 %v1700, 7
      %v1702 = vsub.s32 %v1699, %v1701
      %v1703 = vrot.slane %v1696, %v1702
      %v1704 = vcombine.low %v1695, %v1703
      %v1705 = vcombine.high %v1695, %v1703
      %v1707 = vunpack.c.l.s4 1934713408
      %v1708 = vunpack.c.0.s8 %v1707
      %v1709 = vlaneseq
      %v1710 = vshrl.u32 %v1709, 7
      %v1711 = vsub.s32 %v1708, %v1710
      %v1712 = vrot.slane %v1704, %v1711
      %v1714 = vunpack.c.l.s4 1934713408
      %v1715 = vunpack.c.0.s8 %v1714
      %v1716 = vlaneseq
      %v1717 = vshrl.u32 %v1716, 7
      %v1718 = vsub.s32 %v1715, %v1717
      %v1719 = vrot.slane %v1705, %v1718
      %v1720 = vcombine.high %v1712, 0
      %v1721 = vcombine.high %v1719, 0
      %v1722 = vcombine.low %v1584, %v1648
      %v1724 = vunpack.c.l.s4 1983009808
      %v1725 = vunpack.c.0.s8 %v1724
      %v1726 = vlaneseq
      %v1727 = vshrl.u32 %v1726, 7
      %v1728 = vsub.s32 %v1725, %v1727
      %v1729 = vrot.slane %v1722, %v1728
      %v1730 = vcombine.low %v1616, %v1680
      %v1732 = vunpack.c.l.s4 1983009808
      %v1733 = vunpack.c.0.s8 %v1732
      %v1734 = vlaneseq
      %v1735 = vshrl.u32 %v1734, 7
      %v1736 = vsub.s32 %v1733, %v1735
      %v1737 = vrot.slane %v1730, %v1736
      %v1738 = vcombine.low %v1729, %v1737
      %v1739 = vcombine.high %v1729, %v1737
      %v1741 = vunpack.c.l.s4 1934713408
      %v1742 = vunpack.c.0.s8 %v1741
      %v1743 = vlaneseq
      %v1744 = vshrl.u32 %v1743, 7
      %v1745 = vsub.s32 %v1742, %v1744
      %v1746 = vrot.slane %v1738, %v1745
      %v1748 = vunpack.c.l.s4 1934713408
      %v1749 = vunpack.c.0.s8 %v1748
      %v1750 = vlaneseq
      %v1751 = vshrl.u32 %v1750, 7
      %v1752 = vsub.s32 %v1749, %v1751
      %v1753 = vrot.slane %v1739, %v1752
      %v1754 = vcombine.high %v1746, 0
      %v1755 = vcombine.high %v1753, 0
      %v1758 = vpack.i.b16 %v1746, %v1712
      %v1760 = vshrl.u32 %v1712, 16
      %v1761 = vshrl.u32 %v1746, 16
      %v1762 = vpack.i.b16 %v1761, %v1760
      %v1766 = vpack.i.b16 %v1754, %v1720
      %v1768 = vshrl.u32 %v1720, 16
      %v1769 = vshrl.u32 %v1754, 16
      %v1770 = vpack.i.b16 %v1769, %v1768
      %v1774 = vpack.i.b16 %v1753, %v1719
      %v1776 = vshrl.u32 %v1719, 16
      %v1777 = vshrl.u32 %v1753, 16
      %v1778 = vpack.i.b16 %v1777, %v1776
      %v1782 = vpack.i.b16 %v1755, %v1721
      %v1784 = vshrl.u32 %v1721, 16
      %v1785 = vshrl.u32 %v1755, 16
      %v1786 = vpack.i.b16 %v1785, %v1784
      %1788 = vxpose.xlu0.c.b16.start [1/8] %v1758, 128
      %1789 = vxpose.xlu0.c.b16.cont [2/8] 0, 128
      %1790 = vxpose.xlu0.c.b16.cont [3/8] 0, 128
      %1791 = vxpose.xlu0.c.b16.cont [4/8] 0, 128
      %1792 = vxpose.xlu0.c.b16.cont [5/8] 0, 128
      %1793 = vxpose.xlu0.c.b16.cont [6/8] 0, 128
      %1794 = vxpose.xlu0.c.b16.cont [7/8] 0, 128
      %1795 = vxpose.xlu0.c.b16.end [8/8] 0, 128
      %v1796 = vpop.trf.xlu0
      %v1797 = vpop.trf.xlu0
      %v1798 = vpop.trf.xlu0
      %v1799 = vpop.trf.xlu0
      %v1800 = vpop.trf.xlu0
      %v1801 = vpop.trf.xlu0
      %v1802 = vpop.trf.xlu0
      %v1803 = vpop.trf.xlu0
      %1804 = vxpose.xlu0.c.b16.start [1/8] %v1762, 128
      %1805 = vxpose.xlu0.c.b16.cont [2/8] 0, 128
      %1806 = vxpose.xlu0.c.b16.cont [3/8] 0, 128
      %1807 = vxpose.xlu0.c.b16.cont [4/8] 0, 128
      %1808 = vxpose.xlu0.c.b16.cont [5/8] 0, 128
      %1809 = vxpose.xlu0.c.b16.cont [6/8] 0, 128
      %1810 = vxpose.xlu0.c.b16.cont [7/8] 0, 128
      %1811 = vxpose.xlu0.c.b16.end [8/8] 0, 128
      %v1812 = vpop.trf.xlu0
      %v1813 = vpop.trf.xlu0
      %v1814 = vpop.trf.xlu0
      %v1815 = vpop.trf.xlu0
      %v1816 = vpop.trf.xlu0
      %v1817 = vpop.trf.xlu0
      %v1818 = vpop.trf.xlu0
      %v1819 = vpop.trf.xlu0
      %1820 = vxpose.xlu0.c.b16.start [1/8] %v1766, 128
      %1821 = vxpose.xlu0.c.b16.cont [2/8] 0, 128
      %1822 = vxpose.xlu0.c.b16.cont [3/8] 0, 128
      %1823 = vxpose.xlu0.c.b16.cont [4/8] 0, 128
      %1824 = vxpose.xlu0.c.b16.cont [5/8] 0, 128
      %1825 = vxpose.xlu0.c.b16.cont [6/8] 0, 128
      %1826 = vxpose.xlu0.c.b16.cont [7/8] 0, 128
      %1827 = vxpose.xlu0.c.b16.end [8/8] 0, 128
      %v1828 = vpop.trf.xlu0
      %v1829 = vpop.trf.xlu0
      %v1830 = vpop.trf.xlu0
      %v1831 = vpop.trf.xlu0
      %v1832 = vpop.trf.xlu0
      %v1833 = vpop.trf.xlu0
      %v1834 = vpop.trf.xlu0
      %v1835 = vpop.trf.xlu0
      %1836 = vxpose.xlu0.c.b16.start [1/8] %v1770, 128
      %1837 = vxpose.xlu0.c.b16.cont [2/8] 0, 128
      %1838 = vxpose.xlu0.c.b16.cont [3/8] 0, 128
      %1839 = vxpose.xlu0.c.b16.cont [4/8] 0, 128
      %1840 = vxpose.xlu0.c.b16.cont [5/8] 0, 128
      %1841 = vxpose.xlu0.c.b16.cont [6/8] 0, 128
      %1842 = vxpose.xlu0.c.b16.cont [7/8] 0, 128
      %1843 = vxpose.xlu0.c.b16.end [8/8] 0, 128
      %v1844 = vpop.trf.xlu0
      %v1845 = vpop.trf.xlu0
      %v1846 = vpop.trf.xlu0
      %v1847 = vpop.trf.xlu0
      %v1848 = vpop.trf.xlu0
      %v1849 = vpop.trf.xlu0
      %v1850 = vpop.trf.xlu0
      %v1851 = vpop.trf.xlu0
      %1852 = vxpose.xlu0.c.b16.start [1/8] %v1774, 128
      %1853 = vxpose.xlu0.c.b16.cont [2/8] 0, 128
      %1854 = vxpose.xlu0.c.b16.cont [3/8] 0, 128
      %1855 = vxpose.xlu0.c.b16.cont [4/8] 0, 128
      %1856 = vxpose.xlu0.c.b16.cont [5/8] 0, 128
      %1857 = vxpose.xlu0.c.b16.cont [6/8] 0, 128
      %1858 = vxpose.xlu0.c.b16.cont [7/8] 0, 128
      %1859 = vxpose.xlu0.c.b16.end [8/8] 0, 128
      %v1860 = vpop.trf.xlu0
      %v1861 = vpop.trf.xlu0
      %v1862 = vpop.trf.xlu0
      %v1863 = vpop.trf.xlu0
      %v1864 = vpop.trf.xlu0
      %v1865 = vpop.trf.xlu0
      %v1866 = vpop.trf.xlu0
      %v1867 = vpop.trf.xlu0
      %1868 = vxpose.xlu0.c.b16.start [1/8] %v1778, 128
      %1869 = vxpose.xlu0.c.b16.cont [2/8] 0, 128
      %1870 = vxpose.xlu0.c.b16.cont [3/8] 0, 128
      %1871 = vxpose.xlu0.c.b16.cont [4/8] 0, 128
      %1872 = vxpose.xlu0.c.b16.cont [5/8] 0, 128
      %1873 = vxpose.xlu0.c.b16.cont [6/8] 0, 128
      %1874 = vxpose.xlu0.c.b16.cont [7/8] 0, 128
      %1875 = vxpose.xlu0.c.b16.end [8/8] 0, 128
      %v1876 = vpop.trf.xlu0
      %v1877 = vpop.trf.xlu0
      %v1878 = vpop.trf.xlu0
      %v1879 = vpop.trf.xlu0
      %v1880 = vpop.trf.xlu0
      %v1881 = vpop.trf.xlu0
      %v1882 = vpop.trf.xlu0
      %v1883 = vpop.trf.xlu0
      %1884 = vxpose.xlu0.c.b16.start [1/8] %v1782, 128
      %1885 = vxpose.xlu0.c.b16.cont [2/8] 0, 128
      %1886 = vxpose.xlu0.c.b16.cont [3/8] 0, 128
      %1887 = vxpose.xlu0.c.b16.cont [4/8] 0, 128
      %1888 = vxpose.xlu0.c.b16.cont [5/8] 0, 128
      %1889 = vxpose.xlu0.c.b16.cont [6/8] 0, 128
      %1890 = vxpose.xlu0.c.b16.cont [7/8] 0, 128
      %1891 = vxpose.xlu0.c.b16.end [8/8] 0, 128
      %v1892 = vpop.trf.xlu0
      %v1893 = vpop.trf.xlu0
      %v1894 = vpop.trf.xlu0
      %v1895 = vpop.trf.xlu0
      %v1896 = vpop.trf.xlu0
      %v1897 = vpop.trf.xlu0
      %v1898 = vpop.trf.xlu0
      %v1899 = vpop.trf.xlu0
      %1900 = vxpose.xlu0.c.b16.start [1/8] %v1786, 128
      %1901 = vxpose.xlu0.c.b16.cont [2/8] 0, 128
      %1902 = vxpose.xlu0.c.b16.cont [3/8] 0, 128
      %1903 = vxpose.xlu0.c.b16.cont [4/8] 0, 128
      %1904 = vxpose.xlu0.c.b16.cont [5/8] 0, 128
      %1905 = vxpose.xlu0.c.b16.cont [6/8] 0, 128
      %1906 = vxpose.xlu0.c.b16.cont [7/8] 0, 128
      %1907 = vxpose.xlu0.c.b16.end [8/8] 0, 128
      %v1908 = vpop.trf.xlu0
      %v1909 = vpop.trf.xlu0
      %v1910 = vpop.trf.xlu0
      %v1911 = vpop.trf.xlu0
      %v1912 = vpop.trf.xlu0
      %v1913 = vpop.trf.xlu0
      %v1914 = vpop.trf.xlu0
      %v1915 = vpop.trf.xlu0
      %v1916 = vcombine.low %v1796, %v1860
      %v1918 = vunpack.c.l.s4 1983009808
      %v1919 = vunpack.c.0.s8 %v1918
      %v1920 = vlaneseq
      %v1921 = vshrl.u32 %v1920, 7
      %v1922 = vsub.s32 %v1919, %v1921
      %v1923 = vrot.slane %v1916, %v1922
      %v1924 = vcombine.low %v1828, %v1892
      %v1926 = vunpack.c.l.s4 1983009808
      %v1927 = vunpack.c.0.s8 %v1926
      %v1928 = vlaneseq
      %v1929 = vshrl.u32 %v1928, 7
      %v1930 = vsub.s32 %v1927, %v1929
      %v1931 = vrot.slane %v1924, %v1930
      %v1932 = vcombine.low %v1923, %v1931
      %v1934 = vunpack.c.l.s4 1934713408
      %v1935 = vunpack.c.0.s8 %v1934
      %v1936 = vlaneseq
      %v1937 = vshrl.u32 %v1936, 7
      %v1938 = vsub.s32 %v1935, %v1937
      %v1939 = vrot.slane %v1932, %v1938
      %v1940 = vcombine.high %v1939, 0
      %v1941 = vcombine.low %v1812, %v1876
      %v1943 = vunpack.c.l.s4 1983009808
      %v1944 = vunpack.c.0.s8 %v1943
      %v1945 = vlaneseq
      %v1946 = vshrl.u32 %v1945, 7
      %v1947 = vsub.s32 %v1944, %v1946
      %v1948 = vrot.slane %v1941, %v1947
      %v1949 = vcombine.low %v1844, %v1908
      %v1951 = vunpack.c.l.s4 1983009808
      %v1952 = vunpack.c.0.s8 %v1951
      %v1953 = vlaneseq
      %v1954 = vshrl.u32 %v1953, 7
      %v1955 = vsub.s32 %v1952, %v1954
      %v1956 = vrot.slane %v1949, %v1955
      %v1957 = vcombine.low %v1948, %v1956
      %v1959 = vunpack.c.l.s4 1934713408
      %v1960 = vunpack.c.0.s8 %v1959
      %v1961 = vlaneseq
      %v1962 = vshrl.u32 %v1961, 7
      %v1963 = vsub.s32 %v1960, %v1962
      %v1964 = vrot.slane %v1957, %v1963
      %v1965 = vcombine.high %v1964, 0
      %v1968 = vpack.i.b16 %v1964, %v1939
      %v1969 = vshrl.u32 %v1939, 16
      %v1970 = vshrl.u32 %v1964, 16
      %v1971 = vpack.i.b16 %v1970, %v1969
      %v1974 = vpack.i.b16 %v1965, %v1940
      %v1975 = vshrl.u32 %v1940, 16
      %v1976 = vshrl.u32 %v1965, 16
      %v1977 = vpack.i.b16 %v1976, %v1975
      %vm1978 = vcmask 64512
      %v1980 = vsel %vm1978, %v1380, 0
      %vm1982 = vcmask 1043456
      %v1984 = vsel %vm1982, %v1968, 0
      %1986 = vmatprep.subr.bf16.mxu0 0
      %1987 = vmatpush1.bf16.msra.mxu0 %v1984
      %1988 = vmatprep.subr.bf16.mxu0 0
      %1989 = vmatpush1.bf16.msra.mxu0 0
      %1990 = vmatprep.subr.bf16.mxu0 0
      %1991 = vmatpush1.bf16.msra.mxu0 0
      %1992 = vmatprep.subr.bf16.mxu0 0
      %1993 = vmatpush1.bf16.msra.mxu0 0
      %1994 = vmatprep.subr.bf16.mxu0 0
      %1995 = vmatpush1.bf16.msra.mxu0 0
      %1996 = vmatprep.subr.bf16.mxu0 0
      %1997 = vmatpush1.bf16.msra.mxu0 0
      %1998 = vmatprep.subr.bf16.mxu0 0
      %1999 = vmatpush1.bf16.msra.mxu0 0
      %2000 = vmatprep.subr.bf16.mxu0 0
      %2001 = vmatpush1.bf16.msra.mxu0 0
      %2002 = vmatprep.subr.bf16.mxu0 0
      %2003 = vmatpush1.bf16.msra.mxu0 0
      %2004 = vmatprep.subr.bf16.mxu0 0
      %2005 = vmatpush1.bf16.msra.mxu0 0
      %2006 = vmatprep.subr.bf16.mxu0 0
      %2007 = vmatpush1.bf16.msra.mxu0 0
      %2008 = vmatprep.subr.bf16.mxu0 0
      %2009 = vmatpush1.bf16.msra.mxu0 0
      %2010 = vmatprep.subr.bf16.mxu0 0
      %2011 = vmatpush1.bf16.msra.mxu0 0
      %2012 = vmatprep.subr.bf16.mxu0 0
      %2013 = vmatpush1.bf16.msra.mxu0 0
      %2014 = vmatprep.subr.bf16.mxu0 0
      %2015 = vmatpush1.bf16.msra.mxu0 0
      %2016 = vmatprep.subr.bf16.mxu0 0
      %2017 = vmatpush1.bf16.msra.mxu0 0
      %2018 = vmatprep.mubr.bf16.mxu0 0
      %2019 = vmatmul.mubr.bf16.gmra.mrb[0].mxu0 %v1980
      %v2020 = vpop.f32.mrb[0].mxu0
      %v2021 = vadd.f32 0.0, %v2020
      %v2022 = vpop.f32.mrb[0].mxu0
      %v2023 = vpop.f32.mrb[0].mxu0
      %v2024 = vpop.f32.mrb[0].mxu0
      %2025 = vdwg.mxu0
      %v2027 = vsel %vm1978, %v1381, 0
      %v2030 = vsel %vm1982, %v1971, 0
      %2032 = vmatprep.subr.bf16.mxu0 0
      %2033 = vmatpush1.bf16.msra.mxu0 %v2030
      %2034 = vmatprep.subr.bf16.mxu0 0
      %2035 = vmatpush1.bf16.msra.mxu0 0
      %2036 = vmatprep.subr.bf16.mxu0 0
      %2037 = vmatpush1.bf16.msra.mxu0 0
      %2038 = vmatprep.subr.bf16.mxu0 0
      %2039 = vmatpush1.bf16.msra.mxu0 0
      %2040 = vmatprep.subr.bf16.mxu0 0
      %2041 = vmatpush1.bf16.msra.mxu0 0
      %2042 = vmatprep.subr.bf16.mxu0 0
      %2043 = vmatpush1.bf16.msra.mxu0 0
      %2044 = vmatprep.subr.bf16.mxu0 0
      %2045 = vmatpush1.bf16.msra.mxu0 0
      %2046 = vmatprep.subr.bf16.mxu0 0
      %2047 = vmatpush1.bf16.msra.mxu0 0
      %2048 = vmatprep.subr.bf16.mxu0 0
      %2049 = vmatpush1.bf16.msra.mxu0 0
      %2050 = vmatprep.subr.bf16.mxu0 0
      %2051 = vmatpush1.bf16.msra.mxu0 0
      %2052 = vmatprep.subr.bf16.mxu0 0
      %2053 = vmatpush1.bf16.msra.mxu0 0
      %2054 = vmatprep.subr.bf16.mxu0 0
      %2055 = vmatpush1.bf16.msra.mxu0 0
      %2056 = vmatprep.subr.bf16.mxu0 0
      %2057 = vmatpush1.bf16.msra.mxu0 0
      %2058 = vmatprep.subr.bf16.mxu0 0
      %2059 = vmatpush1.bf16.msra.mxu0 0
      %2060 = vmatprep.subr.bf16.mxu0 0
      %2061 = vmatpush1.bf16.msra.mxu0 0
      %2062 = vmatprep.subr.bf16.mxu0 0
      %2063 = vmatpush1.bf16.msra.mxu0 0
      %2064 = vmatprep.mubr.bf16.mxu0 0
      %2065 = vmatmul.mubr.bf16.gmra.mrb[0].mxu0 %v2027
      %v2066 = vpop.f32.mrb[0].mxu0
      %v2067 = vadd.f32 0.0, %v2066
      %v2068 = vpop.f32.mrb[0].mxu0
      %v2069 = vpop.f32.mrb[0].mxu0
      %v2070 = vpop.f32.mrb[0].mxu0
      %2071 = vdwg.mxu0
      %v2073 = vsel %vm1978, %v1382, 0
      %v2076 = vsel %vm1982, %v1974, 0
      %2078 = vmatprep.subr.bf16.mxu0 0
      %2079 = vmatpush1.bf16.msra.mxu0 %v2076
      %2080 = vmatprep.subr.bf16.mxu0 0
      %2081 = vmatpush1.bf16.msra.mxu0 0
      %2082 = vmatprep.subr.bf16.mxu0 0
      %2083 = vmatpush1.bf16.msra.mxu0 0
      %2084 = vmatprep.subr.bf16.mxu0 0
      %2085 = vmatpush1.bf16.msra.mxu0 0
      %2086 = vmatprep.subr.bf16.mxu0 0
      %2087 = vmatpush1.bf16.msra.mxu0 0
      %2088 = vmatprep.subr.bf16.mxu0 0
      %2089 = vmatpush1.bf16.msra.mxu0 0
      %2090 = vmatprep.subr.bf16.mxu0 0
      %2091 = vmatpush1.bf16.msra.mxu0 0
      %2092 = vmatprep.subr.bf16.mxu0 0
      %2093 = vmatpush1.bf16.msra.mxu0 0
      %2094 = vmatprep.subr.bf16.mxu0 0
      %2095 = vmatpush1.bf16.msra.mxu0 0
      %2096 = vmatprep.subr.bf16.mxu0 0
      %2097 = vmatpush1.bf16.msra.mxu0 0
      %2098 = vmatprep.subr.bf16.mxu0 0
      %2099 = vmatpush1.bf16.msra.mxu0 0
      %2100 = vmatprep.subr.bf16.mxu0 0
      %2101 = vmatpush1.bf16.msra.mxu0 0
      %2102 = vmatprep.subr.bf16.mxu0 0
      %2103 = vmatpush1.bf16.msra.mxu0 0
      %2104 = vmatprep.subr.bf16.mxu0 0
      %2105 = vmatpush1.bf16.msra.mxu0 0
      %2106 = vmatprep.subr.bf16.mxu0 0
      %2107 = vmatpush1.bf16.msra.mxu0 0
      %2108 = vmatprep.subr.bf16.mxu0 0
      %2109 = vmatpush1.bf16.msra.mxu0 0
      %2110 = vmatprep.mubr.bf16.mxu0 0
      %2111 = vmatmul.mubr.bf16.gmra.mrb[0].mxu0 %v2073
      %v2112 = vpop.f32.mrb[0].mxu0
      %v2113 = vadd.f32 0.0, %v2112
      %v2114 = vpop.f32.mrb[0].mxu0
      %v2115 = vpop.f32.mrb[0].mxu0
      %v2116 = vpop.f32.mrb[0].mxu0
      %2117 = vdwg.mxu0
      %v2119 = vsel %vm1978, %v1383, 0
      %v2122 = vsel %vm1982, %v1977, 0
      %2124 = vmatprep.subr.bf16.mxu0 0
      %2125 = vmatpush1.bf16.msra.mxu0 %v2122
      %2126 = vmatprep.subr.bf16.mxu0 0
      %2127 = vmatpush1.bf16.msra.mxu0 0
      %2128 = vmatprep.subr.bf16.mxu0 0
      %2129 = vmatpush1.bf16.msra.mxu0 0
      %2130 = vmatprep.subr.bf16.mxu0 0
      %2131 = vmatpush1.bf16.msra.mxu0 0
      %2132 = vmatprep.subr.bf16.mxu0 0
      %2133 = vmatpush1.bf16.msra.mxu0 0
      %2134 = vmatprep.subr.bf16.mxu0 0
      %2135 = vmatpush1.bf16.msra.mxu0 0
      %2136 = vmatprep.subr.bf16.mxu0 0
      %2137 = vmatpush1.bf16.msra.mxu0 0
      %2138 = vmatprep.subr.bf16.mxu0 0
      %2139 = vmatpush1.bf16.msra.mxu0 0
      %2140 = vmatprep.subr.bf16.mxu0 0
      %2141 = vmatpush1.bf16.msra.mxu0 0
      %2142 = vmatprep.subr.bf16.mxu0 0
      %2143 = vmatpush1.bf16.msra.mxu0 0
      %2144 = vmatprep.subr.bf16.mxu0 0
      %2145 = vmatpush1.bf16.msra.mxu0 0
      %2146 = vmatprep.subr.bf16.mxu0 0
      %2147 = vmatpush1.bf16.msra.mxu0 0
      %2148 = vmatprep.subr.bf16.mxu0 0
      %2149 = vmatpush1.bf16.msra.mxu0 0
      %2150 = vmatprep.subr.bf16.mxu0 0
      %2151 = vmatpush1.bf16.msra.mxu0 0
      %2152 = vmatprep.subr.bf16.mxu0 0
      %2153 = vmatpush1.bf16.msra.mxu0 0
      %2154 = vmatprep.subr.bf16.mxu0 0
      %2155 = vmatpush1.bf16.msra.mxu0 0
      %2156 = vmatprep.mubr.bf16.mxu0 0
      %2157 = vmatmul.mubr.bf16.gmra.mrb[0].mxu0 %v2119
      %v2158 = vpop.f32.mrb[0].mxu0
      %v2159 = vadd.f32 0.0, %v2158
      %v2160 = vpop.f32.mrb[0].mxu0
      %v2161 = vpop.f32.mrb[0].mxu0
      %v2162 = vpop.f32.mrb[0].mxu0
      %2163 = vdwg.mxu0
      %v2164 = vlaneseq
      %v2165 = vshrl.u32 %v2164, 7
      %v2166 = vlaneseq
      %v2167 = vand.u32 %v2166, 127
      %vm2168 = vcmp.ge.s32.totalorder %v2165, %v2167
      %v2169 = vsel %vm2168, 1, 0
      %vm2170 = vcmp.eq.s32.totalorder %v2169, 1
      %v2171 = vsel %vm2170, %v2021, -1e+30
      %v2172 = vsel %vm2170, %v2067, -1e+30
      %v2173 = vsel %vm2170, %v2113, -1e+30
      %v2174 = vsel %vm2170, %v2159, -1e+30
      %v2175 = vld [vmem:[#allocation3] sm:$0xff]
      %v2176 = vld [vmem:[#allocation3 + $0x8] sm:$0xff]
      %v2177 = vld [vmem:[#allocation3 + $0x10] sm:$0xff]
      %v2178 = vld [vmem:[#allocation3 + $0x18] sm:$0xff]
      %v2179 = vsel %vm1978, %v2171, -inf
      %2180 = vmax.xlane.f32.xlu0 %v2179
      %v2181 = vpop.xlane.xlu0 %2180
      %v2182 = vsel %vm1978, %v2172, -inf
      %2183 = vmax.xlane.f32.xlu0 %v2182
      %v2184 = vpop.xlane.xlu0 %2183
      %v2185 = vsel %vm1978, %v2173, -inf
      %2186 = vmax.xlane.f32.xlu0 %v2185
      %v2187 = vpop.xlane.xlu0 %2186
      %v2188 = vsel %vm1978, %v2174, -inf
      %2189 = vmax.xlane.f32.xlu0 %v2188
      %v2190 = vpop.xlane.xlu0 %2189
      %v2191 = vmax.f32 %v2175, %v2181
      %v2192 = vmax.f32 %v2176, %v2184
      %v2193 = vmax.f32 %v2177, %v2187
      %v2194 = vmax.f32 %v2178, %v2190
      %v2195 = vsub.f32 %v2175, %v2191
      %v2196 = vsub.f32 %v2176, %v2192
      %v2197 = vsub.f32 %v2177, %v2193
      %v2198 = vsub.f32 %v2178, %v2194
      %v2199 = vmul.f32 %v2195, 1.442695
      %v2200 = vpow.pop %v2199
      %v2201 = vmul.f32 %v2196, 1.442695
      %v2202 = vpow.pop %v2201
      %v2203 = vmul.f32 %v2197, 1.442695
      %v2204 = vpow.pop %v2203
      %v2205 = vmul.f32 %v2198, 1.442695
      %v2206 = vpow.pop %v2205
      %2208 = vset.pattern.permute.xlu0 0
      %2209 = vperm.xlu0 %2208, %v2191
      %v2210 = vpop.permute.xlu0 %2209
      %2213 = vset.pattern.permute.xlu0 0
      %2214 = vperm.xlu0 %2213, %v2192
      %v2215 = vpop.permute.xlu0 %2214
      %2218 = vset.pattern.permute.xlu0 0
      %2219 = vperm.xlu0 %2218, %v2193
      %v2220 = vpop.permute.xlu0 %2219
      %2223 = vset.pattern.permute.xlu0 0
      %2224 = vperm.xlu0 %2223, %v2194
      %v2225 = vpop.permute.xlu0 %2224
      %v2227 = vsub.f32 %v2171, %v2210
      %v2228 = vsub.f32 %v2172, %v2215
      %v2229 = vsub.f32 %v2173, %v2220
      %v2230 = vsub.f32 %v2174, %v2225
      %v2231 = vmul.f32 %v2227, 1.442695
      %v2232 = vpow.pop %v2231
      %v2233 = vmul.f32 %v2228, 1.442695
      %v2234 = vpow.pop %v2233
      %v2235 = vmul.f32 %v2229, 1.442695
      %v2236 = vpow.pop %v2235
      %v2237 = vmul.f32 %v2230, 1.442695
      %v2238 = vpow.pop %v2237
      %v2239 = vld [vmem:[#allocation4] sm:$0xff]
      %v2240 = vld [vmem:[#allocation4 + $0x8] sm:$0xff]
      %v2241 = vld [vmem:[#allocation4 + $0x10] sm:$0xff]
      %v2242 = vld [vmem:[#allocation4 + $0x18] sm:$0xff]
      %v2243 = vmul.f32 %v2200, %v2239
      %v2244 = vmul.f32 %v2202, %v2240
      %v2245 = vmul.f32 %v2204, %v2241
      %v2246 = vmul.f32 %v2206, %v2242
      %v2247 = vsel %vm1978, %v2232, 0.0
      %2248 = vadd.xlane.f32.xlu0 %v2247
      %v2249 = vpop.xlane.xlu0 %2248
      %v2250 = vsel %vm1978, %v2234, 0.0
      %2251 = vadd.xlane.f32.xlu0 %v2250
      %v2252 = vpop.xlane.xlu0 %2251
      %v2253 = vsel %vm1978, %v2236, 0.0
      %2254 = vadd.xlane.f32.xlu0 %v2253
      %v2255 = vpop.xlane.xlu0 %2254
      %v2256 = vsel %vm1978, %v2238, 0.0
      %2257 = vadd.xlane.f32.xlu0 %v2256
      %v2258 = vpop.xlane.xlu0 %2257
      %v2259 = vadd.f32 %v2243, %v2249
      %v2260 = vadd.f32 %v2244, %v2252
      %v2261 = vadd.f32 %v2245, %v2255
      %v2262 = vadd.f32 %v2246, %v2258
      %vm2263 = vcmask 7168
      %2264 = vst.msk [vmem:[#allocation4] sm:$0xff] %vm2263, %v2259
      %2265 = vst.msk [vmem:[#allocation4 + $0x8] sm:$0xff] %vm2263, %v2260
      %2266 = vst.msk [vmem:[#allocation4 + $0x10] sm:$0xff] %vm2263, %v2261
      %2267 = vst.msk [vmem:[#allocation4 + $0x18] sm:$0xff] %vm2263, %v2262
      %v2268 = vld [vmem:[#allocation5] sm:$0xff]
      %v2269 = vld [vmem:[#allocation5 + $0x8] sm:$0xff]
      %v2270 = vld [vmem:[#allocation5 + $0x10] sm:$0xff]
      %v2271 = vld [vmem:[#allocation5 + $0x18] sm:$0xff]
      %2273 = vset.pattern.permute.xlu0 0
      %2274 = vperm.xlu0 %2273, %v2200
      %v2275 = vpop.permute.xlu0 %2274
      %2278 = vset.pattern.permute.xlu0 0
      %2279 = vperm.xlu0 %2278, %v2202
      %v2280 = vpop.permute.xlu0 %2279
      %2283 = vset.pattern.permute.xlu0 0
      %2284 = vperm.xlu0 %2283, %v2204
      %v2285 = vpop.permute.xlu0 %2284
      %2288 = vset.pattern.permute.xlu0 0
      %2289 = vperm.xlu0 %2288, %v2206
      %v2290 = vpop.permute.xlu0 %2289
      %v2292 = vmul.f32 %v2275, %v2268
      %v2293 = vmul.f32 %v2280, %v2269
      %v2294 = vmul.f32 %v2285, %v2270
      %v2295 = vmul.f32 %v2290, %v2271
      %v2296 = vpack.c.bf16 %v2232, %v2232
      %v2297 = vpack.c.bf16 %v2234, %v2234
      %v2298 = vpack.c.bf16 %v2236, %v2236
      %v2299 = vpack.c.bf16 %v2238, %v2238
      %v2300 = vcombine.low %v1516, %v1523
      %v2302 = vunpack.c.l.s4 1983009808
      %v2303 = vunpack.c.0.s8 %v2302
      %v2304 = vlaneseq
      %v2305 = vshrl.u32 %v2304, 7
      %v2306 = vsub.s32 %v2303, %v2305
      %v2307 = vrot.slane %v2300, %v2306
      %v2308 = vcombine.low %v1524, %v1525
      %v2310 = vunpack.c.l.s4 1983009808
      %v2311 = vunpack.c.0.s8 %v2310
      %v2312 = vlaneseq
      %v2313 = vshrl.u32 %v2312, 7
      %v2314 = vsub.s32 %v2311, %v2313
      %v2315 = vrot.slane %v2308, %v2314
      %v2316 = vcombine.low %v2307, %v2315
      %v2318 = vunpack.c.l.s4 1934713408
      %v2319 = vunpack.c.0.s8 %v2318
      %v2320 = vlaneseq
      %v2321 = vshrl.u32 %v2320, 7
      %v2322 = vsub.s32 %v2319, %v2321
      %v2323 = vrot.slane %v2316, %v2322
      %v2324 = vcombine.high %v2323, 0
      %v2325 = vcombine.low %v1550, %v1557
      %v2327 = vunpack.c.l.s4 1983009808
      %v2328 = vunpack.c.0.s8 %v2327
      %v2329 = vlaneseq
      %v2330 = vshrl.u32 %v2329, 7
      %v2331 = vsub.s32 %v2328, %v2330
      %v2332 = vrot.slane %v2325, %v2331
      %v2333 = vcombine.low %v1558, %v1559
      %v2335 = vunpack.c.l.s4 1983009808
      %v2336 = vunpack.c.0.s8 %v2335
      %v2337 = vlaneseq
      %v2338 = vshrl.u32 %v2337, 7
      %v2339 = vsub.s32 %v2336, %v2338
      %v2340 = vrot.slane %v2333, %v2339
      %v2341 = vcombine.low %v2332, %v2340
      %v2343 = vunpack.c.l.s4 1934713408
      %v2344 = vunpack.c.0.s8 %v2343
      %v2345 = vlaneseq
      %v2346 = vshrl.u32 %v2345, 7
      %v2347 = vsub.s32 %v2344, %v2346
      %v2348 = vrot.slane %v2341, %v2347
      %v2349 = vcombine.high %v2348, 0
      %v2352 = vpack.i.b16 %v2348, %v2323
      %v2353 = vshrl.u32 %v2323, 16
      %v2354 = vshrl.u32 %v2348, 16
      %v2355 = vpack.i.b16 %v2354, %v2353
      %v2358 = vpack.i.b16 %v2349, %v2324
      %v2359 = vshrl.u32 %v2324, 16
      %v2360 = vshrl.u32 %v2349, 16
      %v2361 = vpack.i.b16 %v2360, %v2359
      %v2363 = vsel %vm1978, %v2296, 0
      %v2366 = vsel %vm1982, %v2352, 0
      %2368 = vmatprep.subr.bf16.mxu0 0
      %2369 = vmatpush1.bf16.msra.mxu0 %v2366
      %2370 = vmatprep.subr.bf16.mxu0 0
      %2371 = vmatpush1.bf16.msra.mxu0 0
      %2372 = vmatprep.subr.bf16.mxu0 0
      %2373 = vmatpush1.bf16.msra.mxu0 0
      %2374 = vmatprep.subr.bf16.mxu0 0
      %2375 = vmatpush1.bf16.msra.mxu0 0
      %2376 = vmatprep.subr.bf16.mxu0 0
      %2377 = vmatpush1.bf16.msra.mxu0 0
      %2378 = vmatprep.subr.bf16.mxu0 0
      %2379 = vmatpush1.bf16.msra.mxu0 0
      %2380 = vmatprep.subr.bf16.mxu0 0
      %2381 = vmatpush1.bf16.msra.mxu0 0
      %2382 = vmatprep.subr.bf16.mxu0 0
      %2383 = vmatpush1.bf16.msra.mxu0 0
      %2384 = vmatprep.subr.bf16.mxu0 0
      %2385 = vmatpush1.bf16.msra.mxu0 0
      %2386 = vmatprep.subr.bf16.mxu0 0
      %2387 = vmatpush1.bf16.msra.mxu0 0
      %2388 = vmatprep.subr.bf16.mxu0 0
      %2389 = vmatpush1.bf16.msra.mxu0 0
      %2390 = vmatprep.subr.bf16.mxu0 0
      %2391 = vmatpush1.bf16.msra.mxu0 0
      %2392 = vmatprep.subr.bf16.mxu0 0
      %2393 = vmatpush1.bf16.msra.mxu0 0
      %2394 = vmatprep.subr.bf16.mxu0 0
      %2395 = vmatpush1.bf16.msra.mxu0 0
      %2396 = vmatprep.subr.bf16.mxu0 0
      %2397 = vmatpush1.bf16.msra.mxu0 0
      %2398 = vmatprep.subr.bf16.mxu0 0
      %2399 = vmatpush1.bf16.msra.mxu0 0
      %2400 = vmatprep.mubr.bf16.mxu0 0
      %2401 = vmatmul.mubr.bf16.gmra.mrb[0].mxu0 %v2363
      %v2402 = vpop.f32.mrb[0].mxu0
      %v2403 = vadd.f32 0.0, %v2402
      %v2404 = vpop.f32.mrb[0].mxu0
      %v2405 = vpop.f32.mrb[0].mxu0
      %v2406 = vpop.f32.mrb[0].mxu0
      %2407 = vdwg.mxu0
      %v2409 = vsel %vm1978, %v2297, 0
      %v2412 = vsel %vm1982, %v2355, 0
      %2414 = vmatprep.subr.bf16.mxu0 0
      %2415 = vmatpush1.bf16.msra.mxu0 %v2412
      %2416 = vmatprep.subr.bf16.mxu0 0
      %2417 = vmatpush1.bf16.msra.mxu0 0
      %2418 = vmatprep.subr.bf16.mxu0 0
      %2419 = vmatpush1.bf16.msra.mxu0 0
      %2420 = vmatprep.subr.bf16.mxu0 0
      %2421 = vmatpush1.bf16.msra.mxu0 0
      %2422 = vmatprep.subr.bf16.mxu0 0
      %2423 = vmatpush1.bf16.msra.mxu0 0
      %2424 = vmatprep.subr.bf16.mxu0 0
      %2425 = vmatpush1.bf16.msra.mxu0 0
      %2426 = vmatprep.subr.bf16.mxu0 0
      %2427 = vmatpush1.bf16.msra.mxu0 0
      %2428 = vmatprep.subr.bf16.mxu0 0
      %2429 = vmatpush1.bf16.msra.mxu0 0
      %2430 = vmatprep.subr.bf16.mxu0 0
      %2431 = vmatpush1.bf16.msra.mxu0 0
      %2432 = vmatprep.subr.bf16.mxu0 0
      %2433 = vmatpush1.bf16.msra.mxu0 0
      %2434 = vmatprep.subr.bf16.mxu0 0
      %2435 = vmatpush1.bf16.msra.mxu0 0
      %2436 = vmatprep.subr.bf16.mxu0 0
      %2437 = vmatpush1.bf16.msra.mxu0 0
      %2438 = vmatprep.subr.bf16.mxu0 0
      %2439 = vmatpush1.bf16.msra.mxu0 0
      %2440 = vmatprep.subr.bf16.mxu0 0
      %2441 = vmatpush1.bf16.msra.mxu0 0
      %2442 = vmatprep.subr.bf16.mxu0 0
      %2443 = vmatpush1.bf16.msra.mxu0 0
      %2444 = vmatprep.subr.bf16.mxu0 0
      %2445 = vmatpush1.bf16.msra.mxu0 0
      %2446 = vmatprep.mubr.bf16.mxu0 0
      %2447 = vmatmul.mubr.bf16.gmra.mrb[0].mxu0 %v2409
      %v2448 = vpop.f32.mrb[0].mxu0
      %v2449 = vadd.f32 0.0, %v2448
      %v2450 = vpop.f32.mrb[0].mxu0
      %v2451 = vpop.f32.mrb[0].mxu0
      %v2452 = vpop.f32.mrb[0].mxu0
      %2453 = vdwg.mxu0
      %v2455 = vsel %vm1978, %v2298, 0
      %v2458 = vsel %vm1982, %v2358, 0
      %2460 = vmatprep.subr.bf16.mxu0 0
      %2461 = vmatpush1.bf16.msra.mxu0 %v2458
      %2462 = vmatprep.subr.bf16.mxu0 0
      %2463 = vmatpush1.bf16.msra.mxu0 0
      %2464 = vmatprep.subr.bf16.mxu0 0
      %2465 = vmatpush1.bf16.msra.mxu0 0
      %2466 = vmatprep.subr.bf16.mxu0 0
      %2467 = vmatpush1.bf16.msra.mxu0 0
      %2468 = vmatprep.subr.bf16.mxu0 0
      %2469 = vmatpush1.bf16.msra.mxu0 0
      %2470 = vmatprep.subr.bf16.mxu0 0
      %2471 = vmatpush1.bf16.msra.mxu0 0
      %2472 = vmatprep.subr.bf16.mxu0 0
      %2473 = vmatpush1.bf16.msra.mxu0 0
      %2474 = vmatprep.subr.bf16.mxu0 0
      %2475 = vmatpush1.bf16.msra.mxu0 0
      %2476 = vmatprep.subr.bf16.mxu0 0
      %2477 = vmatpush1.bf16.msra.mxu0 0
      %2478 = vmatprep.subr.bf16.mxu0 0
      %2479 = vmatpush1.bf16.msra.mxu0 0
      %2480 = vmatprep.subr.bf16.mxu0 0
      %2481 = vmatpush1.bf16.msra.mxu0 0
      %2482 = vmatprep.subr.bf16.mxu0 0
      %2483 = vmatpush1.bf16.msra.mxu0 0
      %2484 = vmatprep.subr.bf16.mxu0 0
      %2485 = vmatpush1.bf16.msra.mxu0 0
      %2486 = vmatprep.subr.bf16.mxu0 0
      %2487 = vmatpush1.bf16.msra.mxu0 0
      %2488 = vmatprep.subr.bf16.mxu0 0
      %2489 = vmatpush1.bf16.msra.mxu0 0
      %2490 = vmatprep.subr.bf16.mxu0 0
      %2491 = vmatpush1.bf16.msra.mxu0 0
      %2492 = vmatprep.mubr.bf16.mxu0 0
      %2493 = vmatmul.mubr.bf16.gmra.mrb[0].mxu0 %v2455
      %v2494 = vpop.f32.mrb[0].mxu0
      %v2495 = vadd.f32 0.0, %v2494
      %v2496 = vpop.f32.mrb[0].mxu0
      %v2497 = vpop.f32.mrb[0].mxu0
      %v2498 = vpop.f32.mrb[0].mxu0
      %2499 = vdwg.mxu0
      %v2501 = vsel %vm1978, %v2299, 0
      %v2504 = vsel %vm1982, %v2361, 0
      %2506 = vmatprep.subr.bf16.mxu0 0
      %2507 = vmatpush1.bf16.msra.mxu0 %v2504
      %2508 = vmatprep.subr.bf16.mxu0 0
      %2509 = vmatpush1.bf16.msra.mxu0 0
      %2510 = vmatprep.subr.bf16.mxu0 0
      %2511 = vmatpush1.bf16.msra.mxu0 0
      %2512 = vmatprep.subr.bf16.mxu0 0
      %2513 = vmatpush1.bf16.msra.mxu0 0
      %2514 = vmatprep.subr.bf16.mxu0 0
      %2515 = vmatpush1.bf16.msra.mxu0 0
      %2516 = vmatprep.subr.bf16.mxu0 0
      %2517 = vmatpush1.bf16.msra.mxu0 0
      %2518 = vmatprep.subr.bf16.mxu0 0
      %2519 = vmatpush1.bf16.msra.mxu0 0
      %2520 = vmatprep.subr.bf16.mxu0 0
      %2521 = vmatpush1.bf16.msra.mxu0 0
      %2522 = vmatprep.subr.bf16.mxu0 0
      %2523 = vmatpush1.bf16.msra.mxu0 0
      %2524 = vmatprep.subr.bf16.mxu0 0
      %2525 = vmatpush1.bf16.msra.mxu0 0
      %2526 = vmatprep.subr.bf16.mxu0 0
      %2527 = vmatpush1.bf16.msra.mxu0 0
      %2528 = vmatprep.subr.bf16.mxu0 0
      %2529 = vmatpush1.bf16.msra.mxu0 0
      %2530 = vmatprep.subr.bf16.mxu0 0
      %2531 = vmatpush1.bf16.msra.mxu0 0
      %2532 = vmatprep.subr.bf16.mxu0 0
      %2533 = vmatpush1.bf16.msra.mxu0 0
      %2534 = vmatprep.subr.bf16.mxu0 0
      %2535 = vmatpush1.bf16.msra.mxu0 0
      %2536 = vmatprep.subr.bf16.mxu0 0
      %2537 = vmatpush1.bf16.msra.mxu0 0
      %2538 = vmatprep.mubr.bf16.mxu0 0
      %2539 = vmatmul.mubr.bf16.gmra.mrb[0].mxu0 %v2501
      %v2540 = vpop.f32.mrb[0].mxu0
      %v2541 = vadd.f32 0.0, %v2540
      %v2542 = vpop.f32.mrb[0].mxu0
      %v2543 = vpop.f32.mrb[0].mxu0
      %v2544 = vpop.f32.mrb[0].mxu0
      %2545 = vdwg.mxu0
      %v2546 = vadd.f32 %v2292, %v2403
      %v2547 = vadd.f32 %v2293, %v2449
      %v2548 = vadd.f32 %v2294, %v2495
      %v2549 = vadd.f32 %v2295, %v2541
      %2550 = vst.msk [vmem:[#allocation5] sm:$0xff] %vm1978, %v2546
      %2551 = vst.msk [vmem:[#allocation5 + $0x8] sm:$0xff] %vm1978, %v2547
      %2552 = vst.msk [vmem:[#allocation5 + $0x10] sm:$0xff] %vm1978, %v2548
      %2553 = vst.msk [vmem:[#allocation5 + $0x18] sm:$0xff] %vm1978, %v2549
      %2554 = vst.msk [vmem:[#allocation3] sm:$0xff] %vm2263, %v2191
      %2555 = vst.msk [vmem:[#allocation3 + $0x8] sm:$0xff] %vm2263, %v2192
      %2556 = vst.msk [vmem:[#allocation3 + $0x10] sm:$0xff] %vm2263, %v2193
      %2557 = vst.msk [vmem:[#allocation3 + $0x18] sm:$0xff] %vm2263, %v2194
      %v2558 = vld [vmem:[#allocation4] sm:$0xff]
      %v2559 = vld [vmem:[#allocation4 + $0x8] sm:$0xff]
      %v2560 = vld [vmem:[#allocation4 + $0x10] sm:$0xff]
      %v2561 = vld [vmem:[#allocation4 + $0x18] sm:$0xff]
      %v2562 = vrcp.pop %v2558
      %v2563 = vrcp.pop %v2559
      %v2564 = vrcp.pop %v2560
      %v2565 = vrcp.pop %v2561
      %v2566 = vld [vmem:[#allocation5] sm:$0xff]
      %v2567 = vld [vmem:[#allocation5 + $0x8] sm:$0xff]
      %v2568 = vld [vmem:[#allocation5 + $0x10] sm:$0xff]
      %v2569 = vld [vmem:[#allocation5 + $0x18] sm:$0xff]
      %2571 = vset.pattern.permute.xlu0 0
      %2572 = vperm.xlu0 %2571, %v2562
      %v2573 = vpop.permute.xlu0 %2572
      %2576 = vset.pattern.permute.xlu0 0
      %2577 = vperm.xlu0 %2576, %v2563
      %v2578 = vpop.permute.xlu0 %2577
      %2581 = vset.pattern.permute.xlu0 0
      %2582 = vperm.xlu0 %2581, %v2564
      %v2583 = vpop.permute.xlu0 %2582
      %2586 = vset.pattern.permute.xlu0 0
      %2587 = vperm.xlu0 %2586, %v2565
      %v2588 = vpop.permute.xlu0 %2587
      %v2590 = vmul.f32 %v2566, %v2573
      %v2591 = vmul.f32 %v2567, %v2578
      %v2592 = vmul.f32 %v2568, %v2583
      %v2593 = vmul.f32 %v2569, %v2588
      %v2594 = vcombine.low %v2590, %v2592
      %v2595 = vcombine.high %v2590, %v2592
      %v2597 = vunpack.c.l.s4 1983009808
      %v2598 = vunpack.c.0.s8 %v2597
      %v2599 = vlaneseq
      %v2600 = vshrl.u32 %v2599, 7
      %v2601 = vsub.s32 %v2598, %v2600
      %v2602 = vrot.slane %v2594, %v2601
      %v2604 = vunpack.c.l.s4 1983009808
      %v2605 = vunpack.c.0.s8 %v2604
      %v2606 = vlaneseq
      %v2607 = vshrl.u32 %v2606, 7
      %v2608 = vsub.s32 %v2605, %v2607
      %v2609 = vrot.slane %v2595, %v2608
      %v2610 = vcombine.low %v2591, %v2593
      %v2611 = vcombine.high %v2591, %v2593
      %v2613 = vunpack.c.l.s4 1983009808
      %v2614 = vunpack.c.0.s8 %v2613
      %v2615 = vlaneseq
      %v2616 = vshrl.u32 %v2615, 7
      %v2617 = vsub.s32 %v2614, %v2616
      %v2618 = vrot.slane %v2610, %v2617
      %v2620 = vunpack.c.l.s4 1983009808
      %v2621 = vunpack.c.0.s8 %v2620
      %v2622 = vlaneseq
      %v2623 = vshrl.u32 %v2622, 7
      %v2624 = vsub.s32 %v2621, %v2623
      %v2625 = vrot.slane %v2611, %v2624
      %v2626 = vcombine.low %v2602, %v2618
      %v2627 = vcombine.high %v2602, %v2618
      %v2629 = vunpack.c.l.s4 1934713408
      %v2630 = vunpack.c.0.s8 %v2629
      %v2631 = vlaneseq
      %v2632 = vshrl.u32 %v2631, 7
      %v2633 = vsub.s32 %v2630, %v2632
      %v2634 = vrot.slane %v2626, %v2633
      %v2636 = vunpack.c.l.s4 1934713408
      %v2637 = vunpack.c.0.s8 %v2636
      %v2638 = vlaneseq
      %v2639 = vshrl.u32 %v2638, 7
      %v2640 = vsub.s32 %v2637, %v2639
      %v2641 = vrot.slane %v2627, %v2640
      %v2642 = vcombine.low %v2609, %v2625
      %v2643 = vcombine.high %v2609, %v2625
      %v2645 = vunpack.c.l.s4 1934713408
      %v2646 = vunpack.c.0.s8 %v2645
      %v2647 = vlaneseq
      %v2648 = vshrl.u32 %v2647, 7
      %v2649 = vsub.s32 %v2646, %v2648
      %v2650 = vrot.slane %v2642, %v2649
      %v2652 = vunpack.c.l.s4 1934713408
      %v2653 = vunpack.c.0.s8 %v2652
      %v2654 = vlaneseq
      %v2655 = vshrl.u32 %v2654, 7
      %v2656 = vsub.s32 %v2653, %v2655
      %v2657 = vrot.slane %v2643, %v2656
      %v2658 = vcombine.high %v2634, 0.0
      %v2659 = vcombine.high %v2641, 0.0
      %v2660 = vcombine.high %v2650, 0.0
      %v2661 = vcombine.high %v2657, 0.0
      %v2662 = vcombine.low %v2634, %v2641
      %v2664 = vunpack.c.l.s4 1983009808
      %v2665 = vunpack.c.0.s8 %v2664
      %v2666 = vlaneseq
      %v2667 = vshrl.u32 %v2666, 7
      %v2668 = vsub.s32 %v2665, %v2667
      %v2669 = vrot.slane %v2662, %v2668
      %v2670 = vcombine.low %v2658, %v2659
      %v2672 = vunpack.c.l.s4 1983009808
      %v2673 = vunpack.c.0.s8 %v2672
      %v2674 = vlaneseq
      %v2675 = vshrl.u32 %v2674, 7
      %v2676 = vsub.s32 %v2673, %v2675
      %v2677 = vrot.slane %v2670, %v2676
      %v2678 = vcombine.low %v2650, %v2657
      %v2680 = vunpack.c.l.s4 1983009808
      %v2681 = vunpack.c.0.s8 %v2680
      %v2682 = vlaneseq
      %v2683 = vshrl.u32 %v2682, 7
      %v2684 = vsub.s32 %v2681, %v2683
      %v2685 = vrot.slane %v2678, %v2684
      %v2686 = vcombine.low %v2660, %v2661
      %v2688 = vunpack.c.l.s4 1983009808
      %v2689 = vunpack.c.0.s8 %v2688
      %v2690 = vlaneseq
      %v2691 = vshrl.u32 %v2690, 7
      %v2692 = vsub.s32 %v2689, %v2691
      %v2693 = vrot.slane %v2686, %v2692
      %v2694 = vcombine.low %v2669, %v2677
      %v2695 = vcombine.high %v2669, %v2677
      %v2697 = vunpack.c.l.s4 1934713408
      %v2698 = vunpack.c.0.s8 %v2697
      %v2699 = vlaneseq
      %v2700 = vshrl.u32 %v2699, 7
      %v2701 = vsub.s32 %v2698, %v2700
      %v2702 = vrot.slane %v2694, %v2701
      %v2704 = vunpack.c.l.s4 1934713408
      %v2705 = vunpack.c.0.s8 %v2704
      %v2706 = vlaneseq
      %v2707 = vshrl.u32 %v2706, 7
      %v2708 = vsub.s32 %v2705, %v2707
      %v2709 = vrot.slane %v2695, %v2708
      %v2710 = vcombine.low %v2685, %v2693
      %v2711 = vcombine.high %v2685, %v2693
      %v2713 = vunpack.c.l.s4 1934713408
      %v2714 = vunpack.c.0.s8 %v2713
      %v2715 = vlaneseq
      %v2716 = vshrl.u32 %v2715, 7
      %v2717 = vsub.s32 %v2714, %v2716
      %v2718 = vrot.slane %v2710, %v2717
      %v2720 = vunpack.c.l.s4 1934713408
      %v2721 = vunpack.c.0.s8 %v2720
      %v2722 = vlaneseq
      %v2723 = vshrl.u32 %v2722, 7
      %v2724 = vsub.s32 %v2721, %v2723
      %v2725 = vrot.slane %v2711, %v2724
      %v2726 = vcombine.low %v2702, %v2718
      %v2727 = vcombine.high %v2702, %v2718
      %v2728 = vcombine.low %v2709, %v2725
      %v2729 = vcombine.high %v2709, %v2725
      %2731 = vrot.lane.b32.xlu0 %v2727, 8
      %v2732 = vpop.permute.xlu0 %2731
      %2735 = vrot.lane.b32.xlu0 %v2728, 16
      %v2736 = vpop.permute.xlu0 %2735
      %2739 = vrot.lane.b32.xlu0 %v2729, 24
      %v2740 = vpop.permute.xlu0 %2739
      %v2742 = vsel %vm1978, %v2726, %v2732
      %vm2743 = vcmask 130048
      %v2744 = vsel %vm2743, %v2742, %v2736
      %vm2745 = vcmask 195584
      %v2746 = vsel %vm2745, %v2744, %v2740
      %v2747 = vpack.c.bf16 %v2746, %v2746
      %v2748 = vld [vmem:[%s3] sm:$0xf]
      %v2749 = vld [vmem:[%s3 + $0x4] sm:$0xf]
      %v2750 = vld [vmem:[%s3 + $0x8] sm:$0xf]
      %v2751 = vld [vmem:[%s3 + $0xc] sm:$0xf]
      %v2752 = vld [vmem:[%s4] sm:$0x1]
      %v2753 = vunpack.c.l.bf16 %v2752
      %v2754 = vlaneseq
      %v2755 = vshrl.u32 %v2754, 7
      %v2756 = vsub.s32 0, %v2755
      %v2757 = vrot.slane %v2753, %v2756
      %v2762 = vunpack.c.l.b16 %v2748
      %v2763 = vunpack.c.l.b16 %v2749
      %v2764 = vunpack.c.l.b16 %v2750
      %v2765 = vunpack.c.l.b16 %v2751
      %v2766 = vpack.c.b16 %v2763, %v2762
      %v2767 = vpack.c.b16 %v2765, %v2764
      %vm2770 = vcmask 261120
      %v2772 = vsel %vm2770, %v2747, 0
      %2774 = vmatprep.subr.bf16.mxu0 0
      %2775 = vmatpush1.bf16.msra.mxu0 %v2766
      %2776 = vmatprep.subr.bf16.mxu0 0
      %2777 = vmatpush1.bf16.msra.mxu0 %v2767
      %2778 = vmatprep.subr.bf16.mxu0 0
      %2779 = vmatpush1.bf16.msra.mxu0 0
      %2780 = vmatprep.subr.bf16.mxu0 0
      %2781 = vmatpush1.bf16.msra.mxu0 0
      %2782 = vmatprep.subr.bf16.mxu0 0
      %2783 = vmatpush1.bf16.msra.mxu0 0
      %2784 = vmatprep.subr.bf16.mxu0 0
      %2785 = vmatpush1.bf16.msra.mxu0 0
      %2786 = vmatprep.subr.bf16.mxu0 0
      %2787 = vmatpush1.bf16.msra.mxu0 0
      %2788 = vmatprep.subr.bf16.mxu0 0
      %2789 = vmatpush1.bf16.msra.mxu0 0
      %2790 = vmatprep.subr.bf16.mxu0 0
      %2791 = vmatpush1.bf16.msra.mxu0 0
      %2792 = vmatprep.subr.bf16.mxu0 0
      %2793 = vmatpush1.bf16.msra.mxu0 0
      %2794 = vmatprep.subr.bf16.mxu0 0
      %2795 = vmatpush1.bf16.msra.mxu0 0
      %2796 = vmatprep.subr.bf16.mxu0 0
      %2797 = vmatpush1.bf16.msra.mxu0 0
      %2798 = vmatprep.subr.bf16.mxu0 0
      %2799 = vmatpush1.bf16.msra.mxu0 0
      %2800 = vmatprep.subr.bf16.mxu0 0
      %2801 = vmatpush1.bf16.msra.mxu0 0
      %2802 = vmatprep.subr.bf16.mxu0 0
      %2803 = vmatpush1.bf16.msra.mxu0 0
      %2804 = vmatprep.subr.bf16.mxu0 0
      %2805 = vmatpush1.bf16.msra.mxu0 0
      %2806 = vmatprep.mubr.bf16.mxu0 0
      %2807 = vmatmul.mubr.bf16.gmra.mrb[0].mxu0 %v2772
      %v2808 = vpop.f32.mrb[0].mxu0
      %v2809 = vadd.f32 %v2757, %v2808
      %v2810 = vpop.f32.mrb[0].mxu0
      %v2811 = vpop.f32.mrb[0].mxu0
      %v2812 = vpop.f32.mrb[0].mxu0
      %2813 = vdwg.mxu0
      %v2814 = vpack.c.bf16 %v2809, %v2809
      %vm2815 = vcmask 257024
      %2816 = vst.msk [vmem:[#allocation6] sm:$0xf] %vm2815, %v2814
    $region33: #{gpt2_attention.3} parent=1 // pred_fallthru
      _
    // Predicated region
    $region34: #{gpt2_attention.3} parent=1 // pred_check
      _
    $region35: #{gpt2_attention.3} parent=1 // pred_check_branch
      %2818 = sbr.rel (0) target = $region37
    $region36: #{gpt2_attention.3} parent=1 // pred_region
      %s2820 = ssub.s32 64, 64
      %2821 = vsyncadd [#allocation7], %s2820
      %s2823 = sshll.u32 [#allocation6], 4
      %s2824 = int_to_ptr.vmem [resolvable:$true] %s2823
      %2826 = dma.vmem_to_hbm [thread:$0]  %s2824, 64, %s5, [#allocation7]
    $region37: #{gpt2_attention.3} parent=1 // pred_fallthru
      _
    // Predicated region
    $region38: #{gpt2_attention.3} parent=1 // pred_check
      _
    $region39: #{gpt2_attention.3} parent=1 // pred_check_branch
      %2828 = sbr.rel (0) target = $region41
    $region40: #{gpt2_attention.3} parent=1 // pred_region
      %2829 = dma.done [#allocation7], 64
    $region41: #{gpt2_attention.3} parent=1 // pred_fallthru
      _
    %2830 = vsyncpa [#allocation7], 1

</llo_original>
